<compile_context>
chip_gen: v7x
topology: tpu7x:2x2x1
jax: 0.10.0
libtpu: 0.0.40
codegen_flags: <defaults>
</compile_context>

<pallas_src>
import math
import functools

import jax
import jax.numpy as jnp
import numpy as np
from jax import lax
from jax.experimental import pallas as pl
from jax.experimental.pallas import tpu as pltpu


# ----------------------------------------------------------------------------
# Tiling helper: largest tile <= target that divides `dim` and is a multiple
# of `align` (the full dim is always a legal block).
# ----------------------------------------------------------------------------
def _pick_tile(dim, target, align):
    if dim <= target:
        return dim
    t = (target // align) * align
    while t >= align:
        if dim % t == 0:
            return t
        t -= align
    return dim


# ----------------------------------------------------------------------------
# Tiled linear:  y = x @ W + b      (W stored [K, N] bf16, pre-transposed)
# ----------------------------------------------------------------------------
def _linear_kernel(x_ref, w_ref, b_ref, o_ref, acc_ref):
    k = pl.program_id(2)

    @pl.when(k == 0)
    def _():
        acc_ref[...] = jnp.zeros_like(acc_ref)

    # bf16 MXU inputs, f32 accumulation.
    acc_ref[...] += jnp.dot(
        x_ref[...].astype(jnp.bfloat16), w_ref[...],
        preferred_element_type=jnp.float32)

    @pl.when(k == pl.num_programs(2) - 1)
    def _():
        o_ref[...] = (acc_ref[...] + b_ref[...]).astype(o_ref.dtype)


def linear_pallas(x, w_kn, b):
    """x: [M, K] f32, w_kn: [K, N] bf16, b: [N] f32 -> [M, N] f32."""
    M, K = x.shape
    K2, N = w_kn.shape
    assert K == K2
    tm = _pick_tile(M, 256, 8)
    tn = _pick_tile(N, 256, 128)
    tk = _pick_tile(K, 512, 128)
    grid = (M // tm, N // tn, K // tk)
    return pl.pallas_call(
        _linear_kernel,
        out_shape=jax.ShapeDtypeStruct((M, N), jnp.float32),
        grid_spec=pltpu.PrefetchScalarGridSpec(
            num_scalar_prefetch=0,
            grid=grid,
            in_specs=[
                pl.BlockSpec((tm, tk), lambda i, j, k: (i, k)),
                pl.BlockSpec((tk, tn), lambda i, j, k: (k, j)),
                pl.BlockSpec((1, tn), lambda i, j, k: (0, j)),
            ],
            out_specs=pl.BlockSpec((tm, tn), lambda i, j, k: (i, j)),
            scratch_shapes=[pltpu.VMEM((tm, tn), jnp.float32)],
        ),
        compiler_params=pltpu.CompilerParams(
            dimension_semantics=("parallel", "parallel", "arbitrary")),
    )(x, w_kn, b.reshape(1, N))


# ----------------------------------------------------------------------------
# Flash-style masked attention.
#   q/k/v: [S, B, n, hn] bf16 (seq-first, no head transpose needed)
#   mask:  [B, S, S] int8 (nonzero == attend), shared across heads
#   out:   [B, S, H] f32   (batch-first context, consumed row-wise downstream)
# ----------------------------------------------------------------------------
def _flash_attn_kernel(mask_ref, q_ref, k_ref, v_ref, o_ref,
                       m_ref, l_ref, acc_ref, *, num_heads, head_dim, scale):
    kv = pl.program_id(2)

    @pl.when(kv == 0)
    def _():
        # Finite "-inf" so fully-masked rows stay well-defined (l stays 0).
        m_ref[...] = jnp.full_like(m_ref, -1e30)
        l_ref[...] = jnp.zeros_like(l_ref)
        acc_ref[...] = jnp.zeros_like(acc_ref)

    valid = mask_ref[0] != 0                       # (tq, tk) bool, all heads

    for h in range(num_heads):                     # static unroll over heads
        q_h = q_ref[:, 0, h, :]                    # (tq, hn) bf16
        k_h = k_ref[:, 0, h, :]                    # (tk, hn) bf16
        v_h = v_ref[:, 0, h, :]                    # (tk, hn) bf16

        # q @ k^T without materializing a transpose: contract last dims.
        s = lax.dot_general(q_h, k_h, (((1,), (1,)), ((), ())),
                            preferred_element_type=jnp.float32) * scale
        s = jnp.where(valid, s, jnp.float32(-1e30))

        m_prev = m_ref[h]                          # (tq, 1)
        m_new = jnp.maximum(m_prev, jnp.max(s, axis=-1, keepdims=True))
        alpha = jnp.exp(m_prev - m_new)
        # Masked entries contribute exactly 0 (CSR-softmax semantics).
        p = jnp.where(valid, jnp.exp(s - m_new), jnp.float32(0.0))

        l_ref[h] = alpha * l_ref[h] + jnp.sum(p, axis=-1, keepdims=True)
        acc_ref[h] = alpha * acc_ref[h] + jnp.dot(
            p.astype(jnp.bfloat16), v_h, preferred_element_type=jnp.float32)
        m_ref[h] = m_new

    @pl.when(kv == pl.num_programs(2) - 1)
    def _():
        for h in range(num_heads):
            l_h = l_ref[h]
            # Empty rows (l == 0) -> output exactly 0 (acc is already 0).
            inv = pl.reciprocal(jnp.where(l_h == 0.0, jnp.float32(1.0), l_h),
                                approx=True)
            o_ref[0, :, h * head_dim:(h + 1) * head_dim] = (
                acc_ref[h] * inv).astype(o_ref.dtype)


def flash_attention(q, k, v, mask_i8, *, scale):
    S, B, n, hn = q.shape
    H = n * hn
    tq = _pick_tile(S, 128, 8)
    tk = _pick_tile(S, 128, 128)
    kernel = functools.partial(_flash_attn_kernel, num_heads=n,
                               head_dim=hn, scale=scale)
    return pl.pallas_call(
        kernel,
        out_shape=jax.ShapeDtypeStruct((B, S, H), jnp.float32),
        grid_spec=pltpu.PrefetchScalarGridSpec(
            num_scalar_prefetch=0,
            grid=(B, S // tq, S // tk),
            in_specs=[
                pl.BlockSpec((1, tq, tk), lambda b, qi, ki: (b, qi, ki)),
                pl.BlockSpec((tq, 1, n, hn), lambda b, qi, ki: (qi, b, 0, 0)),
                pl.BlockSpec((tk, 1, n, hn), lambda b, qi, ki: (ki, b, 0, 0)),
                pl.BlockSpec((tk, 1, n, hn), lambda b, qi, ki: (ki, b, 0, 0)),
            ],
            out_specs=pl.BlockSpec((1, tq, H), lambda b, qi, ki: (b, qi, 0)),
            scratch_shapes=[
                pltpu.VMEM((n, tq, 1), jnp.float32),    # running max m
                pltpu.VMEM((n, tq, 1), jnp.float32),    # running denom l
                pltpu.VMEM((n, tq, hn), jnp.float32),   # running acc
            ],
        ),
        compiler_params=pltpu.CompilerParams(
            dimension_semantics=("parallel", "parallel", "arbitrary")),
    )(mask_i8, q, k, v)


# ----------------------------------------------------------------------------
# Model glue (no XLA transposes remain; only free reshapes)
# ----------------------------------------------------------------------------
def transformer_layer(x, mask_i8, p, num_heads):
    """x: [S, B, H]."""
    S, B, H = x.shape
    hn = H // num_heads

    # QKV projection.  Per-row linear is order-independent, so keeping the
    # seq-first row order avoids the torch permute entirely.
    mixed = linear_pallas(x.reshape(S * B, H), p["w_qkv"], p["b_qkv"])
    mixed = mixed.reshape(S, B, num_heads, 3 * hn)
    q = mixed[..., :hn].astype(jnp.bfloat16)
    k = mixed[..., hn:2 * hn].astype(jnp.bfloat16)
    v = mixed[..., 2 * hn:].astype(jnp.bfloat16)

    # Attention writes the context in batch-first [B, S, H] layout, so
    # dense / fc1 / fc2 (all row-wise) run on (b, s)-ordered rows and the
    # final raw reshape to (S, B, H) reproduces torch's
    # `reshape(*output_shape)` memory reinterpretation exactly.
    ctx = flash_attention(q, k, v, mask_i8, scale=1.0 / math.sqrt(hn))
    rows = ctx.reshape(B * S, H)
    attn_out = linear_pallas(rows, p["w_dense"], p["b_dense"])
    h1 = linear_pallas(attn_out, p["w_fc1"], p["b_fc1"])
    h2 = linear_pallas(h1, p["w_fc2"], p["b_fc2"])
    return h2.reshape(S, B, H)


def transformer_forward(x, mask, params, num_heads):
    """x: [S, B, H], mask: [B, 1, S, S] (nonzero == attend)."""
    B = mask.shape[0]
    S = mask.shape[-1]
    mask_i8 = (mask.reshape(B, S, S) != 0).astype(jnp.int8)   # 4x less traffic
    for p in params:
        x = transformer_layer(x, mask_i8, p, num_heads)
    return x


# ----------------------------------------------------------------------------
# Pure-JAX reference mirroring the same bf16-matmul / f32-accumulate policy
# ----------------------------------------------------------------------------
def reference_forward(x, mask, params, num_heads):
    B = mask.shape[0]
    S = mask.shape[-1]
    valid = mask.reshape(B, S, S) != 0

    def lin(t, w_kn, b):
        return jnp.dot(t.astype(jnp.bfloat16), w_kn,
                       preferred_element_type=jnp.float32) + b

    for p in params:
        Sx, Bx, H = x.shape
        hn = H // num_heads
        mixed = lin(x.reshape(Sx * Bx, H), p["w_qkv"], p["b_qkv"])
        mixed = mixed.reshape(Sx, Bx, num_heads, 3 * hn)
        qh = jnp.transpose(mixed[..., :hn], (1, 2, 0, 3)).astype(jnp.bfloat16)
        kh = jnp.transpose(mixed[..., hn:2 * hn], (1, 2, 0, 3)).astype(jnp.bfloat16)
        vh = jnp.transpose(mixed[..., 2 * hn:], (1, 2, 0, 3)).astype(jnp.bfloat16)

        s = jnp.einsum("bnqd,bnkd->bnqk", qh, kh,
                       preferred_element_type=jnp.float32) / math.sqrt(hn)
        vmask = valid[:, None, :, :]
        s = jnp.where(vmask, s, jnp.float32(-1e30))
        mrow = jnp.max(s, axis=-1, keepdims=True)
        pexp = jnp.where(vmask, jnp.exp(s - mrow), jnp.float32(0.0))
        l = jnp.sum(pexp, axis=-1, keepdims=True)
        l = jnp.where(l == 0.0, jnp.float32(1.0), l)
        ctx = jnp.einsum("bnqk,bnkd->bnqd", pexp.astype(jnp.bfloat16), vh,
                         preferred_element_type=jnp.float32) / l
        context = jnp.transpose(ctx, (2, 0, 1, 3)).reshape(Sx, Bx, H)

        attn_out = lin(context.reshape(Sx * Bx, H),
                       p["w_dense"], p["b_dense"]).reshape(Sx, Bx, H)
        yb = jnp.transpose(attn_out, (1, 0, 2)).reshape(Bx * Sx, H)
        h1 = lin(yb, p["w_fc1"], p["b_fc1"])
        h2 = lin(h1, p["w_fc2"], p["b_fc2"])
        x = h2.reshape(Sx, Bx, H)   # raw reshape, matching torch semantics
    return x


# ----------------------------------------------------------------------------
# Deterministic parameter init (torch nn.Linear init, then pre-transposed
# to [in, out] and cast to bf16 once, outside jit).
# ----------------------------------------------------------------------------
def init_params(key, n_layers, hidden, num_heads, ffn_hidden):
    def lin(k, out_dim, in_dim):
        kw, kb = jax.random.split(k)
        bound = 1.0 / math.sqrt(in_dim)
        w = jax.random.uniform(kw, (out_dim, in_dim), jnp.float32, -bound, bound)
        b = jax.random.uniform(kb, (out_dim,), jnp.float32, -bound, bound)
        return jnp.asarray(w.T, dtype=jnp.bfloat16), b

    params = []
    for i in range(n_layers):
        lk = jax.random.fold_in(key, i)
        k1, k2, k3, k4 = jax.random.split(lk, 4)
        w_qkv, b_qkv = lin(k1, 3 * hidden, hidden)
        w_dense, b_dense = lin(k2, hidden, hidden)
        w_fc1, b_fc1 = lin(k3, ffn_hidden, hidden)
        w_fc2, b_fc2 = lin(k4, hidden, ffn_hidden)
        params.append(dict(w_qkv=w_qkv, b_qkv=b_qkv,
                           w_dense=w_dense, b_dense=b_dense,
                           w_fc1=w_fc1, b_fc1=b_fc1,
                           w_fc2=w_fc2, b_fc2=b_fc2))
    return params


if __name__ == "__main__":
    N_LAYERS = 2
    SEQ = 8
    BATCH = 2
    HIDDEN = 32
    NUM_HEADS = 4
    FFN = 64

    key = jax.random.PRNGKey(0)
    k_x, k_p = jax.random.split(key)

    # hidden_states: [seq, batch, hidden]; mask: [batch, 1, seq, seq] (causal)
    x = jax.random.normal(k_x, (SEQ, BATCH, HIDDEN), jnp.float32)
    causal = jnp.tril(jnp.ones((SEQ, SEQ), jnp.float32))
    mask = jnp.broadcast_to(causal, (BATCH, 1, SEQ, SEQ))

    params = init_params(k_p, N_LAYERS, HIDDEN, NUM_HEADS, FFN)

    fwd = jax.jit(functools.partial(transformer_forward, num_heads=NUM_HEADS))
    out = jax.block_until_ready(fwd(x, mask, params))

    ref = jax.block_until_ready(reference_forward(x, mask, params, NUM_HEADS))
    np.testing.assert_allclose(np.asarray(out), np.asarray(ref),
                               rtol=1e-2, atol=1e-2)
    assert out.shape == (SEQ, BATCH, HIDDEN)

    print("KERNEL_OK")
</pallas_src>

<mosaic_0001>
module attributes {stable_mosaic.version = 11 : i64} {
  func.func @_linear_kernel(%arg0: i32, %arg1: i32, %arg2: i32, %arg3: memref<16x32xf32, #tpu.memory_space<vmem>>, %arg4: memref<32x96xbf16, #tpu.memory_space<vmem>>, %arg5: memref<1x96xf32, #tpu.memory_space<vmem>>, %arg6: memref<16x96xf32, #tpu.memory_space<vmem>>, %arg7: memref<16x96xf32, #tpu.memory_space<vmem>>) attributes {dimension_semantics = [#tpu.dimension_semantics<parallel>, #tpu.dimension_semantics<parallel>, #tpu.dimension_semantics<arbitrary>], iteration_bounds = array<i64: 1, 1, 1>, scalar_prefetch = 0 : i64, scratch_operands = 1 : i64, tpu.core_type = #tpu.core_type<tc>, window_params = [{transform_indices = @transform_0, window_bounds = array<i64: 16, 32>}, {transform_indices = @transform_1, window_bounds = array<i64: 32, 96>}, {transform_indices = @transform_2, window_bounds = array<i64: 1, 96>}, {transform_indices = @transform_3, window_bounds = array<i64: 16, 96>}]} {
    %c0_i32 = arith.constant 0 : i32
    %0 = arith.cmpi eq, %arg2, %c0_i32 : i32
    %1 = arith.extui %0 : i1 to i32
    %c0_i32_0 = arith.constant 0 : i32
    %2 = arith.cmpi ne, %1, %c0_i32_0 : i32
    scf.if %2 {
      %cst_10 = arith.constant 0.000000e+00 : f32
      %13 = vector.broadcast %cst_10 : f32 to vector<16x96xf32>
      %c0_11 = arith.constant 0 : index
      %c0_12 = arith.constant 0 : index
      %14 = vector.load %arg7[%c0_11, %c0_12] : memref<16x96xf32, #tpu.memory_space<vmem>>, vector<16x96xf32>
      tpu.vector_store %arg7[%c0_11, %c0_12], %13 {strides = array<i32>} : memref<16x96xf32, #tpu.memory_space<vmem>>, vector<16x96xf32>,
    } else {
    }
    %c0 = arith.constant 0 : index
    %c0_1 = arith.constant 0 : index
    %3 = vector.load %arg7[%c0, %c0_1] : memref<16x96xf32, #tpu.memory_space<vmem>>, vector<16x96xf32>
    %c0_2 = arith.constant 0 : index
    %c0_3 = arith.constant 0 : index
    %4 = vector.load %arg3[%c0_2, %c0_3] : memref<16x32xf32, #tpu.memory_space<vmem>>, vector<16x32xf32>
    %5 = arith.truncf %4 : vector<16x32xf32> to vector<16x32xbf16>
    %c0_4 = arith.constant 0 : index
    %c0_5 = arith.constant 0 : index
    %6 = vector.load %arg4[%c0_4, %c0_5] : memref<32x96xbf16, #tpu.memory_space<vmem>>, vector<32x96xbf16>
    %cst = arith.constant dense<0.000000e+00> : vector<16x96xf32>
    %7 = tpu.matmul %5, %6, %cst {dimension_numbers = #tpu.dot_dimension_numbers<[1], [0], [0], [1], [0, 0, 1, 1], [], []>} : vector<16x32xbf16>, vector<32x96xbf16>, vector<16x96xf32> -> vector<16x96xf32>
    %8 = arith.addf %3, %7 : vector<16x96xf32>
    %c0_6 = arith.constant 0 : index
    %c0_7 = arith.constant 0 : index
    %9 = vector.load %arg7[%c0_6, %c0_7] : memref<16x96xf32, #tpu.memory_space<vmem>>, vector<16x96xf32>
    tpu.vector_store %arg7[%c0_6, %c0_7], %8 {strides = array<i32>} : memref<16x96xf32, #tpu.memory_space<vmem>>, vector<16x96xf32>,
    %c0_i32_8 = arith.constant 0 : i32
    %10 = arith.cmpi eq, %arg2, %c0_i32_8 : i32
    %11 = arith.extui %10 : i1 to i32
    %c0_i32_9 = arith.constant 0 : i32
    %12 = arith.cmpi ne, %11, %c0_i32_9 : i32
    scf.if %12 {
      %c0_10 = arith.constant 0 : index
      %c0_11 = arith.constant 0 : index
      %13 = vector.load %arg7[%c0_10, %c0_11] : memref<16x96xf32, #tpu.memory_space<vmem>>, vector<16x96xf32>
      %c0_12 = arith.constant 0 : index
      %c0_13 = arith.constant 0 : index
      %14 = vector.load %arg5[%c0_12, %c0_13] : memref<1x96xf32, #tpu.memory_space<vmem>>, vector<1x96xf32>
      %15 = vector.broadcast %14 : vector<1x96xf32> to vector<16x96xf32>
      %16 = arith.addf %13, %15 : vector<16x96xf32>
      %c0_14 = arith.constant 0 : index
      %c0_15 = arith.constant 0 : index
      %17 = vector.load %arg6[%c0_14, %c0_15] : memref<16x96xf32, #tpu.memory_space<vmem>>, vector<16x96xf32>
      tpu.vector_store %arg6[%c0_14, %c0_15], %16 {strides = array<i32>} : memref<16x96xf32, #tpu.memory_space<vmem>>, vector<16x96xf32>,
    } else {
    }
    return
  }
  func.func @transform_0(%arg0: i32, %arg1: i32, %arg2: i32) -> (i32, i32) {
    %c0_i32 = arith.constant 0 : i32
    return %arg0, %arg2 : i32, i32
  }
  func.func @transform_1(%arg0: i32, %arg1: i32, %arg2: i32) -> (i32, i32) {
    %c0_i32 = arith.constant 0 : i32
    return %arg2, %arg1 : i32, i32
  }
  func.func @transform_2(%arg0: i32, %arg1: i32, %arg2: i32) -> (i32, i32) {
    %c0_i32 = arith.constant 0 : i32
    %c0_i32_0 = arith.constant 0 : i32
    return %c0_i32, %arg1 : i32, i32
  }
  func.func @transform_3(%arg0: i32, %arg1: i32, %arg2: i32) -> (i32, i32) {
    %c0_i32 = arith.constant 0 : i32
    return %arg0, %arg1 : i32, i32
  }
}

module attributes {stable_mosaic.version = 11 : i64} {
  func.func @_linear_kernel(%arg0: i32, %arg1: i32, %arg2: i32, %arg3: memref<16x32xf32, #tpu.memory_space<vmem>>, %arg4: memref<32x64xbf16, #tpu.memory_space<vmem>>, %arg5: memref<1x64xf32, #tpu.memory_space<vmem>>, %arg6: memref<16x64xf32, #tpu.memory_space<vmem>>, %arg7: memref<16x64xf32, #tpu.memory_space<vmem>>) attributes {dimension_semantics = [#tpu.dimension_semantics<parallel>, #tpu.dimension_semantics<parallel>, #tpu.dimension_semantics<arbitrary>], iteration_bounds = array<i64: 1, 1, 1>, scalar_prefetch = 0 : i64, scratch_operands = 1 : i64, tpu.core_type = #tpu.core_type<tc>, window_params = [{transform_indices = @transform_0, window_bounds = array<i64: 16, 32>}, {transform_indices = @transform_1, window_bounds = array<i64: 32, 64>}, {transform_indices = @transform_2, window_bounds = array<i64: 1, 64>}, {transform_indices = @transform_3, window_bounds = array<i64: 16, 64>}]} {
    %c0_i32 = arith.constant 0 : i32
    %0 = arith.cmpi eq, %arg2, %c0_i32 : i32
    %1 = arith.extui %0 : i1 to i32
    %c0_i32_0 = arith.constant 0 : i32
    %2 = arith.cmpi ne, %1, %c0_i32_0 : i32
    scf.if %2 {
      %cst_10 = arith.constant 0.000000e+00 : f32
      %13 = vector.broadcast %cst_10 : f32 to vector<16x64xf32>
      %c0_11 = arith.constant 0 : index
      %c0_12 = arith.constant 0 : index
      %14 = vector.load %arg7[%c0_11, %c0_12] : memref<16x64xf32, #tpu.memory_space<vmem>>, vector<16x64xf32>
      tpu.vector_store %arg7[%c0_11, %c0_12], %13 {strides = array<i32>} : memref<16x64xf32, #tpu.memory_space<vmem>>, vector<16x64xf32>,
    } else {
    }
    %c0 = arith.constant 0 : index
    %c0_1 = arith.constant 0 : index
    %3 = vector.load %arg7[%c0, %c0_1] : memref<16x64xf32, #tpu.memory_space<vmem>>, vector<16x64xf32>
    %c0_2 = arith.constant 0 : index
    %c0_3 = arith.constant 0 : index
    %4 = vector.load %arg3[%c0_2, %c0_3] : memref<16x32xf32, #tpu.memory_space<vmem>>, vector<16x32xf32>
    %5 = arith.truncf %4 : vector<16x32xf32> to vector<16x32xbf16>
    %c0_4 = arith.constant 0 : index
    %c0_5 = arith.constant 0 : index
    %6 = vector.load %arg4[%c0_4, %c0_5] : memref<32x64xbf16, #tpu.memory_space<vmem>>, vector<32x64xbf16>
    %cst = arith.constant dense<0.000000e+00> : vector<16x64xf32>
    %7 = tpu.matmul %5, %6, %cst {dimension_numbers = #tpu.dot_dimension_numbers<[1], [0], [0], [1], [0, 0, 1, 1], [], []>} : vector<16x32xbf16>, vector<32x64xbf16>, vector<16x64xf32> -> vector<16x64xf32>
    %8 = arith.addf %3, %7 : vector<16x64xf32>
    %c0_6 = arith.constant 0 : index
    %c0_7 = arith.constant 0 : index
    %9 = vector.load %arg7[%c0_6, %c0_7] : memref<16x64xf32, #tpu.memory_space<vmem>>, vector<16x64xf32>
    tpu.vector_store %arg7[%c0_6, %c0_7], %8 {strides = array<i32>} : memref<16x64xf32, #tpu.memory_space<vmem>>, vector<16x64xf32>,
    %c0_i32_8 = arith.constant 0 : i32
    %10 = arith.cmpi eq, %arg2, %c0_i32_8 : i32
    %11 = arith.extui %10 : i1 to i32
    %c0_i32_9 = arith.constant 0 : i32
    %12 = arith.cmpi ne, %11, %c0_i32_9 : i32
    scf.if %12 {
      %c0_10 = arith.constant 0 : index
      %c0_11 = arith.constant 0 : index
      %13 = vector.load %arg7[%c0_10, %c0_11] : memref<16x64xf32, #tpu.memory_space<vmem>>, vector<16x64xf32>
      %c0_12 = arith.constant 0 : index
      %c0_13 = arith.constant 0 : index
      %14 = vector.load %arg5[%c0_12, %c0_13] : memref<1x64xf32, #tpu.memory_space<vmem>>, vector<1x64xf32>
      %15 = vector.broadcast %14 : vector<1x64xf32> to vector<16x64xf32>
      %16 = arith.addf %13, %15 : vector<16x64xf32>
      %c0_14 = arith.constant 0 : index
      %c0_15 = arith.constant 0 : index
      %17 = vector.load %arg6[%c0_14, %c0_15] : memref<16x64xf32, #tpu.memory_space<vmem>>, vector<16x64xf32>
      tpu.vector_store %arg6[%c0_14, %c0_15], %16 {strides = array<i32>} : memref<16x64xf32, #tpu.memory_space<vmem>>, vector<16x64xf32>,
    } else {
    }
    return
  }
  func.func @transform_0(%arg0: i32, %arg1: i32, %arg2: i32) -> (i32, i32) {
    %c0_i32 = arith.constant 0 : i32
    return %arg0, %arg2 : i32, i32
  }
  func.func @transform_1(%arg0: i32, %arg1: i32, %arg2: i32) -> (i32, i32) {
    %c0_i32 = arith.constant 0 : i32
    return %arg2, %arg1 : i32, i32
  }
  func.func @transform_2(%arg0: i32, %arg1: i32, %arg2: i32) -> (i32, i32) {
    %c0_i32 = arith.constant 0 : i32
    %c0_i32_0 = arith.constant 0 : i32
    return %c0_i32, %arg1 : i32, i32
  }
  func.func @transform_3(%arg0: i32, %arg1: i32, %arg2: i32) -> (i32, i32) {
    %c0_i32 = arith.constant 0 : i32
    return %arg0, %arg1 : i32, i32
  }
}

module attributes {stable_mosaic.version = 11 : i64} {
  func.func @_flash_attn_kernel(%arg0: i32, %arg1: i32, %arg2: i32, %arg3: memref<1x8x8xi8, #tpu.memory_space<vmem>>, %arg4: memref<8x1x4x8xbf16, #tpu.memory_space<vmem>>, %arg5: memref<8x1x4x8xbf16, #tpu.memory_space<vmem>>, %arg6: memref<8x1x4x8xbf16, #tpu.memory_space<vmem>>, %arg7: memref<1x8x32xf32, #tpu.memory_space<vmem>>, %arg8: memref<4x8x1xf32, #tpu.memory_space<vmem>>, %arg9: memref<4x8x1xf32, #tpu.memory_space<vmem>>, %arg10: memref<4x8x8xf32, #tpu.memory_space<vmem>>) attributes {dimension_semantics = [#tpu.dimension_semantics<parallel>, #tpu.dimension_semantics<parallel>, #tpu.dimension_semantics<arbitrary>], iteration_bounds = array<i64: 2, 1, 1>, scalar_prefetch = 0 : i64, scratch_operands = 3 : i64, tpu.core_type = #tpu.core_type<tc>, window_params = [{transform_indices = @transform_0, window_bounds = array<i64: 1, 8, 8>}, {transform_indices = @transform_1, window_bounds = array<i64: 8, 1, 4, 8>}, {transform_indices = @transform_2, window_bounds = array<i64: 8, 1, 4, 8>}, {transform_indices = @transform_3, window_bounds = array<i64: 8, 1, 4, 8>}, {transform_indices = @transform_4, window_bounds = array<i64: 1, 8, 32>}]} {
    %c0_i32 = arith.constant 0 : i32
    %0 = arith.cmpi eq, %arg2, %c0_i32 : i32
    %1 = arith.extui %0 : i1 to i32
    %c0_i32_0 = arith.constant 0 : i32
    %2 = arith.cmpi ne, %1, %c0_i32_0 : i32
    scf.if %2 {
      %cst_149 = arith.constant -1.000000e+30 : f32
      %190 = vector.broadcast %cst_149 : f32 to vector<4x8x1xf32>
      %c0_150 = arith.constant 0 : index
      %c0_151 = arith.constant 0 : index
      %c0_152 = arith.constant 0 : index
      %191 = vector.load %arg8[%c0_150, %c0_151, %c0_152] : memref<4x8x1xf32, #tpu.memory_space<vmem>>, vector<4x8x1xf32>
      tpu.vector_store %arg8[%c0_150, %c0_151, %c0_152], %190 {strides = array<i32>} : memref<4x8x1xf32, #tpu.memory_space<vmem>>, vector<4x8x1xf32>,
      %cst_153 = arith.constant 0.000000e+00 : f32
      %192 = vector.broadcast %cst_153 : f32 to vector<4x8x1xf32>
      %c0_154 = arith.constant 0 : index
      %c0_155 = arith.constant 0 : index
      %c0_156 = arith.constant 0 : index
      %193 = vector.load %arg9[%c0_154, %c0_155, %c0_156] : memref<4x8x1xf32, #tpu.memory_space<vmem>>, vector<4x8x1xf32>
      tpu.vector_store %arg9[%c0_154, %c0_155, %c0_156], %192 {strides = array<i32>} : memref<4x8x1xf32, #tpu.memory_space<vmem>>, vector<4x8x1xf32>,
      %cst_157 = arith.constant 0.000000e+00 : f32
      %194 = vector.broadcast %cst_157 : f32 to vector<4x8x8xf32>
      %c0_158 = arith.constant 0 : index
      %c0_159 = arith.constant 0 : index
      %c0_160 = arith.constant 0 : index
      %195 = vector.load %arg10[%c0_158, %c0_159, %c0_160] : memref<4x8x8xf32, #tpu.memory_space<vmem>>, vector<4x8x8xf32>
      tpu.vector_store %arg10[%c0_158, %c0_159, %c0_160], %194 {strides = array<i32>} : memref<4x8x8xf32, #tpu.memory_space<vmem>>, vector<4x8x8xf32>,
    } else {
    }
    %c0 = arith.constant 0 : index
    %c0_1 = arith.constant 0 : index
    %c0_2 = arith.constant 0 : index
    %3 = vector.load %arg3[%c0, %c0_1, %c0_2] : memref<1x8x8xi8, #tpu.memory_space<vmem>>, vector<1x8x8xi8>
    %4 = vector.shape_cast %3 : vector<1x8x8xi8> to vector<8x8xi8>
    %c0_i8 = arith.constant 0 : i8
    %5 = vector.broadcast %c0_i8 : i8 to vector<8x8xi8>
    %6 = arith.cmpi ne, %4, %5 : vector<8x8xi8>
    %c0_3 = arith.constant 0 : index
    %c0_4 = arith.constant 0 : index
    %c0_5 = arith.constant 0 : index
    %c0_6 = arith.constant 0 : index
    %7 = vector.load %arg4[%c0_3, %c0_4, %c0_5, %c0_6] : memref<8x1x4x8xbf16, #tpu.memory_space<vmem>>, vector<8x1x1x8xbf16>
    %8 = vector.shape_cast %7 : vector<8x1x1x8xbf16> to vector<8x8xbf16>
    %c0_7 = arith.constant 0 : index
    %c0_8 = arith.constant 0 : index
    %c0_9 = arith.constant 0 : index
    %c0_10 = arith.constant 0 : index
    %9 = vector.load %arg5[%c0_7, %c0_8, %c0_9, %c0_10] : memref<8x1x4x8xbf16, #tpu.memory_space<vmem>>, vector<8x1x1x8xbf16>
    %10 = vector.shape_cast %9 : vector<8x1x1x8xbf16> to vector<8x8xbf16>
    %c0_11 = arith.constant 0 : index
    %c0_12 = arith.constant 0 : index
    %c0_13 = arith.constant 0 : index
    %c0_14 = arith.constant 0 : index
    %11 = vector.load %arg6[%c0_11, %c0_12, %c0_13, %c0_14] : memref<8x1x4x8xbf16, #tpu.memory_space<vmem>>, vector<8x1x1x8xbf16>
    %12 = vector.shape_cast %11 : vector<8x1x1x8xbf16> to vector<8x8xbf16>
    %cst = arith.constant dense<0.000000e+00> : vector<8x8xf32>
    %13 = tpu.matmul %8, %10, %cst {dimension_numbers = #tpu.dot_dimension_numbers<[1], [1], [0], [0], [0, 0, 1, 0], [], []>} : vector<8x8xbf16>, vector<8x8xbf16>, vector<8x8xf32> -> vector<8x8xf32>
    %cst_15 = arith.constant 0.353553385 : f32
    %14 = vector.broadcast %cst_15 : f32 to vector<8x8xf32>
    %15 = arith.mulf %13, %14 : vector<8x8xf32>
    %cst_16 = arith.constant -1.000000e+30 : f32
    %16 = vector.broadcast %cst_16 : f32 to vector<8x8xf32>
    %17 = arith.select %6, %15, %16 : vector<8x8xi1>, vector<8x8xf32>
    %c0_17 = arith.constant 0 : index
    %c0_18 = arith.constant 0 : index
    %c0_19 = arith.constant 0 : index
    %18 = vector.load %arg8[%c0_17, %c0_18, %c0_19] : memref<4x8x1xf32, #tpu.memory_space<vmem>>, vector<1x8x1xf32>
    %19 = vector.shape_cast %18 : vector<1x8x1xf32> to vector<8x1xf32>
    %cst_20 = arith.constant dense<0xFF800000> : vector<8xf32>
    %20 = vector.multi_reduction <maximumf>, %17, %cst_20 [1] : vector<8x8xf32> to vector<8xf32>
    %21 = vector.shape_cast %20 : vector<8xf32> to vector<8x1xf32>
    %22 = arith.maximumf %19, %21 : vector<8x1xf32>
    %23 = arith.subf %19, %22 : vector<8x1xf32>
    %24 = math.exp %23 : vector<8x1xf32>
    %25 = vector.broadcast %22 : vector<8x1xf32> to vector<8x8xf32>
    %26 = arith.subf %17, %25 : vector<8x8xf32>
    %27 = math.exp %26 : vector<8x8xf32>
    %cst_21 = arith.constant 0.000000e+00 : f32
    %28 = vector.broadcast %cst_21 : f32 to vector<8x8xf32>
    %29 = arith.select %6, %27, %28 : vector<8x8xi1>, vector<8x8xf32>
    %c0_22 = arith.constant 0 : index
    %c0_23 = arith.constant 0 : index
    %c0_24 = arith.constant 0 : index
    %30 = vector.load %arg9[%c0_22, %c0_23, %c0_24] : memref<4x8x1xf32, #tpu.memory_space<vmem>>, vector<1x8x1xf32>
    %31 = vector.shape_cast %30 : vector<1x8x1xf32> to vector<8x1xf32>
    %32 = arith.mulf %24, %31 : vector<8x1xf32>
    %cst_25 = arith.constant dense<0.000000e+00> : vector<8xf32>
    %33 = vector.multi_reduction <add>, %29, %cst_25 [1] : vector<8x8xf32> to vector<8xf32>
    %34 = vector.shape_cast %33 : vector<8xf32> to vector<8x1xf32>
    %35 = arith.addf %32, %34 : vector<8x1xf32>
    %c0_26 = arith.constant 0 : index
    %c0_27 = arith.constant 0 : index
    %c0_28 = arith.constant 0 : index
    %36 = vector.load %arg9[%c0_26, %c0_27, %c0_28] : memref<4x8x1xf32, #tpu.memory_space<vmem>>, vector<1x8x1xf32>
    %37 = vector.shape_cast %36 : vector<1x8x1xf32> to vector<8x1xf32>
    %38 = vector.shape_cast %35 : vector<8x1xf32> to vector<1x8x1xf32>
    tpu.vector_store %arg9[%c0_26, %c0_27, %c0_28], %38 {strides = array<i32>} : memref<4x8x1xf32, #tpu.memory_space<vmem>>, vector<1x8x1xf32>,
    %c0_29 = arith.constant 0 : index
    %c0_30 = arith.constant 0 : index
    %c0_31 = arith.constant 0 : index
    %39 = vector.load %arg10[%c0_29, %c0_30, %c0_31] : memref<4x8x8xf32, #tpu.memory_space<vmem>>, vector<1x8x8xf32>
    %40 = vector.shape_cast %39 : vector<1x8x8xf32> to vector<8x8xf32>
    %41 = vector.broadcast %24 : vector<8x1xf32> to vector<8x8xf32>
    %42 = arith.mulf %41, %40 : vector<8x8xf32>
    %43 = arith.truncf %29 : vector<8x8xf32> to vector<8x8xbf16>
    %cst_32 = arith.constant dense<0.000000e+00> : vector<8x8xf32>
    %44 = tpu.matmul %43, %12, %cst_32 {dimension_numbers = #tpu.dot_dimension_numbers<[1], [0], [0], [1], [0, 0, 1, 1], [], []>} : vector<8x8xbf16>, vector<8x8xbf16>, vector<8x8xf32> -> vector<8x8xf32>
    %45 = arith.addf %42, %44 : vector<8x8xf32>
    %c0_33 = arith.constant 0 : index
    %c0_34 = arith.constant 0 : index
    %c0_35 = arith.constant 0 : index
    %46 = vector.load %arg10[%c0_33, %c0_34, %c0_35] : memref<4x8x8xf32, #tpu.memory_space<vmem>>, vector<1x8x8xf32>
    %47 = vector.shape_cast %46 : vector<1x8x8xf32> to vector<8x8xf32>
    %48 = vector.shape_cast %45 : vector<8x8xf32> to vector<1x8x8xf32>
    tpu.vector_store %arg10[%c0_33, %c0_34, %c0_35], %48 {strides = array<i32>} : memref<4x8x8xf32, #tpu.memory_space<vmem>>, vector<1x8x8xf32>,
    %c0_36 = arith.constant 0 : index
    %c0_37 = arith.constant 0 : index
    %c0_38 = arith.constant 0 : index
    %49 = vector.load %arg8[%c0_36, %c0_37, %c0_38] : memref<4x8x1xf32, #tpu.memory_space<vmem>>, vector<1x8x1xf32>
    %50 = vector.shape_cast %49 : vector<1x8x1xf32> to vector<8x1xf32>
    %51 = vector.shape_cast %22 : vector<8x1xf32> to vector<1x8x1xf32>
    tpu.vector_store %arg8[%c0_36, %c0_37, %c0_38], %51 {strides = array<i32>} : memref<4x8x1xf32, #tpu.memory_space<vmem>>, vector<1x8x1xf32>,
    %c0_39 = arith.constant 0 : index
    %c0_40 = arith.constant 0 : index
    %c1 = arith.constant 1 : index
    %c0_41 = arith.constant 0 : index
    %52 = vector.load %arg4[%c0_39, %c0_40, %c1, %c0_41] : memref<8x1x4x8xbf16, #tpu.memory_space<vmem>>, vector<8x1x1x8xbf16>
    %53 = vector.shape_cast %52 : vector<8x1x1x8xbf16> to vector<8x8xbf16>
    %c0_42 = arith.constant 0 : index
    %c0_43 = arith.constant 0 : index
    %c1_44 = arith.constant 1 : index
    %c0_45 = arith.constant 0 : index
    %54 = vector.load %arg5[%c0_42, %c0_43, %c1_44, %c0_45] : memref<8x1x4x8xbf16, #tpu.memory_space<vmem>>, vector<8x1x1x8xbf16>
    %55 = vector.shape_cast %54 : vector<8x1x1x8xbf16> to vector<8x8xbf16>
    %c0_46 = arith.constant 0 : index
    %c0_47 = arith.constant 0 : index
    %c1_48 = arith.constant 1 : index
    %c0_49 = arith.constant 0 : index
    %56 = vector.load %arg6[%c0_46, %c0_47, %c1_48, %c0_49] : memref<8x1x4x8xbf16, #tpu.memory_space<vmem>>, vector<8x1x1x8xbf16>
    %57 = vector.shape_cast %56 : vector<8x1x1x8xbf16> to vector<8x8xbf16>
    %cst_50 = arith.constant dense<0.000000e+00> : vector<8x8xf32>
    %58 = tpu.matmul %53, %55, %cst_50 {dimension_numbers = #tpu.dot_dimension_numbers<[1], [1], [0], [0], [0, 0, 1, 0], [], []>} : vector<8x8xbf16>, vector<8x8xbf16>, vector<8x8xf32> -> vector<8x8xf32>
    %cst_51 = arith.constant 0.353553385 : f32
    %59 = vector.broadcast %cst_51 : f32 to vector<8x8xf32>
    %60 = arith.mulf %58, %59 : vector<8x8xf32>
    %cst_52 = arith.constant -1.000000e+30 : f32
    %61 = vector.broadcast %cst_52 : f32 to vector<8x8xf32>
    %62 = arith.select %6, %60, %61 : vector<8x8xi1>, vector<8x8xf32>
    %c1_53 = arith.constant 1 : index
    %c0_54 = arith.constant 0 : index
    %c0_55 = arith.constant 0 : index
    %63 = vector.load %arg8[%c1_53, %c0_54, %c0_55] : memref<4x8x1xf32, #tpu.memory_space<vmem>>, vector<1x8x1xf32>
    %64 = vector.shape_cast %63 : vector<1x8x1xf32> to vector<8x1xf32>
    %cst_56 = arith.constant dense<0xFF800000> : vector<8xf32>
    %65 = vector.multi_reduction <maximumf>, %62, %cst_56 [1] : vector<8x8xf32> to vector<8xf32>
    %66 = vector.shape_cast %65 : vector<8xf32> to vector<8x1xf32>
    %67 = arith.maximumf %64, %66 : vector<8x1xf32>
    %68 = arith.subf %64, %67 : vector<8x1xf32>
    %69 = math.exp %68 : vector<8x1xf32>
    %70 = vector.broadcast %67 : vector<8x1xf32> to vector<8x8xf32>
    %71 = arith.subf %62, %70 : vector<8x8xf32>
    %72 = math.exp %71 : vector<8x8xf32>
    %cst_57 = arith.constant 0.000000e+00 : f32
    %73 = vector.broadcast %cst_57 : f32 to vector<8x8xf32>
    %74 = arith.select %6, %72, %73 : vector<8x8xi1>, vector<8x8xf32>
    %c1_58 = arith.constant 1 : index
    %c0_59 = arith.constant 0 : index
    %c0_60 = arith.constant 0 : index
    %75 = vector.load %arg9[%c1_58, %c0_59, %c0_60] : memref<4x8x1xf32, #tpu.memory_space<vmem>>, vector<1x8x1xf32>
    %76 = vector.shape_cast %75 : vector<1x8x1xf32> to vector<8x1xf32>
    %77 = arith.mulf %69, %76 : vector<8x1xf32>
    %cst_61 = arith.constant dense<0.000000e+00> : vector<8xf32>
    %78 = vector.multi_reduction <add>, %74, %cst_61 [1] : vector<8x8xf32> to vector<8xf32>
    %79 = vector.shape_cast %78 : vector<8xf32> to vector<8x1xf32>
    %80 = arith.addf %77, %79 : vector<8x1xf32>
    %c1_62 = arith.constant 1 : index
    %c0_63 = arith.constant 0 : index
    %c0_64 = arith.constant 0 : index
    %81 = vector.load %arg9[%c1_62, %c0_63, %c0_64] : memref<4x8x1xf32, #tpu.memory_space<vmem>>, vector<1x8x1xf32>
    %82 = vector.shape_cast %81 : vector<1x8x1xf32> to vector<8x1xf32>
    %83 = vector.shape_cast %80 : vector<8x1xf32> to vector<1x8x1xf32>
    tpu.vector_store %arg9[%c1_62, %c0_63, %c0_64], %83 {strides = array<i32>} : memref<4x8x1xf32, #tpu.memory_space<vmem>>, vector<1x8x1xf32>,
    %c1_65 = arith.constant 1 : index
    %c0_66 = arith.constant 0 : index
    %c0_67 = arith.constant 0 : index
    %84 = vector.load %arg10[%c1_65, %c0_66, %c0_67] : memref<4x8x8xf32, #tpu.memory_space<vmem>>, vector<1x8x8xf32>
    %85 = vector.shape_cast %84 : vector<1x8x8xf32> to vector<8x8xf32>
    %86 = vector.broadcast %69 : vector<8x1xf32> to vector<8x8xf32>
    %87 = arith.mulf %86, %85 : vector<8x8xf32>
    %88 = arith.truncf %74 : vector<8x8xf32> to vector<8x8xbf16>
    %cst_68 = arith.constant dense<0.000000e+00> : vector<8x8xf32>
    %89 = tpu.matmul %88, %57, %cst_68 {dimension_numbers = #tpu.dot_dimension_numbers<[1], [0], [0], [1], [0, 0, 1, 1], [], []>} : vector<8x8xbf16>, vector<8x8xbf16>, vector<8x8xf32> -> vector<8x8xf32>
    %90 = arith.addf %87, %89 : vector<8x8xf32>
    %c1_69 = arith.constant 1 : index
    %c0_70 = arith.constant 0 : index
    %c0_71 = arith.constant 0 : index
    %91 = vector.load %arg10[%c1_69, %c0_70, %c0_71] : memref<4x8x8xf32, #tpu.memory_space<vmem>>, vector<1x8x8xf32>
    %92 = vector.shape_cast %91 : vector<1x8x8xf32> to vector<8x8xf32>
    %93 = vector.shape_cast %90 : vector<8x8xf32> to vector<1x8x8xf32>
    tpu.vector_store %arg10[%c1_69, %c0_70, %c0_71], %93 {strides = array<i32>} : memref<4x8x8xf32, #tpu.memory_space<vmem>>, vector<1x8x8xf32>,
    %c1_72 = arith.constant 1 : index
    %c0_73 = arith.constant 0 : index
    %c0_74 = arith.constant 0 : index
    %94 = vector.load %arg8[%c1_72, %c0_73, %c0_74] : memref<4x8x1xf32, #tpu.memory_space<vmem>>, vector<1x8x1xf32>
    %95 = vector.shape_cast %94 : vector<1x8x1xf32> to vector<8x1xf32>
    %96 = vector.shape_cast %67 : vector<8x1xf32> to vector<1x8x1xf32>
    tpu.vector_store %arg8[%c1_72, %c0_73, %c0_74], %96 {strides = array<i32>} : memref<4x8x1xf32, #tpu.memory_space<vmem>>, vector<1x8x1xf32>,
    %c0_75 = arith.constant 0 : index
    %c0_76 = arith.constant 0 : index
    %c2 = arith.constant 2 : index
    %c0_77 = arith.constant 0 : index
    %97 = vector.load %arg4[%c0_75, %c0_76, %c2, %c0_77] : memref<8x1x4x8xbf16, #tpu.memory_space<vmem>>, vector<8x1x1x8xbf16>
    %98 = vector.shape_cast %97 : vector<8x1x1x8xbf16> to vector<8x8xbf16>
    %c0_78 = arith.constant 0 : index
    %c0_79 = arith.constant 0 : index
    %c2_80 = arith.constant 2 : index
    %c0_81 = arith.constant 0 : index
    %99 = vector.load %arg5[%c0_78, %c0_79, %c2_80, %c0_81] : memref<8x1x4x8xbf16, #tpu.memory_space<vmem>>, vector<8x1x1x8xbf16>
    %100 = vector.shape_cast %99 : vector<8x1x1x8xbf16> to vector<8x8xbf16>
    %c0_82 = arith.constant 0 : index
    %c0_83 = arith.constant 0 : index
    %c2_84 = arith.constant 2 : index
    %c0_85 = arith.constant 0 : index
    %101 = vector.load %arg6[%c0_82, %c0_83, %c2_84, %c0_85] : memref<8x1x4x8xbf16, #tpu.memory_space<vmem>>, vector<8x1x1x8xbf16>
    %102 = vector.shape_cast %101 : vector<8x1x1x8xbf16> to vector<8x8xbf16>
    %cst_86 = arith.constant dense<0.000000e+00> : vector<8x8xf32>
    %103 = tpu.matmul %98, %100, %cst_86 {dimension_numbers = #tpu.dot_dimension_numbers<[1], [1], [0], [0], [0, 0, 1, 0], [], []>} : vector<8x8xbf16>, vector<8x8xbf16>, vector<8x8xf32> -> vector<8x8xf32>
    %cst_87 = arith.constant 0.353553385 : f32
    %104 = vector.broadcast %cst_87 : f32 to vector<8x8xf32>
    %105 = arith.mulf %103, %104 : vector<8x8xf32>
    %cst_88 = arith.constant -1.000000e+30 : f32
    %106 = vector.broadcast %cst_88 : f32 to vector<8x8xf32>
    %107 = arith.select %6, %105, %106 : vector<8x8xi1>, vector<8x8xf32>
    %c2_89 = arith.constant 2 : index
    %c0_90 = arith.constant 0 : index
    %c0_91 = arith.constant 0 : index
    %108 = vector.load %arg8[%c2_89, %c0_90, %c0_91] : memref<4x8x1xf32, #tpu.memory_space<vmem>>, vector<1x8x1xf32>
    %109 = vector.shape_cast %108 : vector<1x8x1xf32> to vector<8x1xf32>
    %cst_92 = arith.constant dense<0xFF800000> : vector<8xf32>
    %110 = vector.multi_reduction <maximumf>, %107, %cst_92 [1] : vector<8x8xf32> to vector<8xf32>
    %111 = vector.shape_cast %110 : vector<8xf32> to vector<8x1xf32>
    %112 = arith.maximumf %109, %111 : vector<8x1xf32>
    %113 = arith.subf %109, %112 : vector<8x1xf32>
    %114 = math.exp %113 : vector<8x1xf32>
    %115 = vector.broadcast %112 : vector<8x1xf32> to vector<8x8xf32>
    %116 = arith.subf %107, %115 : vector<8x8xf32>
    %117 = math.exp %116 : vector<8x8xf32>
    %cst_93 = arith.constant 0.000000e+00 : f32
    %118 = vector.broadcast %cst_93 : f32 to vector<8x8xf32>
    %119 = arith.select %6, %117, %118 : vector<8x8xi1>, vector<8x8xf32>
    %c2_94 = arith.constant 2 : index
    %c0_95 = arith.constant 0 : index
    %c0_96 = arith.constant 0 : index
    %120 = vector.load %arg9[%c2_94, %c0_95, %c0_96] : memref<4x8x1xf32, #tpu.memory_space<vmem>>, vector<1x8x1xf32>
    %121 = vector.shape_cast %120 : vector<1x8x1xf32> to vector<8x1xf32>
    %122 = arith.mulf %114, %121 : vector<8x1xf32>
    %cst_97 = arith.constant dense<0.000000e+00> : vector<8xf32>
    %123 = vector.multi_reduction <add>, %119, %cst_97 [1] : vector<8x8xf32> to vector<8xf32>
    %124 = vector.shape_cast %123 : vector<8xf32> to vector<8x1xf32>
    %125 = arith.addf %122, %124 : vector<8x1xf32>
    %c2_98 = arith.constant 2 : index
    %c0_99 = arith.constant 0 : index
    %c0_100 = arith.constant 0 : index
    %126 = vector.load %arg9[%c2_98, %c0_99, %c0_100] : memref<4x8x1xf32, #tpu.memory_space<vmem>>, vector<1x8x1xf32>
    %127 = vector.shape_cast %126 : vector<1x8x1xf32> to vector<8x1xf32>
    %128 = vector.shape_cast %125 : vector<8x1xf32> to vector<1x8x1xf32>
    tpu.vector_store %arg9[%c2_98, %c0_99, %c0_100], %128 {strides = array<i32>} : memref<4x8x1xf32, #tpu.memory_space<vmem>>, vector<1x8x1xf32>,
    %c2_101 = arith.constant 2 : index
    %c0_102 = arith.constant 0 : index
    %c0_103 = arith.constant 0 : index
    %129 = vector.load %arg10[%c2_101, %c0_102, %c0_103] : memref<4x8x8xf32, #tpu.memory_space<vmem>>, vector<1x8x8xf32>
    %130 = vector.shape_cast %129 : vector<1x8x8xf32> to vector<8x8xf32>
    %131 = vector.broadcast %114 : vector<8x1xf32> to vector<8x8xf32>
    %132 = arith.mulf %131, %130 : vector<8x8xf32>
    %133 = arith.truncf %119 : vector<8x8xf32> to vector<8x8xbf16>
    %cst_104 = arith.constant dense<0.000000e+00> : vector<8x8xf32>
    %134 = tpu.matmul %133, %102, %cst_104 {dimension_numbers = #tpu.dot_dimension_numbers<[1], [0], [0], [1], [0, 0, 1, 1], [], []>} : vector<8x8xbf16>, vector<8x8xbf16>, vector<8x8xf32> -> vector<8x8xf32>
    %135 = arith.addf %132, %134 : vector<8x8xf32>
    %c2_105 = arith.constant 2 : index
    %c0_106 = arith.constant 0 : index
    %c0_107 = arith.constant 0 : index
    %136 = vector.load %arg10[%c2_105, %c0_106, %c0_107] : memref<4x8x8xf32, #tpu.memory_space<vmem>>, vector<1x8x8xf32>
    %137 = vector.shape_cast %136 : vector<1x8x8xf32> to vector<8x8xf32>
    %138 = vector.shape_cast %135 : vector<8x8xf32> to vector<1x8x8xf32>
    tpu.vector_store %arg10[%c2_105, %c0_106, %c0_107], %138 {strides = array<i32>} : memref<4x8x8xf32, #tpu.memory_space<vmem>>, vector<1x8x8xf32>,
    %c2_108 = arith.constant 2 : index
    %c0_109 = arith.constant 0 : index
    %c0_110 = arith.constant 0 : index
    %139 = vector.load %arg8[%c2_108, %c0_109, %c0_110] : memref<4x8x1xf32, #tpu.memory_space<vmem>>, vector<1x8x1xf32>
    %140 = vector.shape_cast %139 : vector<1x8x1xf32> to vector<8x1xf32>
    %141 = vector.shape_cast %112 : vector<8x1xf32> to vector<1x8x1xf32>
    tpu.vector_store %arg8[%c2_108, %c0_109, %c0_110], %141 {strides = array<i32>} : memref<4x8x1xf32, #tpu.memory_space<vmem>>, vector<1x8x1xf32>,
    %c0_111 = arith.constant 0 : index
    %c0_112 = arith.constant 0 : index
    %c3 = arith.constant 3 : index
    %c0_113 = arith.constant 0 : index
    %142 = vector.load %arg4[%c0_111, %c0_112, %c3, %c0_113] : memref<8x1x4x8xbf16, #tpu.memory_space<vmem>>, vector<8x1x1x8xbf16>
    %143 = vector.shape_cast %142 : vector<8x1x1x8xbf16> to vector<8x8xbf16>
    %c0_114 = arith.constant 0 : index
    %c0_115 = arith.constant 0 : index
    %c3_116 = arith.constant 3 : index
    %c0_117 = arith.constant 0 : index
    %144 = vector.load %arg5[%c0_114, %c0_115, %c3_116, %c0_117] : memref<8x1x4x8xbf16, #tpu.memory_space<vmem>>, vector<8x1x1x8xbf16>
    %145 = vector.shape_cast %144 : vector<8x1x1x8xbf16> to vector<8x8xbf16>
    %c0_118 = arith.constant 0 : index
    %c0_119 = arith.constant 0 : index
    %c3_120 = arith.constant 3 : index
    %c0_121 = arith.constant 0 : index
    %146 = vector.load %arg6[%c0_118, %c0_119, %c3_120, %c0_121] : memref<8x1x4x8xbf16, #tpu.memory_space<vmem>>, vector<8x1x1x8xbf16>
    %147 = vector.shape_cast %146 : vector<8x1x1x8xbf16> to vector<8x8xbf16>
    %cst_122 = arith.constant dense<0.000000e+00> : vector<8x8xf32>
    %148 = tpu.matmul %143, %145, %cst_122 {dimension_numbers = #tpu.dot_dimension_numbers<[1], [1], [0], [0], [0, 0, 1, 0], [], []>} : vector<8x8xbf16>, vector<8x8xbf16>, vector<8x8xf32> -> vector<8x8xf32>
    %cst_123 = arith.constant 0.353553385 : f32
    %149 = vector.broadcast %cst_123 : f32 to vector<8x8xf32>
    %150 = arith.mulf %148, %149 : vector<8x8xf32>
    %cst_124 = arith.constant -1.000000e+30 : f32
    %151 = vector.broadcast %cst_124 : f32 to vector<8x8xf32>
    %152 = arith.select %6, %150, %151 : vector<8x8xi1>, vector<8x8xf32>
    %c3_125 = arith.constant 3 : index
    %c0_126 = arith.constant 0 : index
    %c0_127 = arith.constant 0 : index
    %153 = vector.load %arg8[%c3_125, %c0_126, %c0_127] : memref<4x8x1xf32, #tpu.memory_space<vmem>>, vector<1x8x1xf32>
    %154 = vector.shape_cast %153 : vector<1x8x1xf32> to vector<8x1xf32>
    %cst_128 = arith.constant dense<0xFF800000> : vector<8xf32>
    %155 = vector.multi_reduction <maximumf>, %152, %cst_128 [1] : vector<8x8xf32> to vector<8xf32>
    %156 = vector.shape_cast %155 : vector<8xf32> to vector<8x1xf32>
    %157 = arith.maximumf %154, %156 : vector<8x1xf32>
    %158 = arith.subf %154, %157 : vector<8x1xf32>
    %159 = math.exp %158 : vector<8x1xf32>
    %160 = vector.broadcast %157 : vector<8x1xf32> to vector<8x8xf32>
    %161 = arith.subf %152, %160 : vector<8x8xf32>
    %162 = math.exp %161 : vector<8x8xf32>
    %cst_129 = arith.constant 0.000000e+00 : f32
    %163 = vector.broadcast %cst_129 : f32 to vector<8x8xf32>
    %164 = arith.select %6, %162, %163 : vector<8x8xi1>, vector<8x8xf32>
    %c3_130 = arith.constant 3 : index
    %c0_131 = arith.constant 0 : index
    %c0_132 = arith.constant 0 : index
    %165 = vector.load %arg9[%c3_130, %c0_131, %c0_132] : memref<4x8x1xf32, #tpu.memory_space<vmem>>, vector<1x8x1xf32>
    %166 = vector.shape_cast %165 : vector<1x8x1xf32> to vector<8x1xf32>
    %167 = arith.mulf %159, %166 : vector<8x1xf32>
    %cst_133 = arith.constant dense<0.000000e+00> : vector<8xf32>
    %168 = vector.multi_reduction <add>, %164, %cst_133 [1] : vector<8x8xf32> to vector<8xf32>
    %169 = vector.shape_cast %168 : vector<8xf32> to vector<8x1xf32>
    %170 = arith.addf %167, %169 : vector<8x1xf32>
    %c3_134 = arith.constant 3 : index
    %c0_135 = arith.constant 0 : index
    %c0_136 = arith.constant 0 : index
    %171 = vector.load %arg9[%c3_134, %c0_135, %c0_136] : memref<4x8x1xf32, #tpu.memory_space<vmem>>, vector<1x8x1xf32>
    %172 = vector.shape_cast %171 : vector<1x8x1xf32> to vector<8x1xf32>
    %173 = vector.shape_cast %170 : vector<8x1xf32> to vector<1x8x1xf32>
    tpu.vector_store %arg9[%c3_134, %c0_135, %c0_136], %173 {strides = array<i32>} : memref<4x8x1xf32, #tpu.memory_space<vmem>>, vector<1x8x1xf32>,
    %c3_137 = arith.constant 3 : index
    %c0_138 = arith.constant 0 : index
    %c0_139 = arith.constant 0 : index
    %174 = vector.load %arg10[%c3_137, %c0_138, %c0_139] : memref<4x8x8xf32, #tpu.memory_space<vmem>>, vector<1x8x8xf32>
    %175 = vector.shape_cast %174 : vector<1x8x8xf32> to vector<8x8xf32>
    %176 = vector.broadcast %159 : vector<8x1xf32> to vector<8x8xf32>
    %177 = arith.mulf %176, %175 : vector<8x8xf32>
    %178 = arith.truncf %164 : vector<8x8xf32> to vector<8x8xbf16>
    %cst_140 = arith.constant dense<0.000000e+00> : vector<8x8xf32>
    %179 = tpu.matmul %178, %147, %cst_140 {dimension_numbers = #tpu.dot_dimension_numbers<[1], [0], [0], [1], [0, 0, 1, 1], [], []>} : vector<8x8xbf16>, vector<8x8xbf16>, vector<8x8xf32> -> vector<8x8xf32>
    %180 = arith.addf %177, %179 : vector<8x8xf32>
    %c3_141 = arith.constant 3 : index
    %c0_142 = arith.constant 0 : index
    %c0_143 = arith.constant 0 : index
    %181 = vector.load %arg10[%c3_141, %c0_142, %c0_143] : memref<4x8x8xf32, #tpu.memory_space<vmem>>, vector<1x8x8xf32>
    %182 = vector.shape_cast %181 : vector<1x8x8xf32> to vector<8x8xf32>
    %183 = vector.shape_cast %180 : vector<8x8xf32> to vector<1x8x8xf32>
    tpu.vector_store %arg10[%c3_141, %c0_142, %c0_143], %183 {strides = array<i32>} : memref<4x8x8xf32, #tpu.memory_space<vmem>>, vector<1x8x8xf32>,
    %c3_144 = arith.constant 3 : index
    %c0_145 = arith.constant 0 : index
    %c0_146 = arith.constant 0 : index
    %184 = vector.load %arg8[%c3_144, %c0_145, %c0_146] : memref<4x8x1xf32, #tpu.memory_space<vmem>>, vector<1x8x1xf32>
    %185 = vector.shape_cast %184 : vector<1x8x1xf32> to vector<8x1xf32>
    %186 = vector.shape_cast %157 : vector<8x1xf32> to vector<1x8x1xf32>
    tpu.vector_store %arg8[%c3_144, %c0_145, %c0_146], %186 {strides = array<i32>} : memref<4x8x1xf32, #tpu.memory_space<vmem>>, vector<1x8x1xf32>,
    %c0_i32_147 = arith.constant 0 : i32
    %187 = arith.cmpi eq, %arg2, %c0_i32_147 : i32
    %188 = arith.extui %187 : i1 to i32
    %c0_i32_148 = arith.constant 0 : i32
    %189 = arith.cmpi ne, %188, %c0_i32_148 : i32
    scf.if %189 {
      %c0_149 = arith.constant 0 : index
      %c0_150 = arith.constant 0 : index
      %c0_151 = arith.constant 0 : index
      %190 = vector.load %arg9[%c0_149, %c0_150, %c0_151] : memref<4x8x1xf32, #tpu.memory_space<vmem>>, vector<1x8x1xf32>
      %191 = vector.shape_cast %190 : vector<1x8x1xf32> to vector<8x1xf32>
      %cst_152 = arith.constant 0.000000e+00 : f32
      %192 = vector.broadcast %cst_152 : f32 to vector<8x1xf32>
      %193 = arith.cmpf oeq, %191, %192 : vector<8x1xf32>
      %cst_153 = arith.constant 1.000000e+00 : f32
      %194 = vector.broadcast %cst_153 : f32 to vector<8x1xf32>
      %195 = arith.select %193, %194, %191 : vector<8x1xi1>, vector<8x1xf32>
      %196 = tpu.reciprocal %195 {approx = true} : vector<8x1xf32> -> vector<8x1xf32>
      %c0_154 = arith.constant 0 : index
      %c0_155 = arith.constant 0 : index
      %c0_156 = arith.constant 0 : index
      %197 = vector.load %arg10[%c0_154, %c0_155, %c0_156] : memref<4x8x8xf32, #tpu.memory_space<vmem>>, vector<1x8x8xf32>
      %198 = vector.shape_cast %197 : vector<1x8x8xf32> to vector<8x8xf32>
      %199 = vector.broadcast %196 : vector<8x1xf32> to vector<8x8xf32>
      %200 = arith.mulf %198, %199 : vector<8x8xf32>
      %c0_157 = arith.constant 0 : index
      %c0_158 = arith.constant 0 : index
      %c0_159 = arith.constant 0 : index
      %201 = vector.load %arg7[%c0_157, %c0_158, %c0_159] : memref<1x8x32xf32, #tpu.memory_space<vmem>>, vector<1x8x8xf32>
      %202 = vector.shape_cast %201 : vector<1x8x8xf32> to vector<8x8xf32>
      %203 = vector.shape_cast %200 : vector<8x8xf32> to vector<1x8x8xf32>
      tpu.vector_store %arg7[%c0_157, %c0_158, %c0_159], %203 {strides = array<i32>} : memref<1x8x32xf32, #tpu.memory_space<vmem>>, vector<1x8x8xf32>,
      %c1_160 = arith.constant 1 : index
      %c0_161 = arith.constant 0 : index
      %c0_162 = arith.constant 0 : index
      %204 = vector.load %arg9[%c1_160, %c0_161, %c0_162] : memref<4x8x1xf32, #tpu.memory_space<vmem>>, vector<1x8x1xf32>
      %205 = vector.shape_cast %204 : vector<1x8x1xf32> to vector<8x1xf32>
      %cst_163 = arith.constant 0.000000e+00 : f32
      %206 = vector.broadcast %cst_163 : f32 to vector<8x1xf32>
      %207 = arith.cmpf oeq, %205, %206 : vector<8x1xf32>
      %cst_164 = arith.constant 1.000000e+00 : f32
      %208 = vector.broadcast %cst_164 : f32 to vector<8x1xf32>
      %209 = arith.select %207, %208, %205 : vector<8x1xi1>, vector<8x1xf32>
      %210 = tpu.reciprocal %209 {approx = true} : vector<8x1xf32> -> vector<8x1xf32>
      %c1_165 = arith.constant 1 : index
      %c0_166 = arith.constant 0 : index
      %c0_167 = arith.constant 0 : index
      %211 = vector.load %arg10[%c1_165, %c0_166, %c0_167] : memref<4x8x8xf32, #tpu.memory_space<vmem>>, vector<1x8x8xf32>
      %212 = vector.shape_cast %211 : vector<1x8x8xf32> to vector<8x8xf32>
      %213 = vector.broadcast %210 : vector<8x1xf32> to vector<8x8xf32>
      %214 = arith.mulf %212, %213 : vector<8x8xf32>
      %c0_168 = arith.constant 0 : index
      %c0_169 = arith.constant 0 : index
      %c8 = arith.constant 8 : index
      %215 = vector.load %arg7[%c0_168, %c0_169, %c8] : memref<1x8x32xf32, #tpu.memory_space<vmem>>, vector<1x8x8xf32>
      %216 = vector.shape_cast %215 : vector<1x8x8xf32> to vector<8x8xf32>
      %217 = vector.shape_cast %214 : vector<8x8xf32> to vector<1x8x8xf32>
      tpu.vector_store %arg7[%c0_168, %c0_169, %c8], %217 {strides = array<i32>} : memref<1x8x32xf32, #tpu.memory_space<vmem>>, vector<1x8x8xf32>,
      %c2_170 = arith.constant 2 : index
      %c0_171 = arith.constant 0 : index
      %c0_172 = arith.constant 0 : index
      %218 = vector.load %arg9[%c2_170, %c0_171, %c0_172] : memref<4x8x1xf32, #tpu.memory_space<vmem>>, vector<1x8x1xf32>
      %219 = vector.shape_cast %218 : vector<1x8x1xf32> to vector<8x1xf32>
      %cst_173 = arith.constant 0.000000e+00 : f32
      %220 = vector.broadcast %cst_173 : f32 to vector<8x1xf32>
      %221 = arith.cmpf oeq, %219, %220 : vector<8x1xf32>
      %cst_174 = arith.constant 1.000000e+00 : f32
      %222 = vector.broadcast %cst_174 : f32 to vector<8x1xf32>
      %223 = arith.select %221, %222, %219 : vector<8x1xi1>, vector<8x1xf32>
      %224 = tpu.reciprocal %223 {approx = true} : vector<8x1xf32> -> vector<8x1xf32>
      %c2_175 = arith.constant 2 : index
      %c0_176 = arith.constant 0 : index
      %c0_177 = arith.constant 0 : index
      %225 = vector.load %arg10[%c2_175, %c0_176, %c0_177] : memref<4x8x8xf32, #tpu.memory_space<vmem>>, vector<1x8x8xf32>
      %226 = vector.shape_cast %225 : vector<1x8x8xf32> to vector<8x8xf32>
      %227 = vector.broadcast %224 : vector<8x1xf32> to vector<8x8xf32>
      %228 = arith.mulf %226, %227 : vector<8x8xf32>
      %c0_178 = arith.constant 0 : index
      %c0_179 = arith.constant 0 : index
      %c16 = arith.constant 16 : index
      %229 = vector.load %arg7[%c0_178, %c0_179, %c16] : memref<1x8x32xf32, #tpu.memory_space<vmem>>, vector<1x8x8xf32>
      %230 = vector.shape_cast %229 : vector<1x8x8xf32> to vector<8x8xf32>
      %231 = vector.shape_cast %228 : vector<8x8xf32> to vector<1x8x8xf32>
      tpu.vector_store %arg7[%c0_178, %c0_179, %c16], %231 {strides = array<i32>} : memref<1x8x32xf32, #tpu.memory_space<vmem>>, vector<1x8x8xf32>,
      %c3_180 = arith.constant 3 : index
      %c0_181 = arith.constant 0 : index
      %c0_182 = arith.constant 0 : index
      %232 = vector.load %arg9[%c3_180, %c0_181, %c0_182] : memref<4x8x1xf32, #tpu.memory_space<vmem>>, vector<1x8x1xf32>
      %233 = vector.shape_cast %232 : vector<1x8x1xf32> to vector<8x1xf32>
      %cst_183 = arith.constant 0.000000e+00 : f32
      %234 = vector.broadcast %cst_183 : f32 to vector<8x1xf32>
      %235 = arith.cmpf oeq, %233, %234 : vector<8x1xf32>
      %cst_184 = arith.constant 1.000000e+00 : f32
      %236 = vector.broadcast %cst_184 : f32 to vector<8x1xf32>
      %237 = arith.select %235, %236, %233 : vector<8x1xi1>, vector<8x1xf32>
      %238 = tpu.reciprocal %237 {approx = true} : vector<8x1xf32> -> vector<8x1xf32>
      %c3_185 = arith.constant 3 : index
      %c0_186 = arith.constant 0 : index
      %c0_187 = arith.constant 0 : index
      %239 = vector.load %arg10[%c3_185, %c0_186, %c0_187] : memref<4x8x8xf32, #tpu.memory_space<vmem>>, vector<1x8x8xf32>
      %240 = vector.shape_cast %239 : vector<1x8x8xf32> to vector<8x8xf32>
      %241 = vector.broadcast %238 : vector<8x1xf32> to vector<8x8xf32>
      %242 = arith.mulf %240, %241 : vector<8x8xf32>
      %c0_188 = arith.constant 0 : index
      %c0_189 = arith.constant 0 : index
      %c24 = arith.constant 24 : index
      %243 = vector.load %arg7[%c0_188, %c0_189, %c24] : memref<1x8x32xf32, #tpu.memory_space<vmem>>, vector<1x8x8xf32>
      %244 = vector.shape_cast %243 : vector<1x8x8xf32> to vector<8x8xf32>
      %245 = vector.shape_cast %242 : vector<8x8xf32> to vector<1x8x8xf32>
      tpu.vector_store %arg7[%c0_188, %c0_189, %c24], %245 {strides = array<i32>} : memref<1x8x32xf32, #tpu.memory_space<vmem>>, vector<1x8x8xf32>,
    } else {
    }
    return
  }
  func.func @transform_0(%arg0: i32, %arg1: i32, %arg2: i32) -> (i32, i32, i32) {
    %c0_i32 = arith.constant 0 : i32
    return %arg0, %arg1, %arg2 : i32, i32, i32
  }
  func.func @transform_1(%arg0: i32, %arg1: i32, %arg2: i32) -> (i32, i32, i32, i32) {
    %c0_i32 = arith.constant 0 : i32
    %c0_i32_0 = arith.constant 0 : i32
    %c0_i32_1 = arith.constant 0 : i32
    return %arg1, %arg0, %c0_i32, %c0_i32_0 : i32, i32, i32, i32
  }
  func.func @transform_2(%arg0: i32, %arg1: i32, %arg2: i32) -> (i32, i32, i32, i32) {
    %c0_i32 = arith.constant 0 : i32
    %c0_i32_0 = arith.constant 0 : i32
    %c0_i32_1 = arith.constant 0 : i32
    return %arg2, %arg0, %c0_i32, %c0_i32_0 : i32, i32, i32, i32
  }
  func.func @transform_3(%arg0: i32, %arg1: i32, %arg2: i32) -> (i32, i32, i32, i32) {
    %c0_i32 = arith.constant 0 : i32
    %c0_i32_0 = arith.constant 0 : i32
    %c0_i32_1 = arith.constant 0 : i32
    return %arg2, %arg0, %c0_i32, %c0_i32_0 : i32, i32, i32, i32
  }
  func.func @transform_4(%arg0: i32, %arg1: i32, %arg2: i32) -> (i32, i32, i32) {
    %c0_i32 = arith.constant 0 : i32
    %c0_i32_0 = arith.constant 0 : i32
    return %arg0, %arg1, %c0_i32 : i32, i32, i32
  }
}

module attributes {stable_mosaic.version = 11 : i64} {
  func.func @_linear_kernel(%arg0: i32, %arg1: i32, %arg2: i32, %arg3: memref<16x32xf32, #tpu.memory_space<vmem>>, %arg4: memref<32x32xbf16, #tpu.memory_space<vmem>>, %arg5: memref<1x32xf32, #tpu.memory_space<vmem>>, %arg6: memref<16x32xf32, #tpu.memory_space<vmem>>, %arg7: memref<16x32xf32, #tpu.memory_space<vmem>>) attributes {dimension_semantics = [#tpu.dimension_semantics<parallel>, #tpu.dimension_semantics<parallel>, #tpu.dimension_semantics<arbitrary>], iteration_bounds = array<i64: 1, 1, 1>, scalar_prefetch = 0 : i64, scratch_operands = 1 : i64, tpu.core_type = #tpu.core_type<tc>, window_params = [{transform_indices = @transform_0, window_bounds = array<i64: 16, 32>}, {transform_indices = @transform_1, window_bounds = array<i64: 32, 32>}, {transform_indices = @transform_2, window_bounds = array<i64: 1, 32>}, {transform_indices = @transform_3, window_bounds = array<i64: 16, 32>}]} {
    %c0_i32 = arith.constant 0 : i32
    %0 = arith.cmpi eq, %arg2, %c0_i32 : i32
    %1 = arith.extui %0 : i1 to i32
    %c0_i32_0 = arith.constant 0 : i32
    %2 = arith.cmpi ne, %1, %c0_i32_0 : i32
    scf.if %2 {
      %cst_10 = arith.constant 0.000000e+00 : f32
      %13 = vector.broadcast %cst_10 : f32 to vector<16x32xf32>
      %c0_11 = arith.constant 0 : index
      %c0_12 = arith.constant 0 : index
      %14 = vector.load %arg7[%c0_11, %c0_12] : memref<16x32xf32, #tpu.memory_space<vmem>>, vector<16x32xf32>
      tpu.vector_store %arg7[%c0_11, %c0_12], %13 {strides = array<i32>} : memref<16x32xf32, #tpu.memory_space<vmem>>, vector<16x32xf32>,
    } else {
    }
    %c0 = arith.constant 0 : index
    %c0_1 = arith.constant 0 : index
    %3 = vector.load %arg7[%c0, %c0_1] : memref<16x32xf32, #tpu.memory_space<vmem>>, vector<16x32xf32>
    %c0_2 = arith.constant 0 : index
    %c0_3 = arith.constant 0 : index
    %4 = vector.load %arg3[%c0_2, %c0_3] : memref<16x32xf32, #tpu.memory_space<vmem>>, vector<16x32xf32>
    %5 = arith.truncf %4 : vector<16x32xf32> to vector<16x32xbf16>
    %c0_4 = arith.constant 0 : index
    %c0_5 = arith.constant 0 : index
    %6 = vector.load %arg4[%c0_4, %c0_5] : memref<32x32xbf16, #tpu.memory_space<vmem>>, vector<32x32xbf16>
    %cst = arith.constant dense<0.000000e+00> : vector<16x32xf32>
    %7 = tpu.matmul %5, %6, %cst {dimension_numbers = #tpu.dot_dimension_numbers<[1], [0], [0], [1], [0, 0, 1, 1], [], []>} : vector<16x32xbf16>, vector<32x32xbf16>, vector<16x32xf32> -> vector<16x32xf32>
    %8 = arith.addf %3, %7 : vector<16x32xf32>
    %c0_6 = arith.constant 0 : index
    %c0_7 = arith.constant 0 : index
    %9 = vector.load %arg7[%c0_6, %c0_7] : memref<16x32xf32, #tpu.memory_space<vmem>>, vector<16x32xf32>
    tpu.vector_store %arg7[%c0_6, %c0_7], %8 {strides = array<i32>} : memref<16x32xf32, #tpu.memory_space<vmem>>, vector<16x32xf32>,
    %c0_i32_8 = arith.constant 0 : i32
    %10 = arith.cmpi eq, %arg2, %c0_i32_8 : i32
    %11 = arith.extui %10 : i1 to i32
    %c0_i32_9 = arith.constant 0 : i32
    %12 = arith.cmpi ne, %11, %c0_i32_9 : i32
    scf.if %12 {
      %c0_10 = arith.constant 0 : index
      %c0_11 = arith.constant 0 : index
      %13 = vector.load %arg7[%c0_10, %c0_11] : memref<16x32xf32, #tpu.memory_space<vmem>>, vector<16x32xf32>
      %c0_12 = arith.constant 0 : index
      %c0_13 = arith.constant 0 : index
      %14 = vector.load %arg5[%c0_12, %c0_13] : memref<1x32xf32, #tpu.memory_space<vmem>>, vector<1x32xf32>
      %15 = vector.broadcast %14 : vector<1x32xf32> to vector<16x32xf32>
      %16 = arith.addf %13, %15 : vector<16x32xf32>
      %c0_14 = arith.constant 0 : index
      %c0_15 = arith.constant 0 : index
      %17 = vector.load %arg6[%c0_14, %c0_15] : memref<16x32xf32, #tpu.memory_space<vmem>>, vector<16x32xf32>
      tpu.vector_store %arg6[%c0_14, %c0_15], %16 {strides = array<i32>} : memref<16x32xf32, #tpu.memory_space<vmem>>, vector<16x32xf32>,
    } else {
    }
    return
  }
  func.func @transform_0(%arg0: i32, %arg1: i32, %arg2: i32) -> (i32, i32) {
    %c0_i32 = arith.constant 0 : i32
    return %arg0, %arg2 : i32, i32
  }
  func.func @transform_1(%arg0: i32, %arg1: i32, %arg2: i32) -> (i32, i32) {
    %c0_i32 = arith.constant 0 : i32
    return %arg2, %arg1 : i32, i32
  }
  func.func @transform_2(%arg0: i32, %arg1: i32, %arg2: i32) -> (i32, i32) {
    %c0_i32 = arith.constant 0 : i32
    %c0_i32_0 = arith.constant 0 : i32
    return %c0_i32, %arg1 : i32, i32
  }
  func.func @transform_3(%arg0: i32, %arg1: i32, %arg2: i32) -> (i32, i32) {
    %c0_i32 = arith.constant 0 : i32
    return %arg0, %arg1 : i32, i32
  }
}

module attributes {stable_mosaic.version = 11 : i64} {
  func.func @_linear_kernel(%arg0: i32, %arg1: i32, %arg2: i32, %arg3: memref<16x64xf32, #tpu.memory_space<vmem>>, %arg4: memref<64x32xbf16, #tpu.memory_space<vmem>>, %arg5: memref<1x32xf32, #tpu.memory_space<vmem>>, %arg6: memref<16x32xf32, #tpu.memory_space<vmem>>, %arg7: memref<16x32xf32, #tpu.memory_space<vmem>>) attributes {dimension_semantics = [#tpu.dimension_semantics<parallel>, #tpu.dimension_semantics<parallel>, #tpu.dimension_semantics<arbitrary>], iteration_bounds = array<i64: 1, 1, 1>, scalar_prefetch = 0 : i64, scratch_operands = 1 : i64, tpu.core_type = #tpu.core_type<tc>, window_params = [{transform_indices = @transform_0, window_bounds = array<i64: 16, 64>}, {transform_indices = @transform_1, window_bounds = array<i64: 64, 32>}, {transform_indices = @transform_2, window_bounds = array<i64: 1, 32>}, {transform_indices = @transform_3, window_bounds = array<i64: 16, 32>}]} {
    %c0_i32 = arith.constant 0 : i32
    %0 = arith.cmpi eq, %arg2, %c0_i32 : i32
    %1 = arith.extui %0 : i1 to i32
    %c0_i32_0 = arith.constant 0 : i32
    %2 = arith.cmpi ne, %1, %c0_i32_0 : i32
    scf.if %2 {
      %cst_10 = arith.constant 0.000000e+00 : f32
      %13 = vector.broadcast %cst_10 : f32 to vector<16x32xf32>
      %c0_11 = arith.constant 0 : index
      %c0_12 = arith.constant 0 : index
      %14 = vector.load %arg7[%c0_11, %c0_12] : memref<16x32xf32, #tpu.memory_space<vmem>>, vector<16x32xf32>
      tpu.vector_store %arg7[%c0_11, %c0_12], %13 {strides = array<i32>} : memref<16x32xf32, #tpu.memory_space<vmem>>, vector<16x32xf32>,
    } else {
    }
    %c0 = arith.constant 0 : index
    %c0_1 = arith.constant 0 : index
    %3 = vector.load %arg7[%c0, %c0_1] : memref<16x32xf32, #tpu.memory_space<vmem>>, vector<16x32xf32>
    %c0_2 = arith.constant 0 : index
    %c0_3 = arith.constant 0 : index
    %4 = vector.load %arg3[%c0_2, %c0_3] : memref<16x64xf32, #tpu.memory_space<vmem>>, vector<16x64xf32>
    %5 = arith.truncf %4 : vector<16x64xf32> to vector<16x64xbf16>
    %c0_4 = arith.constant 0 : index
    %c0_5 = arith.constant 0 : index
    %6 = vector.load %arg4[%c0_4, %c0_5] : memref<64x32xbf16, #tpu.memory_space<vmem>>, vector<64x32xbf16>
    %cst = arith.constant dense<0.000000e+00> : vector<16x32xf32>
    %7 = tpu.matmul %5, %6, %cst {dimension_numbers = #tpu.dot_dimension_numbers<[1], [0], [0], [1], [0, 0, 1, 1], [], []>} : vector<16x64xbf16>, vector<64x32xbf16>, vector<16x32xf32> -> vector<16x32xf32>
    %8 = arith.addf %3, %7 : vector<16x32xf32>
    %c0_6 = arith.constant 0 : index
    %c0_7 = arith.constant 0 : index
    %9 = vector.load %arg7[%c0_6, %c0_7] : memref<16x32xf32, #tpu.memory_space<vmem>>, vector<16x32xf32>
    tpu.vector_store %arg7[%c0_6, %c0_7], %8 {strides = array<i32>} : memref<16x32xf32, #tpu.memory_space<vmem>>, vector<16x32xf32>,
    %c0_i32_8 = arith.constant 0 : i32
    %10 = arith.cmpi eq, %arg2, %c0_i32_8 : i32
    %11 = arith.extui %10 : i1 to i32
    %c0_i32_9 = arith.constant 0 : i32
    %12 = arith.cmpi ne, %11, %c0_i32_9 : i32
    scf.if %12 {
      %c0_10 = arith.constant 0 : index
      %c0_11 = arith.constant 0 : index
      %13 = vector.load %arg7[%c0_10, %c0_11] : memref<16x32xf32, #tpu.memory_space<vmem>>, vector<16x32xf32>
      %c0_12 = arith.constant 0 : index
      %c0_13 = arith.constant 0 : index
      %14 = vector.load %arg5[%c0_12, %c0_13] : memref<1x32xf32, #tpu.memory_space<vmem>>, vector<1x32xf32>
      %15 = vector.broadcast %14 : vector<1x32xf32> to vector<16x32xf32>
      %16 = arith.addf %13, %15 : vector<16x32xf32>
      %c0_14 = arith.constant 0 : index
      %c0_15 = arith.constant 0 : index
      %17 = vector.load %arg6[%c0_14, %c0_15] : memref<16x32xf32, #tpu.memory_space<vmem>>, vector<16x32xf32>
      tpu.vector_store %arg6[%c0_14, %c0_15], %16 {strides = array<i32>} : memref<16x32xf32, #tpu.memory_space<vmem>>, vector<16x32xf32>,
    } else {
    }
    return
  }
  func.func @transform_0(%arg0: i32, %arg1: i32, %arg2: i32) -> (i32, i32) {
    %c0_i32 = arith.constant 0 : i32
    return %arg0, %arg2 : i32, i32
  }
  func.func @transform_1(%arg0: i32, %arg1: i32, %arg2: i32) -> (i32, i32) {
    %c0_i32 = arith.constant 0 : i32
    return %arg2, %arg1 : i32, i32
  }
  func.func @transform_2(%arg0: i32, %arg1: i32, %arg2: i32) -> (i32, i32) {
    %c0_i32 = arith.constant 0 : i32
    %c0_i32_0 = arith.constant 0 : i32
    return %c0_i32, %arg1 : i32, i32
  }
  func.func @transform_3(%arg0: i32, %arg1: i32, %arg2: i32) -> (i32, i32) {
    %c0_i32 = arith.constant 0 : i32
    return %arg0, %arg1 : i32, i32
  }
}

module attributes {stable_mosaic.version = 11 : i64} {
  func.func @_linear_kernel(%arg0: i32, %arg1: i32, %arg2: i32, %arg3: memref<16x64xf32, #tpu.memory_space<vmem>>, %arg4: memref<64x32xbf16, #tpu.memory_space<vmem>>, %arg5: memref<1x32xf32, #tpu.memory_space<vmem>>, %arg6: memref<16x32xf32, #tpu.memory_space<vmem>>, %arg7: memref<16x32xf32, #tpu.memory_space<vmem>>) attributes {dimension_semantics = [#tpu.dimension_semantics<parallel>, #tpu.dimension_semantics<parallel>, #tpu.dimension_semantics<arbitrary>], iteration_bounds = array<i64: 1, 1, 1>, scalar_prefetch = 0 : i64, scratch_operands = 1 : i64, tpu.core_type = #tpu.core_type<tc>, window_params = [{transform_indices = @transform_0, window_bounds = array<i64: 16, 64>}, {transform_indices = @transform_1, window_bounds = array<i64: 64, 32>}, {transform_indices = @transform_2, window_bounds = array<i64: 1, 32>}, {transform_indices = @transform_3, window_bounds = array<i64: 16, 32>}]} {
    %c0_i32 = arith.constant 0 : i32
    %0 = arith.cmpi eq, %arg2, %c0_i32 : i32
    %1 = arith.extui %0 : i1 to i32
    %c0_i32_0 = arith.constant 0 : i32
    %2 = arith.cmpi ne, %1, %c0_i32_0 : i32
    scf.if %2 {
      %cst_10 = arith.constant 0.000000e+00 : f32
      %13 = vector.broadcast %cst_10 : f32 to vector<16x32xf32>
      %c0_11 = arith.constant 0 : index
      %c0_12 = arith.constant 0 : index
      %14 = vector.load %arg7[%c0_11, %c0_12] : memref<16x32xf32, #tpu.memory_space<vmem>>, vector<16x32xf32>
      tpu.vector_store %arg7[%c0_11, %c0_12], %13 {strides = array<i32>} : memref<16x32xf32, #tpu.memory_space<vmem>>, vector<16x32xf32>,
    } else {
    }
    %c0 = arith.constant 0 : index
    %c0_1 = arith.constant 0 : index
    %3 = vector.load %arg7[%c0, %c0_1] : memref<16x32xf32, #tpu.memory_space<vmem>>, vector<16x32xf32>
    %c0_2 = arith.constant 0 : index
    %c0_3 = arith.constant 0 : index
    %4 = vector.load %arg3[%c0_2, %c0_3] : memref<16x64xf32, #tpu.memory_space<vmem>>, vector<16x64xf32>
    %5 = arith.truncf %4 : vector<16x64xf32> to vector<16x64xbf16>
    %c0_4 = arith.constant 0 : index
    %c0_5 = arith.constant 0 : index
    %6 = vector.load %arg4[%c0_4, %c0_5] : memref<64x32xbf16, #tpu.memory_space<vmem>>, vector<64x32xbf16>
    %cst = arith.constant dense<0.000000e+00> : vector<16x32xf32>
    %7 = tpu.matmul %5, %6, %cst {dimension_numbers = #tpu.dot_dimension_numbers<[1], [0], [0], [1], [0, 0, 1, 1], [], []>} : vector<16x64xbf16>, vector<64x32xbf16>, vector<16x32xf32> -> vector<16x32xf32>
    %8 = arith.addf %3, %7 : vector<16x32xf32>
    %c0_6 = arith.constant 0 : index
    %c0_7 = arith.constant 0 : index
    %9 = vector.load %arg7[%c0_6, %c0_7] : memref<16x32xf32, #tpu.memory_space<vmem>>, vector<16x32xf32>
    tpu.vector_store %arg7[%c0_6, %c0_7], %8 {strides = array<i32>} : memref<16x32xf32, #tpu.memory_space<vmem>>, vector<16x32xf32>,
    %c0_i32_8 = arith.constant 0 : i32
    %10 = arith.cmpi eq, %arg2, %c0_i32_8 : i32
    %11 = arith.extui %10 : i1 to i32
    %c0_i32_9 = arith.constant 0 : i32
    %12 = arith.cmpi ne, %11, %c0_i32_9 : i32
    scf.if %12 {
      %c0_10 = arith.constant 0 : index
      %c0_11 = arith.constant 0 : index
      %13 = vector.load %arg7[%c0_10, %c0_11] : memref<16x32xf32, #tpu.memory_space<vmem>>, vector<16x32xf32>
      %c0_12 = arith.constant 0 : index
      %c0_13 = arith.constant 0 : index
      %14 = vector.load %arg5[%c0_12, %c0_13] : memref<1x32xf32, #tpu.memory_space<vmem>>, vector<1x32xf32>
      %15 = vector.broadcast %14 : vector<1x32xf32> to vector<16x32xf32>
      %16 = arith.addf %13, %15 : vector<16x32xf32>
      %c0_14 = arith.constant 0 : index
      %c0_15 = arith.constant 0 : index
      %17 = vector.load %arg6[%c0_14, %c0_15] : memref<16x32xf32, #tpu.memory_space<vmem>>, vector<16x32xf32>
      tpu.vector_store %arg6[%c0_14, %c0_15], %16 {strides = array<i32>} : memref<16x32xf32, #tpu.memory_space<vmem>>, vector<16x32xf32>,
    } else {
    }
    return
  }
  func.func @transform_0(%arg0: i32, %arg1: i32, %arg2: i32) -> (i32, i32) {
    %c0_i32 = arith.constant 0 : i32
    return %arg0, %arg2 : i32, i32
  }
  func.func @transform_1(%arg0: i32, %arg1: i32, %arg2: i32) -> (i32, i32) {
    %c0_i32 = arith.constant 0 : i32
    return %arg2, %arg1 : i32, i32
  }
  func.func @transform_2(%arg0: i32, %arg1: i32, %arg2: i32) -> (i32, i32) {
    %c0_i32 = arith.constant 0 : i32
    %c0_i32_0 = arith.constant 0 : i32
    return %c0_i32, %arg1 : i32, i32
  }
  func.func @transform_3(%arg0: i32, %arg1: i32, %arg2: i32) -> (i32, i32) {
    %c0_i32 = arith.constant 0 : i32
    return %arg0, %arg1 : i32, i32
  }
}

</mosaic_0001>

<llo_original>
// kernel: transformer_forward.10
$region0: #{transformer_forward.10}
  #allocation0 [shape = 'u32[]', space=smem, size = 0x4, offset = 0x4, fixed_abs, tag = 'smem constant byte address 0x4 - core index']
  #allocation1 [shape = 'u32[144,128]{1,0:T(1,128)}', space=vmem, size = 0x12000, scoped, tag = 'internal scratch']
  #allocation2 [shape = 'f32[16,96]{1,0:T(8,128)}', space=vmem, size = 0x2000, scoped, tag = 'scratch operand']
  %s0 = inlined_call_operand.vmem [shape: f32[16,32], index: 0, kind: input, shape index: {}]
  %s1 = inlined_call_operand.vmem [shape: bf16[32,96], index: 1, kind: input, shape index: {}]
  %s2 = inlined_call_operand.vmem [shape: f32[1,96], index: 2, kind: input, shape index: {}]
  %s3 = inlined_call_operand.vmem [shape: f32[16,96], index: 3, kind: output, shape index: {}]
  %s4 = sld [smem:[#allocation0]]
  $region30: #{transformer_forward.10} parent=0
    _
  %s6 = ssub.s32 1, %s4
  %s7 = scalar_select 0, %s6, %s4
  // Predicated region
  $region2: #{transformer_forward.10} parent=0 // pred_check
    _
  $region3: #{transformer_forward.10} parent=0 // pred_check_branch
    %9 = sbr.rel (0) target = $region5
  $region4: #{transformer_forward.10} parent=0 // pred_region
    _
  $region5: #{transformer_forward.10} parent=0 // pred_fallthru
    _
  // Predicated region
  $region6: #{transformer_forward.10} parent=0 // pred_check
    _
  $region7: #{transformer_forward.10} parent=0 // pred_check_branch
    %11 = sbr.rel (0) target = $region9
  $region8: #{transformer_forward.10} parent=0 // pred_region
    _
  $region9: #{transformer_forward.10} parent=0 // pred_fallthru
    _
  // Predicated region
  $region10: #{transformer_forward.10} parent=0 // pred_check
    _
  $region11: #{transformer_forward.10} parent=0 // pred_check_branch
    %13 = sbr.rel (0) target = $region13
  $region12: #{transformer_forward.10} parent=0 // pred_region
    _
  $region13: #{transformer_forward.10} parent=0 // pred_fallthru
    _
  %p15 = scmp.eq.s32.totalorder 0, 0
  // Predicated region
  $region14: #{transformer_forward.10} parent=0 // pred_check
    %p16 = pneg %p15
  $region15: #{transformer_forward.10} parent=0 // pred_check_branch
    %18 = sbr.rel (%p16) target = $region17
  $region16: #{transformer_forward.10} parent=0 // pred_region
    %vm19 = vcmask 785408
    %20 = vst.msk [vmem:[#allocation2] sm:$0xff] %vm19, 0.0
    %21 = vst.msk [vmem:[#allocation2 + $0x8] sm:$0xff] %vm19, 0.0
  $region17: #{transformer_forward.10} parent=0 // pred_fallthru
    _
  %v22 = vld [vmem:[#allocation2] sm:$0xff]
  %v23 = vld [vmem:[#allocation2 + $0x8] sm:$0xff]
  %v24 = vld [vmem:[%s0] sm:$0xff]
  %v25 = vld [vmem:[%s0 + $0x8] sm:$0xff]
  %v26 = vpack.c.bf16 %v25, %v24
  %v27 = vld [vmem:[%s1] sm:$0xf]
  %v28 = vld [vmem:[%s1 + $0x4] sm:$0xf]
  %v29 = vld [vmem:[%s1 + $0x8] sm:$0xf]
  %v30 = vld [vmem:[%s1 + $0xc] sm:$0xf]
  %v35 = vunpack.c.l.b16 %v27
  %v36 = vunpack.c.l.b16 %v28
  %v37 = vunpack.c.l.b16 %v29
  %v38 = vunpack.c.l.b16 %v30
  %v39 = vpack.c.b16 %v36, %v35
  %v40 = vpack.c.b16 %v38, %v37
  %vm43 = vcmask 261120
  %v45 = vsel %vm43, %v26, 0
  %47 = vmatprep.subr.bf16.mxu0 0
  %48 = vmatpush1.bf16.msra.mxu0 %v39
  %49 = vmatprep.subr.bf16.mxu0 0
  %50 = vmatpush1.bf16.msra.mxu0 %v40
  %51 = vmatprep.subr.bf16.mxu0 0
  %52 = vmatpush1.bf16.msra.mxu0 0
  %53 = vmatprep.subr.bf16.mxu0 0
  %54 = vmatpush1.bf16.msra.mxu0 0
  %55 = vmatprep.subr.bf16.mxu0 0
  %56 = vmatpush1.bf16.msra.mxu0 0
  %57 = vmatprep.subr.bf16.mxu0 0
  %58 = vmatpush1.bf16.msra.mxu0 0
  %59 = vmatprep.subr.bf16.mxu0 0
  %60 = vmatpush1.bf16.msra.mxu0 0
  %61 = vmatprep.subr.bf16.mxu0 0
  %62 = vmatpush1.bf16.msra.mxu0 0
  %63 = vmatprep.subr.bf16.mxu0 0
  %64 = vmatpush1.bf16.msra.mxu0 0
  %65 = vmatprep.subr.bf16.mxu0 0
  %66 = vmatpush1.bf16.msra.mxu0 0
  %67 = vmatprep.subr.bf16.mxu0 0
  %68 = vmatpush1.bf16.msra.mxu0 0
  %69 = vmatprep.subr.bf16.mxu0 0
  %70 = vmatpush1.bf16.msra.mxu0 0
  %71 = vmatprep.subr.bf16.mxu0 0
  %72 = vmatpush1.bf16.msra.mxu0 0
  %73 = vmatprep.subr.bf16.mxu0 0
  %74 = vmatpush1.bf16.msra.mxu0 0
  %75 = vmatprep.subr.bf16.mxu0 0
  %76 = vmatpush1.bf16.msra.mxu0 0
  %77 = vmatprep.subr.bf16.mxu0 0
  %78 = vmatpush1.bf16.msra.mxu0 0
  %79 = vmatprep.mubr.bf16.mxu0 0
  %80 = vmatmul.mubr.bf16.gmra.mrb[0].mxu0 %v45
  %v81 = vpop.f32.mrb[0].mxu0
  %v82 = vadd.f32 0.0, %v81
  %v83 = vpop.f32.mrb[0].mxu0
  %v84 = vpop.f32.mrb[0].mxu0
  %v85 = vadd.f32 0.0, %v84
  %v86 = vpop.f32.mrb[0].mxu0
  %87 = vdwg.mxu0
  %v88 = vadd.f32 %v22, %v82
  %v89 = vadd.f32 %v23, %v85
  %vm90 = vcmask 785408
  %91 = vst.msk [vmem:[#allocation2] sm:$0xff] %vm90, %v88
  %92 = vst.msk [vmem:[#allocation2 + $0x8] sm:$0xff] %vm90, %v89
  // Predicated region
  $region18: #{transformer_forward.10} parent=0 // pred_check
    %p93 = pneg %p15
  $region19: #{transformer_forward.10} parent=0 // pred_check_branch
    %95 = sbr.rel (%p93) target = $region21
  $region20: #{transformer_forward.10} parent=0 // pred_region
    %v96 = vld [vmem:[#allocation2] sm:$0xff]
    %v97 = vld [vmem:[#allocation2 + $0x8] sm:$0xff]
    %v98 = vld [vmem:[%s2] sm:$0x1]
    %v100 = vlaneseq
    %v101 = vshrl.u32 %v100, 7
    %v102 = vsub.s32 0, %v101
    %v103 = vrot.slane %v98, %v102
    %v105 = vadd.f32 %v96, %v103
    %v106 = vadd.f32 %v97, %v103
    %107 = vst.msk [vmem:[%s3] sm:$0xff] %vm90, %v105
    %108 = vst.msk [vmem:[%s3 + $0x8] sm:$0xff] %vm90, %v106
  $region21: #{transformer_forward.10} parent=0 // pred_fallthru
    _
  // Predicated region
  $region22: #{transformer_forward.10} parent=0 // pred_check
    _
  $region23: #{transformer_forward.10} parent=0 // pred_check_branch
    %110 = sbr.rel (0) target = $region25
  $region24: #{transformer_forward.10} parent=0 // pred_region
    _
  $region25: #{transformer_forward.10} parent=0 // pred_fallthru
    _
  // Predicated region
  $region26: #{transformer_forward.10} parent=0 // pred_check
    _
  $region27: #{transformer_forward.10} parent=0 // pred_check_branch
    %112 = sbr.rel (0) target = $region29
  $region28: #{transformer_forward.10} parent=0 // pred_region
    _
  $region29: #{transformer_forward.10} parent=0 // pred_fallthru
    _

// kernel: transformer_forward.13
$region0: #{transformer_forward.13}
  #allocation0 [shape = 'u32[]', space=smem, size = 0x4, offset = 0x4, fixed_abs, tag = 'smem constant byte address 0x4 - core index']
  #allocation1 [shape = 'u32[144,128]{1,0:T(1,128)}', space=vmem, size = 0x12000, scoped, tag = 'internal scratch']
  #allocation2 [shape = 'f32[16,64]{1,0:T(8,128)}', space=vmem, size = 0x2000, scoped, tag = 'scratch operand']
  %s0 = inlined_call_operand.vmem [shape: f32[16,32], index: 0, kind: input, shape index: {}]
  %s1 = inlined_call_operand.vmem [shape: bf16[32,64], index: 1, kind: input, shape index: {}]
  %s2 = inlined_call_operand.vmem [shape: f32[1,64], index: 2, kind: input, shape index: {}]
  %s3 = inlined_call_operand.vmem [shape: f32[16,64], index: 3, kind: output, shape index: {}]
  %s4 = sld [smem:[#allocation0]]
  $region30: #{transformer_forward.13} parent=0
    _
  %s6 = ssub.s32 1, %s4
  %s7 = scalar_select 0, %s6, %s4
  // Predicated region
  $region2: #{transformer_forward.13} parent=0 // pred_check
    _
  $region3: #{transformer_forward.13} parent=0 // pred_check_branch
    %9 = sbr.rel (0) target = $region5
  $region4: #{transformer_forward.13} parent=0 // pred_region
    _
  $region5: #{transformer_forward.13} parent=0 // pred_fallthru
    _
  // Predicated region
  $region6: #{transformer_forward.13} parent=0 // pred_check
    _
  $region7: #{transformer_forward.13} parent=0 // pred_check_branch
    %11 = sbr.rel (0) target = $region9
  $region8: #{transformer_forward.13} parent=0 // pred_region
    _
  $region9: #{transformer_forward.13} parent=0 // pred_fallthru
    _
  // Predicated region
  $region10: #{transformer_forward.13} parent=0 // pred_check
    _
  $region11: #{transformer_forward.13} parent=0 // pred_check_branch
    %13 = sbr.rel (0) target = $region13
  $region12: #{transformer_forward.13} parent=0 // pred_region
    _
  $region13: #{transformer_forward.13} parent=0 // pred_fallthru
    _
  %p15 = scmp.eq.s32.totalorder 0, 0
  // Predicated region
  $region14: #{transformer_forward.13} parent=0 // pred_check
    %p16 = pneg %p15
  $region15: #{transformer_forward.13} parent=0 // pred_check_branch
    %18 = sbr.rel (%p16) target = $region17
  $region16: #{transformer_forward.13} parent=0 // pred_region
    %vm19 = vcmask 523264
    %20 = vst.msk [vmem:[#allocation2] sm:$0xff] %vm19, 0.0
    %21 = vst.msk [vmem:[#allocation2 + $0x8] sm:$0xff] %vm19, 0.0
  $region17: #{transformer_forward.13} parent=0 // pred_fallthru
    _
  %v22 = vld [vmem:[#allocation2] sm:$0xff]
  %v23 = vld [vmem:[#allocation2 + $0x8] sm:$0xff]
  %v24 = vld [vmem:[%s0] sm:$0xff]
  %v25 = vld [vmem:[%s0 + $0x8] sm:$0xff]
  %v26 = vpack.c.bf16 %v25, %v24
  %v27 = vld [vmem:[%s1] sm:$0xf]
  %v28 = vld [vmem:[%s1 + $0x4] sm:$0xf]
  %v29 = vld [vmem:[%s1 + $0x8] sm:$0xf]
  %v30 = vld [vmem:[%s1 + $0xc] sm:$0xf]
  %v35 = vunpack.c.l.b16 %v27
  %v36 = vunpack.c.l.b16 %v28
  %v37 = vunpack.c.l.b16 %v29
  %v38 = vunpack.c.l.b16 %v30
  %v39 = vpack.c.b16 %v36, %v35
  %v40 = vpack.c.b16 %v38, %v37
  %vm43 = vcmask 261120
  %v45 = vsel %vm43, %v26, 0
  %47 = vmatprep.subr.bf16.mxu0 0
  %48 = vmatpush1.bf16.msra.mxu0 %v39
  %49 = vmatprep.subr.bf16.mxu0 0
  %50 = vmatpush1.bf16.msra.mxu0 %v40
  %51 = vmatprep.subr.bf16.mxu0 0
  %52 = vmatpush1.bf16.msra.mxu0 0
  %53 = vmatprep.subr.bf16.mxu0 0
  %54 = vmatpush1.bf16.msra.mxu0 0
  %55 = vmatprep.subr.bf16.mxu0 0
  %56 = vmatpush1.bf16.msra.mxu0 0
  %57 = vmatprep.subr.bf16.mxu0 0
  %58 = vmatpush1.bf16.msra.mxu0 0
  %59 = vmatprep.subr.bf16.mxu0 0
  %60 = vmatpush1.bf16.msra.mxu0 0
  %61 = vmatprep.subr.bf16.mxu0 0
  %62 = vmatpush1.bf16.msra.mxu0 0
  %63 = vmatprep.subr.bf16.mxu0 0
  %64 = vmatpush1.bf16.msra.mxu0 0
  %65 = vmatprep.subr.bf16.mxu0 0
  %66 = vmatpush1.bf16.msra.mxu0 0
  %67 = vmatprep.subr.bf16.mxu0 0
  %68 = vmatpush1.bf16.msra.mxu0 0
  %69 = vmatprep.subr.bf16.mxu0 0
  %70 = vmatpush1.bf16.msra.mxu0 0
  %71 = vmatprep.subr.bf16.mxu0 0
  %72 = vmatpush1.bf16.msra.mxu0 0
  %73 = vmatprep.subr.bf16.mxu0 0
  %74 = vmatpush1.bf16.msra.mxu0 0
  %75 = vmatprep.subr.bf16.mxu0 0
  %76 = vmatpush1.bf16.msra.mxu0 0
  %77 = vmatprep.subr.bf16.mxu0 0
  %78 = vmatpush1.bf16.msra.mxu0 0
  %79 = vmatprep.mubr.bf16.mxu0 0
  %80 = vmatmul.mubr.bf16.gmra.mrb[0].mxu0 %v45
  %v81 = vpop.f32.mrb[0].mxu0
  %v82 = vadd.f32 0.0, %v81
  %v83 = vpop.f32.mrb[0].mxu0
  %v84 = vpop.f32.mrb[0].mxu0
  %v85 = vadd.f32 0.0, %v84
  %v86 = vpop.f32.mrb[0].mxu0
  %87 = vdwg.mxu0
  %v88 = vadd.f32 %v22, %v82
  %v89 = vadd.f32 %v23, %v85
  %vm90 = vcmask 523264
  %91 = vst.msk [vmem:[#allocation2] sm:$0xff] %vm90, %v88
  %92 = vst.msk [vmem:[#allocation2 + $0x8] sm:$0xff] %vm90, %v89
  // Predicated region
  $region18: #{transformer_forward.13} parent=0 // pred_check
    %p93 = pneg %p15
  $region19: #{transformer_forward.13} parent=0 // pred_check_branch
    %95 = sbr.rel (%p93) target = $region21
  $region20: #{transformer_forward.13} parent=0 // pred_region
    %v96 = vld [vmem:[#allocation2] sm:$0xff]
    %v97 = vld [vmem:[#allocation2 + $0x8] sm:$0xff]
    %v98 = vld [vmem:[%s2] sm:$0x1]
    %v100 = vlaneseq
    %v101 = vshrl.u32 %v100, 7
    %v102 = vsub.s32 0, %v101
    %v103 = vrot.slane %v98, %v102
    %v105 = vadd.f32 %v96, %v103
    %v106 = vadd.f32 %v97, %v103
    %107 = vst.msk [vmem:[%s3] sm:$0xff] %vm90, %v105
    %108 = vst.msk [vmem:[%s3 + $0x8] sm:$0xff] %vm90, %v106
  $region21: #{transformer_forward.13} parent=0 // pred_fallthru
    _
  // Predicated region
  $region22: #{transformer_forward.13} parent=0 // pred_check
    _
  $region23: #{transformer_forward.13} parent=0 // pred_check_branch
    %110 = sbr.rel (0) target = $region25
  $region24: #{transformer_forward.13} parent=0 // pred_region
    _
  $region25: #{transformer_forward.13} parent=0 // pred_fallthru
    _
  // Predicated region
  $region26: #{transformer_forward.13} parent=0 // pred_check
    _
  $region27: #{transformer_forward.13} parent=0 // pred_check_branch
    %112 = sbr.rel (0) target = $region29
  $region28: #{transformer_forward.13} parent=0 // pred_region
    _
  $region29: #{transformer_forward.13} parent=0 // pred_fallthru
    _

// kernel: transformer_forward.12
$region0: #{transformer_forward.12}
  #allocation0 [shape = 'u32[]', space=smem, size = 0x4, offset = 0x4, fixed_abs, tag = 'smem constant byte address 0x4 - core index']
  #allocation1 [shape = 'u32[144,128]{1,0:T(1,128)}', space=vmem, size = 0x12000, scoped, tag = 'internal scratch']
  #allocation2 [shape = 'f32[16,32]{1,0:T(8,128)}', space=vmem, size = 0x2000, scoped, tag = 'scratch operand']
  %s0 = inlined_call_operand.vmem [shape: f32[16,32], index: 0, kind: input, shape index: {}]
  %s1 = inlined_call_operand.vmem [shape: bf16[32,32], index: 1, kind: input, shape index: {}]
  %s2 = inlined_call_operand.vmem [shape: f32[1,32], index: 2, kind: input, shape index: {}]
  %s3 = inlined_call_operand.vmem [shape: f32[16,32], index: 3, kind: output, shape index: {}]
  %s4 = sld [smem:[#allocation0]]
  $region30: #{transformer_forward.12} parent=0
    _
  %s6 = ssub.s32 1, %s4
  %s7 = scalar_select 0, %s6, %s4
  // Predicated region
  $region2: #{transformer_forward.12} parent=0 // pred_check
    _
  $region3: #{transformer_forward.12} parent=0 // pred_check_branch
    %9 = sbr.rel (0) target = $region5
  $region4: #{transformer_forward.12} parent=0 // pred_region
    _
  $region5: #{transformer_forward.12} parent=0 // pred_fallthru
    _
  // Predicated region
  $region6: #{transformer_forward.12} parent=0 // pred_check
    _
  $region7: #{transformer_forward.12} parent=0 // pred_check_branch
    %11 = sbr.rel (0) target = $region9
  $region8: #{transformer_forward.12} parent=0 // pred_region
    _
  $region9: #{transformer_forward.12} parent=0 // pred_fallthru
    _
  // Predicated region
  $region10: #{transformer_forward.12} parent=0 // pred_check
    _
  $region11: #{transformer_forward.12} parent=0 // pred_check_branch
    %13 = sbr.rel (0) target = $region13
  $region12: #{transformer_forward.12} parent=0 // pred_region
    _
  $region13: #{transformer_forward.12} parent=0 // pred_fallthru
    _
  %p15 = scmp.eq.s32.totalorder 0, 0
  // Predicated region
  $region14: #{transformer_forward.12} parent=0 // pred_check
    %p16 = pneg %p15
  $region15: #{transformer_forward.12} parent=0 // pred_check_branch
    %18 = sbr.rel (%p16) target = $region17
  $region16: #{transformer_forward.12} parent=0 // pred_region
    %vm19 = vcmask 261120
    %20 = vst.msk [vmem:[#allocation2] sm:$0xff] %vm19, 0.0
    %21 = vst.msk [vmem:[#allocation2 + $0x8] sm:$0xff] %vm19, 0.0
  $region17: #{transformer_forward.12} parent=0 // pred_fallthru
    _
  %v22 = vld [vmem:[#allocation2] sm:$0xff]
  %v23 = vld [vmem:[#allocation2 + $0x8] sm:$0xff]
  %v24 = vld [vmem:[%s0] sm:$0xff]
  %v25 = vld [vmem:[%s0 + $0x8] sm:$0xff]
  %v26 = vpack.c.bf16 %v25, %v24
  %v27 = vld [vmem:[%s1] sm:$0xf]
  %v28 = vld [vmem:[%s1 + $0x4] sm:$0xf]
  %v29 = vld [vmem:[%s1 + $0x8] sm:$0xf]
  %v30 = vld [vmem:[%s1 + $0xc] sm:$0xf]
  %v35 = vunpack.c.l.b16 %v27
  %v36 = vunpack.c.l.b16 %v28
  %v37 = vunpack.c.l.b16 %v29
  %v38 = vunpack.c.l.b16 %v30
  %v39 = vpack.c.b16 %v36, %v35
  %v40 = vpack.c.b16 %v38, %v37
  %vm43 = vcmask 261120
  %v45 = vsel %vm43, %v26, 0
  %47 = vmatprep.subr.bf16.mxu0 0
  %48 = vmatpush1.bf16.msra.mxu0 %v39
  %49 = vmatprep.subr.bf16.mxu0 0
  %50 = vmatpush1.bf16.msra.mxu0 %v40
  %51 = vmatprep.subr.bf16.mxu0 0
  %52 = vmatpush1.bf16.msra.mxu0 0
  %53 = vmatprep.subr.bf16.mxu0 0
  %54 = vmatpush1.bf16.msra.mxu0 0
  %55 = vmatprep.subr.bf16.mxu0 0
  %56 = vmatpush1.bf16.msra.mxu0 0
  %57 = vmatprep.subr.bf16.mxu0 0
  %58 = vmatpush1.bf16.msra.mxu0 0
  %59 = vmatprep.subr.bf16.mxu0 0
  %60 = vmatpush1.bf16.msra.mxu0 0
  %61 = vmatprep.subr.bf16.mxu0 0
  %62 = vmatpush1.bf16.msra.mxu0 0
  %63 = vmatprep.subr.bf16.mxu0 0
  %64 = vmatpush1.bf16.msra.mxu0 0
  %65 = vmatprep.subr.bf16.mxu0 0
  %66 = vmatpush1.bf16.msra.mxu0 0
  %67 = vmatprep.subr.bf16.mxu0 0
  %68 = vmatpush1.bf16.msra.mxu0 0
  %69 = vmatprep.subr.bf16.mxu0 0
  %70 = vmatpush1.bf16.msra.mxu0 0
  %71 = vmatprep.subr.bf16.mxu0 0
  %72 = vmatpush1.bf16.msra.mxu0 0
  %73 = vmatprep.subr.bf16.mxu0 0
  %74 = vmatpush1.bf16.msra.mxu0 0
  %75 = vmatprep.subr.bf16.mxu0 0
  %76 = vmatpush1.bf16.msra.mxu0 0
  %77 = vmatprep.subr.bf16.mxu0 0
  %78 = vmatpush1.bf16.msra.mxu0 0
  %79 = vmatprep.mubr.bf16.mxu0 0
  %80 = vmatmul.mubr.bf16.gmra.mrb[0].mxu0 %v45
  %v81 = vpop.f32.mrb[0].mxu0
  %v82 = vadd.f32 0.0, %v81
  %v83 = vpop.f32.mrb[0].mxu0
  %v84 = vpop.f32.mrb[0].mxu0
  %v85 = vadd.f32 0.0, %v84
  %v86 = vpop.f32.mrb[0].mxu0
  %87 = vdwg.mxu0
  %v88 = vadd.f32 %v22, %v82
  %v89 = vadd.f32 %v23, %v85
  %90 = vst.msk [vmem:[#allocation2] sm:$0xff] %vm43, %v88
  %91 = vst.msk [vmem:[#allocation2 + $0x8] sm:$0xff] %vm43, %v89
  // Predicated region
  $region18: #{transformer_forward.12} parent=0 // pred_check
    %p92 = pneg %p15
  $region19: #{transformer_forward.12} parent=0 // pred_check_branch
    %94 = sbr.rel (%p92) target = $region21
  $region20: #{transformer_forward.12} parent=0 // pred_region
    %v95 = vld [vmem:[#allocation2] sm:$0xff]
    %v96 = vld [vmem:[#allocation2 + $0x8] sm:$0xff]
    %v97 = vld [vmem:[%s2] sm:$0x1]
    %v99 = vlaneseq
    %v100 = vshrl.u32 %v99, 7
    %v101 = vsub.s32 0, %v100
    %v102 = vrot.slane %v97, %v101
    %v104 = vadd.f32 %v95, %v102
    %v105 = vadd.f32 %v96, %v102
    %106 = vst.msk [vmem:[%s3] sm:$0xff] %vm43, %v104
    %107 = vst.msk [vmem:[%s3 + $0x8] sm:$0xff] %vm43, %v105
  $region21: #{transformer_forward.12} parent=0 // pred_fallthru
    _
  // Predicated region
  $region22: #{transformer_forward.12} parent=0 // pred_check
    _
  $region23: #{transformer_forward.12} parent=0 // pred_check_branch
    %109 = sbr.rel (0) target = $region25
  $region24: #{transformer_forward.12} parent=0 // pred_region
    _
  $region25: #{transformer_forward.12} parent=0 // pred_fallthru
    _
  // Predicated region
  $region26: #{transformer_forward.12} parent=0 // pred_check
    _
  $region27: #{transformer_forward.12} parent=0 // pred_check_branch
    %111 = sbr.rel (0) target = $region29
  $region28: #{transformer_forward.12} parent=0 // pred_region
    _
  $region29: #{transformer_forward.12} parent=0 // pred_fallthru
    _

// kernel: transformer_forward.14
$region0: #{transformer_forward.14}
  #allocation0 [shape = 'u32[]', space=smem, size = 0x4, offset = 0x4, fixed_abs, tag = 'smem constant byte address 0x4 - core index']
  #allocation1 [shape = 'u32[144,128]{1,0:T(1,128)}', space=vmem, size = 0x12000, scoped, tag = 'internal scratch']
  #allocation2 [shape = 'f32[16,32]{1,0:T(8,128)}', space=vmem, size = 0x2000, scoped, tag = 'scratch operand']
  %s0 = inlined_call_operand.vmem [shape: f32[16,64], index: 0, kind: input, shape index: {}]
  %s1 = inlined_call_operand.vmem [shape: bf16[64,32], index: 1, kind: input, shape index: {}]
  %s2 = inlined_call_operand.vmem [shape: f32[1,32], index: 2, kind: input, shape index: {}]
  %s3 = inlined_call_operand.vmem [shape: f32[16,32], index: 3, kind: output, shape index: {}]
  %s4 = sld [smem:[#allocation0]]
  $region30: #{transformer_forward.14} parent=0
    _
  %s6 = ssub.s32 1, %s4
  %s7 = scalar_select 0, %s6, %s4
  // Predicated region
  $region2: #{transformer_forward.14} parent=0 // pred_check
    _
  $region3: #{transformer_forward.14} parent=0 // pred_check_branch
    %9 = sbr.rel (0) target = $region5
  $region4: #{transformer_forward.14} parent=0 // pred_region
    _
  $region5: #{transformer_forward.14} parent=0 // pred_fallthru
    _
  // Predicated region
  $region6: #{transformer_forward.14} parent=0 // pred_check
    _
  $region7: #{transformer_forward.14} parent=0 // pred_check_branch
    %11 = sbr.rel (0) target = $region9
  $region8: #{transformer_forward.14} parent=0 // pred_region
    _
  $region9: #{transformer_forward.14} parent=0 // pred_fallthru
    _
  // Predicated region
  $region10: #{transformer_forward.14} parent=0 // pred_check
    _
  $region11: #{transformer_forward.14} parent=0 // pred_check_branch
    %13 = sbr.rel (0) target = $region13
  $region12: #{transformer_forward.14} parent=0 // pred_region
    _
  $region13: #{transformer_forward.14} parent=0 // pred_fallthru
    _
  %p15 = scmp.eq.s32.totalorder 0, 0
  // Predicated region
  $region14: #{transformer_forward.14} parent=0 // pred_check
    %p16 = pneg %p15
  $region15: #{transformer_forward.14} parent=0 // pred_check_branch
    %18 = sbr.rel (%p16) target = $region17
  $region16: #{transformer_forward.14} parent=0 // pred_region
    %vm19 = vcmask 261120
    %20 = vst.msk [vmem:[#allocation2] sm:$0xff] %vm19, 0.0
    %21 = vst.msk [vmem:[#allocation2 + $0x8] sm:$0xff] %vm19, 0.0
  $region17: #{transformer_forward.14} parent=0 // pred_fallthru
    _
  %v22 = vld [vmem:[#allocation2] sm:$0xff]
  %v23 = vld [vmem:[#allocation2 + $0x8] sm:$0xff]
  %v24 = vld [vmem:[%s0] sm:$0xff]
  %v25 = vld [vmem:[%s0 + $0x8] sm:$0xff]
  %v26 = vpack.c.bf16 %v25, %v24
  %v27 = vld [vmem:[%s1] sm:$0xf]
  %v28 = vld [vmem:[%s1 + $0x4] sm:$0xf]
  %v29 = vld [vmem:[%s1 + $0x8] sm:$0xf]
  %v30 = vld [vmem:[%s1 + $0xc] sm:$0xf]
  %v31 = vld [vmem:[%s1 + $0x10] sm:$0xf]
  %v32 = vld [vmem:[%s1 + $0x14] sm:$0xf]
  %v33 = vld [vmem:[%s1 + $0x18] sm:$0xf]
  %v34 = vld [vmem:[%s1 + $0x1c] sm:$0xf]
  %v43 = vunpack.c.l.b16 %v27
  %v44 = vunpack.c.l.b16 %v28
  %v45 = vunpack.c.l.b16 %v29
  %v46 = vunpack.c.l.b16 %v30
  %v47 = vunpack.c.l.b16 %v31
  %v48 = vunpack.c.l.b16 %v32
  %v49 = vunpack.c.l.b16 %v33
  %v50 = vunpack.c.l.b16 %v34
  %v51 = vpack.c.b16 %v44, %v43
  %v52 = vpack.c.b16 %v46, %v45
  %v53 = vpack.c.b16 %v48, %v47
  %v54 = vpack.c.b16 %v50, %v49
  %vm59 = vcmask 523264
  %v61 = vsel %vm59, %v26, 0
  %63 = vmatprep.subr.bf16.mxu0 0
  %64 = vmatpush1.bf16.msra.mxu0 %v51
  %65 = vmatprep.subr.bf16.mxu0 0
  %66 = vmatpush1.bf16.msra.mxu0 %v52
  %67 = vmatprep.subr.bf16.mxu0 0
  %68 = vmatpush1.bf16.msra.mxu0 %v53
  %69 = vmatprep.subr.bf16.mxu0 0
  %70 = vmatpush1.bf16.msra.mxu0 %v54
  %71 = vmatprep.subr.bf16.mxu0 0
  %72 = vmatpush1.bf16.msra.mxu0 0
  %73 = vmatprep.subr.bf16.mxu0 0
  %74 = vmatpush1.bf16.msra.mxu0 0
  %75 = vmatprep.subr.bf16.mxu0 0
  %76 = vmatpush1.bf16.msra.mxu0 0
  %77 = vmatprep.subr.bf16.mxu0 0
  %78 = vmatpush1.bf16.msra.mxu0 0
  %79 = vmatprep.subr.bf16.mxu0 0
  %80 = vmatpush1.bf16.msra.mxu0 0
  %81 = vmatprep.subr.bf16.mxu0 0
  %82 = vmatpush1.bf16.msra.mxu0 0
  %83 = vmatprep.subr.bf16.mxu0 0
  %84 = vmatpush1.bf16.msra.mxu0 0
  %85 = vmatprep.subr.bf16.mxu0 0
  %86 = vmatpush1.bf16.msra.mxu0 0
  %87 = vmatprep.subr.bf16.mxu0 0
  %88 = vmatpush1.bf16.msra.mxu0 0
  %89 = vmatprep.subr.bf16.mxu0 0
  %90 = vmatpush1.bf16.msra.mxu0 0
  %91 = vmatprep.subr.bf16.mxu0 0
  %92 = vmatpush1.bf16.msra.mxu0 0
  %93 = vmatprep.subr.bf16.mxu0 0
  %94 = vmatpush1.bf16.msra.mxu0 0
  %95 = vmatprep.mubr.bf16.mxu0 0
  %96 = vmatmul.mubr.bf16.gmra.mrb[0].mxu0 %v61
  %v97 = vpop.f32.mrb[0].mxu0
  %v98 = vadd.f32 0.0, %v97
  %v99 = vpop.f32.mrb[0].mxu0
  %v100 = vpop.f32.mrb[0].mxu0
  %v101 = vadd.f32 0.0, %v100
  %v102 = vpop.f32.mrb[0].mxu0
  %103 = vdwg.mxu0
  %v104 = vadd.f32 %v22, %v98
  %v105 = vadd.f32 %v23, %v101
  %vm106 = vcmask 261120
  %107 = vst.msk [vmem:[#allocation2] sm:$0xff] %vm106, %v104
  %108 = vst.msk [vmem:[#allocation2 + $0x8] sm:$0xff] %vm106, %v105
  // Predicated region
  $region18: #{transformer_forward.14} parent=0 // pred_check
    %p109 = pneg %p15
  $region19: #{transformer_forward.14} parent=0 // pred_check_branch
    %111 = sbr.rel (%p109) target = $region21
  $region20: #{transformer_forward.14} parent=0 // pred_region
    %v112 = vld [vmem:[#allocation2] sm:$0xff]
    %v113 = vld [vmem:[#allocation2 + $0x8] sm:$0xff]
    %v114 = vld [vmem:[%s2] sm:$0x1]
    %v116 = vlaneseq
    %v117 = vshrl.u32 %v116, 7
    %v118 = vsub.s32 0, %v117
    %v119 = vrot.slane %v114, %v118
    %v121 = vadd.f32 %v112, %v119
    %v122 = vadd.f32 %v113, %v119
    %123 = vst.msk [vmem:[%s3] sm:$0xff] %vm106, %v121
    %124 = vst.msk [vmem:[%s3 + $0x8] sm:$0xff] %vm106, %v122
  $region21: #{transformer_forward.14} parent=0 // pred_fallthru
    _
  // Predicated region
  $region22: #{transformer_forward.14} parent=0 // pred_check
    _
  $region23: #{transformer_forward.14} parent=0 // pred_check_branch
    %126 = sbr.rel (0) target = $region25
  $region24: #{transformer_forward.14} parent=0 // pred_region
    _
  $region25: #{transformer_forward.14} parent=0 // pred_fallthru
    _
  // Predicated region
  $region26: #{transformer_forward.14} parent=0 // pred_check
    _
  $region27: #{transformer_forward.14} parent=0 // pred_check_branch
    %128 = sbr.rel (0) target = $region29
  $region28: #{transformer_forward.14} parent=0 // pred_region
    _
  $region29: #{transformer_forward.14} parent=0 // pred_fallthru
    _

// kernel: transformer_forward.19
$region0: #{transformer_forward.19}
  #allocation0 [shape = 'u32[]', space=smem, size = 0x4, offset = 0x4, fixed_abs, tag = 'smem constant byte address 0x4 - core index']
  #allocation1 [shape = 'u32[144,128]{1,0:T(1,128)}', space=vmem, size = 0x12000, scoped, tag = 'internal scratch']
  #allocation2 [shape = 'f32[16,32]{1,0:T(8,128)}', space=vmem, size = 0x2000, scoped, tag = 'scratch operand']
  %s0 = inlined_call_operand.vmem [shape: f32[16,64], index: 0, kind: input, shape index: {}]
  %s1 = inlined_call_operand.vmem [shape: bf16[64,32], index: 1, kind: input, shape index: {}]
  %s2 = inlined_call_operand.vmem [shape: f32[1,32], index: 2, kind: input, shape index: {}]
  %s3 = inlined_call_operand.hbm [shape: f32[16,32], index: 3, kind: output, shape index: {}]
  %s4 = sld [smem:[#allocation0]]
  $region30: #{transformer_forward.19} parent=0
    _
  %s6 = ssub.s32 1, %s4
  %s7 = scalar_select 0, %s6, %s4
  $region1: #{transformer_forward.19} parent=0
    #allocation3 [shape = 'u8[8192]{0}', space=vmem, size = 0x2000, scoped, tag = 'output window, operand 0, single buffered']
    #allocation4 [shape = 's32[1]{0}', space=sflag, size = 0x4, scoped, tag = 'scoped memory for transformer_forward.19']
    %8 = vsyncpa [#allocation4], 0
    // Predicated region
    $region2: #{transformer_forward.19} parent=1 // pred_check
      _
    $region3: #{transformer_forward.19} parent=1 // pred_check_branch
      %10 = sbr.rel (0) target = $region5
    $region4: #{transformer_forward.19} parent=1 // pred_region
      _
    $region5: #{transformer_forward.19} parent=1 // pred_fallthru
      _
    // Predicated region
    $region6: #{transformer_forward.19} parent=1 // pred_check
      _
    $region7: #{transformer_forward.19} parent=1 // pred_check_branch
      %12 = sbr.rel (0) target = $region9
    $region8: #{transformer_forward.19} parent=1 // pred_region
      _
    $region9: #{transformer_forward.19} parent=1 // pred_fallthru
      _
    // Predicated region
    $region10: #{transformer_forward.19} parent=1 // pred_check
      _
    $region11: #{transformer_forward.19} parent=1 // pred_check_branch
      %14 = sbr.rel (0) target = $region13
    $region12: #{transformer_forward.19} parent=1 // pred_region
      _
    $region13: #{transformer_forward.19} parent=1 // pred_fallthru
      _
    %p16 = scmp.eq.s32.totalorder 0, 0
    // Predicated region
    $region14: #{transformer_forward.19} parent=1 // pred_check
      %p17 = pneg %p16
    $region15: #{transformer_forward.19} parent=1 // pred_check_branch
      %19 = sbr.rel (%p17) target = $region17
    $region16: #{transformer_forward.19} parent=1 // pred_region
      %vm20 = vcmask 261120
      %21 = vst.msk [vmem:[#allocation2] sm:$0xff] %vm20, 0.0
      %22 = vst.msk [vmem:[#allocation2 + $0x8] sm:$0xff] %vm20, 0.0
    $region17: #{transformer_forward.19} parent=1 // pred_fallthru
      _
    %v23 = vld [vmem:[#allocation2] sm:$0xff]
    %v24 = vld [vmem:[#allocation2 + $0x8] sm:$0xff]
    %v25 = vld [vmem:[%s0] sm:$0xff]
    %v26 = vld [vmem:[%s0 + $0x8] sm:$0xff]
    %v27 = vpack.c.bf16 %v26, %v25
    %v28 = vld [vmem:[%s1] sm:$0xf]
    %v29 = vld [vmem:[%s1 + $0x4] sm:$0xf]
    %v30 = vld [vmem:[%s1 + $0x8] sm:$0xf]
    %v31 = vld [vmem:[%s1 + $0xc] sm:$0xf]
    %v32 = vld [vmem:[%s1 + $0x10] sm:$0xf]
    %v33 = vld [vmem:[%s1 + $0x14] sm:$0xf]
    %v34 = vld [vmem:[%s1 + $0x18] sm:$0xf]
    %v35 = vld [vmem:[%s1 + $0x1c] sm:$0xf]
    %v44 = vunpack.c.l.b16 %v28
    %v45 = vunpack.c.l.b16 %v29
    %v46 = vunpack.c.l.b16 %v30
    %v47 = vunpack.c.l.b16 %v31
    %v48 = vunpack.c.l.b16 %v32
    %v49 = vunpack.c.l.b16 %v33
    %v50 = vunpack.c.l.b16 %v34
    %v51 = vunpack.c.l.b16 %v35
    %v52 = vpack.c.b16 %v45, %v44
    %v53 = vpack.c.b16 %v47, %v46
    %v54 = vpack.c.b16 %v49, %v48
    %v55 = vpack.c.b16 %v51, %v50
    %vm60 = vcmask 523264
    %v62 = vsel %vm60, %v27, 0
    %64 = vmatprep.subr.bf16.mxu0 0
    %65 = vmatpush1.bf16.msra.mxu0 %v52
    %66 = vmatprep.subr.bf16.mxu0 0
    %67 = vmatpush1.bf16.msra.mxu0 %v53
    %68 = vmatprep.subr.bf16.mxu0 0
    %69 = vmatpush1.bf16.msra.mxu0 %v54
    %70 = vmatprep.subr.bf16.mxu0 0
    %71 = vmatpush1.bf16.msra.mxu0 %v55
    %72 = vmatprep.subr.bf16.mxu0 0
    %73 = vmatpush1.bf16.msra.mxu0 0
    %74 = vmatprep.subr.bf16.mxu0 0
    %75 = vmatpush1.bf16.msra.mxu0 0
    %76 = vmatprep.subr.bf16.mxu0 0
    %77 = vmatpush1.bf16.msra.mxu0 0
    %78 = vmatprep.subr.bf16.mxu0 0
    %79 = vmatpush1.bf16.msra.mxu0 0
    %80 = vmatprep.subr.bf16.mxu0 0
    %81 = vmatpush1.bf16.msra.mxu0 0
    %82 = vmatprep.subr.bf16.mxu0 0
    %83 = vmatpush1.bf16.msra.mxu0 0
    %84 = vmatprep.subr.bf16.mxu0 0
    %85 = vmatpush1.bf16.msra.mxu0 0
    %86 = vmatprep.subr.bf16.mxu0 0
    %87 = vmatpush1.bf16.msra.mxu0 0
    %88 = vmatprep.subr.bf16.mxu0 0
    %89 = vmatpush1.bf16.msra.mxu0 0
    %90 = vmatprep.subr.bf16.mxu0 0
    %91 = vmatpush1.bf16.msra.mxu0 0
    %92 = vmatprep.subr.bf16.mxu0 0
    %93 = vmatpush1.bf16.msra.mxu0 0
    %94 = vmatprep.subr.bf16.mxu0 0
    %95 = vmatpush1.bf16.msra.mxu0 0
    %96 = vmatprep.mubr.bf16.mxu0 0
    %97 = vmatmul.mubr.bf16.gmra.mrb[0].mxu0 %v62
    %v98 = vpop.f32.mrb[0].mxu0
    %v99 = vadd.f32 0.0, %v98
    %v100 = vpop.f32.mrb[0].mxu0
    %v101 = vpop.f32.mrb[0].mxu0
    %v102 = vadd.f32 0.0, %v101
    %v103 = vpop.f32.mrb[0].mxu0
    %104 = vdwg.mxu0
    %v105 = vadd.f32 %v23, %v99
    %v106 = vadd.f32 %v24, %v102
    %vm107 = vcmask 261120
    %108 = vst.msk [vmem:[#allocation2] sm:$0xff] %vm107, %v105
    %109 = vst.msk [vmem:[#allocation2 + $0x8] sm:$0xff] %vm107, %v106
    // Predicated region
    $region18: #{transformer_forward.19} parent=1 // pred_check
      %p110 = pneg %p16
    $region19: #{transformer_forward.19} parent=1 // pred_check_branch
      %112 = sbr.rel (%p110) target = $region21
    $region20: #{transformer_forward.19} parent=1 // pred_region
      %v113 = vld [vmem:[#allocation2] sm:$0xff]
      %v114 = vld [vmem:[#allocation2 + $0x8] sm:$0xff]
      %v115 = vld [vmem:[%s2] sm:$0x1]
      %v117 = vlaneseq
      %v118 = vshrl.u32 %v117, 7
      %v119 = vsub.s32 0, %v118
      %v120 = vrot.slane %v115, %v119
      %v122 = vadd.f32 %v113, %v120
      %v123 = vadd.f32 %v114, %v120
      %124 = vst.msk [vmem:[#allocation3] sm:$0xff] %vm107, %v122
      %125 = vst.msk [vmem:[#allocation3 + $0x8] sm:$0xff] %vm107, %v123
    $region21: #{transformer_forward.19} parent=1 // pred_fallthru
      _
    // Predicated region
    $region22: #{transformer_forward.19} parent=1 // pred_check
      _
    $region23: #{transformer_forward.19} parent=1 // pred_check_branch
      %127 = sbr.rel (0) target = $region25
    $region24: #{transformer_forward.19} parent=1 // pred_region
      %s129 = ssub.s32 256, 256
      %130 = vsyncadd [#allocation4], %s129
      %s131 = sshll.u32 [#allocation3], 4
      %s132 = int_to_ptr.vmem [resolvable:$true] %s131
      %137 = dma.vmem_to_hbm [thread:$0]  %s132, 256, %s3, [#allocation4], 128, 128, 8
    $region25: #{transformer_forward.19} parent=1 // pred_fallthru
      _
    // Predicated region
    $region26: #{transformer_forward.19} parent=1 // pred_check
      _
    $region27: #{transformer_forward.19} parent=1 // pred_check_branch
      %139 = sbr.rel (0) target = $region29
    $region28: #{transformer_forward.19} parent=1 // pred_region
      %140 = dma.done [#allocation4], 256
    $region29: #{transformer_forward.19} parent=1 // pred_fallthru
      _
    %141 = vsyncpa [#allocation4], 1

// kernel: transformer_forward.11
$region0: #{transformer_forward.11}
  #allocation0 [shape = 'u32[]', space=smem, size = 0x4, offset = 0x4, fixed_abs, tag = 'smem constant byte address 0x4 - core index']
  #allocation1 [shape = 'u32[144,128]{1,0:T(1,128)}', space=vmem, size = 0x12000, scoped, tag = 'internal scratch']
  #allocation2 [shape = 'f32[4,8,1]{2,1,0:T(8,128)}', space=vmem, size = 0x4000, scoped, tag = 'scratch operand']
  #allocation3 [shape = 'f32[4,8,1]{2,1,0:T(8,128)}', space=vmem, size = 0x4000, scoped, tag = 'scratch operand']
  #allocation4 [shape = 'f32[4,8,8]{2,1,0:T(8,128)}', space=vmem, size = 0x4000, scoped, tag = 'scratch operand']
  %s0 = inlined_call_operand.vmem [shape: s8[2,8,8], index: 0, kind: input, shape index: {}]
  %s1 = inlined_call_operand.vmem [shape: bf16[8,2,4,8], index: 1, kind: input, shape index: {}]
  %s2 = inlined_call_operand.vmem [shape: bf16[8,2,4,8], index: 2, kind: input, shape index: {}]
  %s3 = inlined_call_operand.vmem [shape: bf16[8,2,4,8], index: 3, kind: input, shape index: {}]
  %s4 = inlined_call_operand.vmem [shape: f32[2,8,32], index: 4, kind: output, shape index: {}]
  %s5 = sld [smem:[#allocation0]]
  $region180: #{transformer_forward.11} parent=0
    _
  %s7 = ssub.s32 1, %s5
  %s8 = scalar_select 0, %s7, %s5
  $region1: #{transformer_forward.11} parent=0
    #allocation5 [shape = 'u8[16384]{0}', space=vmem, size = 0x4000, scoped, tag = 'input window, operand 1']
    #allocation6 [shape = 'u8[16384]{0}', space=vmem, size = 0x4000, scoped, tag = 'input window, operand 2']
    #allocation7 [shape = 'u8[16384]{0}', space=vmem, size = 0x4000, scoped, tag = 'input window, operand 3']
    loop: start=0, step=1, limit=4
    $region2: #{transformer_forward.11} parent=1 // loop_pre_header
      _
    $region3: #{transformer_forward.11} parent=1 // loop_header
      %s10 = sphi 0, %s14
      %p11 = scmp.ge.s32.totalorder %s10, 4
      %s17 = sphi 0, %s36
      %s18 = sphi 0, %s32
      %s19 = sphi 0, %s28
      %s20 = sphi 0, %s17
      %s21 = sphi 0, %s18
      %s22 = sphi 0, %s19
      %s23 = sphi 0, %s20
      %s24 = sphi 0, %s21
      %s25 = sphi 0, %s22
      %s43 = sphi 0, %s45
      %s46 = sphi 0, %s43
      %s47 = sphi 0, %s46
      %s63 = sphi 0, %s47
      %s71 = sphi 0, %s73
      %s74 = sphi 0, %s71
      %s75 = sphi 0, %s74
      %s91 = sphi 0, %s75
      %s99 = sphi 0, %s101
      %s102 = sphi 0, %s99
      %s103 = sphi 0, %s102
      %s119 = sphi 0, %s103
      %s127 = sphi 0, %s129
      %s130 = sphi 0, %s127
      %s131 = sphi 0, %s130
      %s147 = sphi 0, %s131
      %s155 = sphi 0, %s157
      %s158 = sphi 0, %s155
      %s159 = sphi 0, %s158
      %s175 = sphi 0, %s159
    $region4: #{transformer_forward.11} parent=1 // loop_header_branch
      %13 = sbr.rel (%p11) target = $region8
    $region5: #{transformer_forward.11} parent=1 // loop_body
      %s15 = ssub.s32 %s10, 1
      %s16 = ssub.s32 %s10, 2
      %s26 = sadd.s32 1, %s19
      %p27 = scmp.ge.s32.totalorder %s26, 1
      %s28 = scalar_select %p27, 0, %s26
      %s29 = sadd.s32 1, %s18
      %s30 = scalar_select %p27, %s29, %s18
      %p31 = scmp.ge.s32.totalorder %s30, 1
      %s32 = scalar_select %p31, 0, %s30
      %s33 = sadd.s32 1, %s17
      %s34 = scalar_select %p31, %s33, %s17
      %p35 = scmp.ge.s32.totalorder %s34, 2
      %s36 = scalar_select %p35, 0, %s34
      %s37 = ssub.s32 %s17, %s36
      %s38 = ssub.s32 %s18, %s32
      %s39 = sor.u32 %s37, %s38
      %s40 = ssub.s32 %s19, %s28
      %s41 = sor.u32 %s39, %s40
      %p42 = scmp.eq.s32.totalorder %s41, 0
      %s44 = sadd.s32 %s43, 1
      %s45 = scalar_select %p42, %s43, %s44
      %p48 = pneg %p42
      %p49 = scmp.eq.s32.totalorder %s10, 1
      %p50 = por %p48, %p49
      %p51 = scmp.ne.s32.totalorder %s43, %s46
      %p52 = scmp.eq.s32.totalorder %s10, 0
      %p53 = por %p51, %p52
      %p54 = scmp.ne.s32.totalorder %s43, %s46
      %p55 = scmp.eq.s32.totalorder %s15, 1
      %p56 = por %p54, %p55
      %p57 = scmp.ne.s32.totalorder %s46, %s47
      %p58 = scmp.eq.s32.totalorder %s15, 0
      %p59 = por %p57, %p58
      %p60 = scmp.ne.s32.totalorder %s46, %s47
      %p61 = scmp.eq.s32.totalorder %s16, 1
      %p62 = por %p60, %p61
      %p64 = scmp.ne.s32.totalorder %s47, %s63
      %p65 = scmp.eq.s32.totalorder %s16, 0
      %p66 = por %p64, %p65
      %s67 = ssub.s32 %s18, %s32
      %s68 = ssub.s32 %s17, %s36
      %s69 = sor.u32 %s67, %s68
      %p70 = scmp.eq.s32.totalorder %s69, 0
      %s72 = sadd.s32 %s71, 1
      %s73 = scalar_select %p70, %s71, %s72
      %p76 = pneg %p70
      %p77 = scmp.eq.s32.totalorder %s10, 1
      %p78 = por %p76, %p77
      %p79 = scmp.ne.s32.totalorder %s71, %s74
      %p80 = scmp.eq.s32.totalorder %s10, 0
      %p81 = por %p79, %p80
      %p82 = scmp.ne.s32.totalorder %s71, %s74
      %p83 = scmp.eq.s32.totalorder %s15, 1
      %p84 = por %p82, %p83
      %p85 = scmp.ne.s32.totalorder %s74, %s75
      %p86 = scmp.eq.s32.totalorder %s15, 0
      %p87 = por %p85, %p86
      %p88 = scmp.ne.s32.totalorder %s74, %s75
      %p89 = scmp.eq.s32.totalorder %s16, 1
      %p90 = por %p88, %p89
      %p92 = scmp.ne.s32.totalorder %s75, %s91
      %p93 = scmp.eq.s32.totalorder %s16, 0
      %p94 = por %p92, %p93
      %s95 = ssub.s32 %s19, %s28
      %s96 = ssub.s32 %s17, %s36
      %s97 = sor.u32 %s95, %s96
      %p98 = scmp.eq.s32.totalorder %s97, 0
      %s100 = sadd.s32 %s99, 1
      %s101 = scalar_select %p98, %s99, %s100
      %p104 = pneg %p98
      %p105 = scmp.eq.s32.totalorder %s10, 1
      %p106 = por %p104, %p105
      %p107 = scmp.ne.s32.totalorder %s99, %s102
      %p108 = scmp.eq.s32.totalorder %s10, 0
      %p109 = por %p107, %p108
      %p110 = scmp.ne.s32.totalorder %s99, %s102
      %p111 = scmp.eq.s32.totalorder %s15, 1
      %p112 = por %p110, %p111
      %p113 = scmp.ne.s32.totalorder %s102, %s103
      %p114 = scmp.eq.s32.totalorder %s15, 0
      %p115 = por %p113, %p114
      %p116 = scmp.ne.s32.totalorder %s102, %s103
      %p117 = scmp.eq.s32.totalorder %s16, 1
      %p118 = por %p116, %p117
      %p120 = scmp.ne.s32.totalorder %s103, %s119
      %p121 = scmp.eq.s32.totalorder %s16, 0
      %p122 = por %p120, %p121
      %s123 = ssub.s32 %s19, %s28
      %s124 = ssub.s32 %s17, %s36
      %s125 = sor.u32 %s123, %s124
      %p126 = scmp.eq.s32.totalorder %s125, 0
      %s128 = sadd.s32 %s127, 1
      %s129 = scalar_select %p126, %s127, %s128
      %p132 = pneg %p126
      %p133 = scmp.eq.s32.totalorder %s10, 1
      %p134 = por %p132, %p133
      %p135 = scmp.ne.s32.totalorder %s127, %s130
      %p136 = scmp.eq.s32.totalorder %s10, 0
      %p137 = por %p135, %p136
      %p138 = scmp.ne.s32.totalorder %s127, %s130
      %p139 = scmp.eq.s32.totalorder %s15, 1
      %p140 = por %p138, %p139
      %p141 = scmp.ne.s32.totalorder %s130, %s131
      %p142 = scmp.eq.s32.totalorder %s15, 0
      %p143 = por %p141, %p142
      %p144 = scmp.ne.s32.totalorder %s130, %s131
      %p145 = scmp.eq.s32.totalorder %s16, 1
      %p146 = por %p144, %p145
      %p148 = scmp.ne.s32.totalorder %s131, %s147
      %p149 = scmp.eq.s32.totalorder %s16, 0
      %p150 = por %p148, %p149
      %s151 = ssub.s32 %s17, %s36
      %s152 = ssub.s32 %s18, %s32
      %s153 = sor.u32 %s151, %s152
      %p154 = scmp.eq.s32.totalorder %s153, 0
      %s156 = sadd.s32 %s155, 1
      %s157 = scalar_select %p154, %s155, %s156
      %p160 = pneg %p154
      %p161 = scmp.eq.s32.totalorder %s10, 1
      %p162 = por %p160, %p161
      %p163 = scmp.ne.s32.totalorder %s155, %s158
      %p164 = scmp.eq.s32.totalorder %s10, 0
      %p165 = por %p163, %p164
      %p166 = scmp.ne.s32.totalorder %s155, %s158
      %p167 = scmp.eq.s32.totalorder %s15, 1
      %p168 = por %p166, %p167
      %p169 = scmp.ne.s32.totalorder %s158, %s159
      %p170 = scmp.eq.s32.totalorder %s15, 0
      %p171 = por %p169, %p170
      %p172 = scmp.ne.s32.totalorder %s158, %s159
      %p173 = scmp.eq.s32.totalorder %s16, 1
      %p174 = por %p172, %p173
      %p176 = scmp.ne.s32.totalorder %s159, %s175
      %p177 = scmp.eq.s32.totalorder %s16, 0
      %p178 = por %p176, %p177
      %p179 = scmp.le.s32.totalorder 1, %s10
      %p180 = scmp.lt.s32.totalorder %s10, 3
      %p181 = pnand %p179, %p180
      %p182 = pneg %p181
      // Predicated region
      $region9: #{transformer_forward.11} parent=5 // pred_check
        _
      $region10: #{transformer_forward.11} parent=5 // pred_check_branch
        %184 = sbr.rel (%p181) target = $region12
      $region11: #{transformer_forward.11} parent=5 // pred_region
        %s185 = ssub.s32 %s10, 1
      $region12: #{transformer_forward.11} parent=5 // pred_fallthru
        _
      %p186 = scmp.lt.s32.totalorder %s10, 2
      // Predicated region
      $region13: #{transformer_forward.11} parent=5 // pred_check
        %p187 = pneg %p186
      $region14: #{transformer_forward.11} parent=5 // pred_check_branch
        %189 = sbr.rel (%p187) target = $region16
      $region15: #{transformer_forward.11} parent=5 // pred_region
        // Predicated region
        $region17: #{transformer_forward.11} parent=15 // pred_check
          %p190 = pneg %p53
        $region18: #{transformer_forward.11} parent=15 // pred_check_branch
          %192 = sbr.rel (%p190) target = $region20
        $region19: #{transformer_forward.11} parent=15 // pred_region
          %p193 = scmp.lt.s32.totalorder %s17, 1
          %s194 = scalar_select %p193, %s17, 1
          %p195 = scmp.lt.s32.totalorder %s18, 0
          %s196 = scalar_select %p195, %s18, 0
          %p197 = scmp.lt.s32.totalorder %s19, 0
          %s198 = scalar_select %p197, %s19, 0
          %s199 = sadd.s32 %s198, %s196
          %s200 = sadd.s32 %s199, %s194
          %s201 = smul.addr %s200, 2
          %s202 = scalar_lea.vmem %s0, %s201
        $region20: #{transformer_forward.11} parent=15 // pred_fallthru
          _
        // Predicated region
        $region21: #{transformer_forward.11} parent=15 // pred_check
          %p203 = pneg %p81
        $region22: #{transformer_forward.11} parent=15 // pred_check_branch
          %205 = sbr.rel (%p203) target = $region24
        $region23: #{transformer_forward.11} parent=15 // pred_region
          %s206 = sand.u32 %s71, 1
          %s207 = sand.u32 %s71, 1
          %s208 = smul.addr %s207, 16
          %s209 = scalar_lea.vmem [#allocation5], %s208
          %s210 = smul.u32 8, %s18
          %s211 = smul.addr %s210, 2
          %s212 = sadd.s32 %s17, %s211
          %s213 = smul.addr %s212, 2
          %s214 = scalar_lea.vmem %s1, %s213
          // Predicated region
          $region25: #{transformer_forward.11} parent=23 // pred_check
            _
          $region26: #{transformer_forward.11} parent=23 // pred_check_branch
            %216 = sbr.rel (0) target = $region28
          $region27: #{transformer_forward.11} parent=23 // pred_region
            // Predicated region
            $region29: #{transformer_forward.11} parent=27 // pred_check
              _
            $region30: #{transformer_forward.11} parent=27 // pred_check_branch
              %218 = sbr.rel target = $region32
            $region31: #{transformer_forward.11} parent=27 // pred_region
              // Predicated region
              $region44: #{transformer_forward.11} parent=31 // pred_check
                _
              $region45: #{transformer_forward.11} parent=31 // pred_check_branch
                %247 = sbr.rel (0) target = $region47
              $region46: #{transformer_forward.11} parent=31 // pred_region
                loop: start=0, step=1, limit=1
                $region48: #{transformer_forward.11} parent=46 // loop_pre_header
                  _
                $region49: #{transformer_forward.11} parent=46 // loop_header
                  %s249 = sphi 0, %s253
                  %p250 = scmp.ge.s32.totalorder %s249, 1
                  %s254 = sphi %s214, %s214
                  %s255 = sphi %s209, %s209
                $region50: #{transformer_forward.11} parent=46 // loop_header_branch
                  %252 = sbr.rel (%p250) target = $region54
                $region51: #{transformer_forward.11} parent=46 // loop_body
                  _
                $region52: #{transformer_forward.11} parent=46 // loop_footer
                  %s253 = sadd.s32 1, %s249
                $region53: #{transformer_forward.11} parent=46 // loop_footer_branch
                  %248 = sbr.rel target = $region49
                $region54: #{transformer_forward.11} parent=46 // loop_exit
                  _
                loop: start=0, step=1, limit=1
                $region55: #{transformer_forward.11} parent=46 // loop_pre_header
                  _
                $region56: #{transformer_forward.11} parent=46 // loop_header
                  %s258 = sphi 0, %s262
                  %p259 = scmp.ge.s32.totalorder %s258, 1
                  %s263 = sphi %s214, %s214
                  %s264 = sphi %s209, %s209
                $region57: #{transformer_forward.11} parent=46 // loop_header_branch
                  %261 = sbr.rel (%p259) target = $region61
                $region58: #{transformer_forward.11} parent=46 // loop_body
                  %v265 = vld [vmem:[%s263] sm:$0x3]
                  %266 = vst [vmem:[%s264] sm:$0x3] %v265
                  %v267 = vld [vmem:[%s263 + $0x4] sm:$0x3]
                  %268 = vst [vmem:[%s264 + $0x2] sm:$0x3] %v267
                  %v269 = vld [vmem:[%s263 + $0x8] sm:$0x3]
                  %270 = vst [vmem:[%s264 + $0x4] sm:$0x3] %v269
                  %v271 = vld [vmem:[%s263 + $0xc] sm:$0x3]
                  %272 = vst [vmem:[%s264 + $0x6] sm:$0x3] %v271
                  %v273 = vld [vmem:[%s263 + $0x10] sm:$0x3]
                  %274 = vst [vmem:[%s264 + $0x8] sm:$0x3] %v273
                  %v275 = vld [vmem:[%s263 + $0x14] sm:$0x3]
                  %276 = vst [vmem:[%s264 + $0xa] sm:$0x3] %v275
                  %v277 = vld [vmem:[%s263 + $0x18] sm:$0x3]
                  %278 = vst [vmem:[%s264 + $0xc] sm:$0x3] %v277
                  %v279 = vld [vmem:[%s263 + $0x1c] sm:$0x3]
                  %280 = vst [vmem:[%s264 + $0xe] sm:$0x3] %v279
                $region59: #{transformer_forward.11} parent=46 // loop_footer
                  %s262 = sadd.s32 1, %s258
                $region60: #{transformer_forward.11} parent=46 // loop_footer_branch
                  %257 = sbr.rel target = $region56
                $region61: #{transformer_forward.11} parent=46 // loop_exit
                  _
              $region47: #{transformer_forward.11} parent=31 // pred_fallthru
                _
            $region32: #{transformer_forward.11} parent=27 // pred_fallthru
              _
            // Predicated region
            $region33: #{transformer_forward.11} parent=27 // pred_check
              _
            $region34: #{transformer_forward.11} parent=27 // pred_check_branch
              %220 = sbr.rel (0) target = $region36
            $region35: #{transformer_forward.11} parent=27 // pred_region
              loop: start=0, step=1, limit=1
              $region37: #{transformer_forward.11} parent=35 // loop_pre_header
                _
              $region38: #{transformer_forward.11} parent=35 // loop_header
                %s223 = sphi 0, %s227
                %p224 = scmp.ge.s32.totalorder %s223, 1
                %s228 = sphi %s214, %s214
                %s229 = sphi %s209, %s209
              $region39: #{transformer_forward.11} parent=35 // loop_header_branch
                %226 = sbr.rel (%p224) target = $region43
              $region40: #{transformer_forward.11} parent=35 // loop_body
                %v230 = vld [vmem:[%s228] sm:$0x3]
                %231 = vst [vmem:[%s229] sm:$0x3] %v230
                %v232 = vld [vmem:[%s228 + $0x4] sm:$0x3]
                %233 = vst [vmem:[%s229 + $0x2] sm:$0x3] %v232
                %v234 = vld [vmem:[%s228 + $0x8] sm:$0x3]
                %235 = vst [vmem:[%s229 + $0x4] sm:$0x3] %v234
                %v236 = vld [vmem:[%s228 + $0xc] sm:$0x3]
                %237 = vst [vmem:[%s229 + $0x6] sm:$0x3] %v236
                %v238 = vld [vmem:[%s228 + $0x10] sm:$0x3]
                %239 = vst [vmem:[%s229 + $0x8] sm:$0x3] %v238
                %v240 = vld [vmem:[%s228 + $0x14] sm:$0x3]
                %241 = vst [vmem:[%s229 + $0xa] sm:$0x3] %v240
                %v242 = vld [vmem:[%s228 + $0x18] sm:$0x3]
                %243 = vst [vmem:[%s229 + $0xc] sm:$0x3] %v242
                %v244 = vld [vmem:[%s228 + $0x1c] sm:$0x3]
                %245 = vst [vmem:[%s229 + $0xe] sm:$0x3] %v244
              $region41: #{transformer_forward.11} parent=35 // loop_footer
                %s227 = sadd.s32 1, %s223
              $region42: #{transformer_forward.11} parent=35 // loop_footer_branch
                %222 = sbr.rel target = $region38
              $region43: #{transformer_forward.11} parent=35 // loop_exit
                _
            $region36: #{transformer_forward.11} parent=27 // pred_fallthru
              _
          $region28: #{transformer_forward.11} parent=23 // pred_fallthru
            _
          %281 = vnop
        $region24: #{transformer_forward.11} parent=15 // pred_fallthru
          _
        // Predicated region
        $region62: #{transformer_forward.11} parent=15 // pred_check
          %p282 = pneg %p109
        $region63: #{transformer_forward.11} parent=15 // pred_check_branch
          %284 = sbr.rel (%p282) target = $region65
        $region64: #{transformer_forward.11} parent=15 // pred_region
          %s285 = sand.u32 %s99, 1
          %s286 = sand.u32 %s99, 1
          %s287 = smul.addr %s286, 16
          %s288 = scalar_lea.vmem [#allocation6], %s287
          %s289 = smul.u32 8, %s19
          %s290 = smul.addr %s289, 2
          %s291 = sadd.s32 %s17, %s290
          %s292 = smul.addr %s291, 2
          %s293 = scalar_lea.vmem %s2, %s292
          // Predicated region
          $region66: #{transformer_forward.11} parent=64 // pred_check
            _
          $region67: #{transformer_forward.11} parent=64 // pred_check_branch
            %295 = sbr.rel (0) target = $region69
          $region68: #{transformer_forward.11} parent=64 // pred_region
            // Predicated region
            $region70: #{transformer_forward.11} parent=68 // pred_check
              _
            $region71: #{transformer_forward.11} parent=68 // pred_check_branch
              %297 = sbr.rel target = $region73
            $region72: #{transformer_forward.11} parent=68 // pred_region
              // Predicated region
              $region85: #{transformer_forward.11} parent=72 // pred_check
                _
              $region86: #{transformer_forward.11} parent=72 // pred_check_branch
                %326 = sbr.rel (0) target = $region88
              $region87: #{transformer_forward.11} parent=72 // pred_region
                loop: start=0, step=1, limit=1
                $region89: #{transformer_forward.11} parent=87 // loop_pre_header
                  _
                $region90: #{transformer_forward.11} parent=87 // loop_header
                  %s328 = sphi 0, %s332
                  %p329 = scmp.ge.s32.totalorder %s328, 1
                  %s333 = sphi %s293, %s293
                  %s334 = sphi %s288, %s288
                $region91: #{transformer_forward.11} parent=87 // loop_header_branch
                  %331 = sbr.rel (%p329) target = $region95
                $region92: #{transformer_forward.11} parent=87 // loop_body
                  _
                $region93: #{transformer_forward.11} parent=87 // loop_footer
                  %s332 = sadd.s32 1, %s328
                $region94: #{transformer_forward.11} parent=87 // loop_footer_branch
                  %327 = sbr.rel target = $region90
                $region95: #{transformer_forward.11} parent=87 // loop_exit
                  _
                loop: start=0, step=1, limit=1
                $region96: #{transformer_forward.11} parent=87 // loop_pre_header
                  _
                $region97: #{transformer_forward.11} parent=87 // loop_header
                  %s337 = sphi 0, %s341
                  %p338 = scmp.ge.s32.totalorder %s337, 1
                  %s342 = sphi %s293, %s293
                  %s343 = sphi %s288, %s288
                $region98: #{transformer_forward.11} parent=87 // loop_header_branch
                  %340 = sbr.rel (%p338) target = $region102
                $region99: #{transformer_forward.11} parent=87 // loop_body
                  %v344 = vld [vmem:[%s342] sm:$0x3]
                  %345 = vst [vmem:[%s343] sm:$0x3] %v344
                  %v346 = vld [vmem:[%s342 + $0x4] sm:$0x3]
                  %347 = vst [vmem:[%s343 + $0x2] sm:$0x3] %v346
                  %v348 = vld [vmem:[%s342 + $0x8] sm:$0x3]
                  %349 = vst [vmem:[%s343 + $0x4] sm:$0x3] %v348
                  %v350 = vld [vmem:[%s342 + $0xc] sm:$0x3]
                  %351 = vst [vmem:[%s343 + $0x6] sm:$0x3] %v350
                  %v352 = vld [vmem:[%s342 + $0x10] sm:$0x3]
                  %353 = vst [vmem:[%s343 + $0x8] sm:$0x3] %v352
                  %v354 = vld [vmem:[%s342 + $0x14] sm:$0x3]
                  %355 = vst [vmem:[%s343 + $0xa] sm:$0x3] %v354
                  %v356 = vld [vmem:[%s342 + $0x18] sm:$0x3]
                  %357 = vst [vmem:[%s343 + $0xc] sm:$0x3] %v356
                  %v358 = vld [vmem:[%s342 + $0x1c] sm:$0x3]
                  %359 = vst [vmem:[%s343 + $0xe] sm:$0x3] %v358
                $region100: #{transformer_forward.11} parent=87 // loop_footer
                  %s341 = sadd.s32 1, %s337
                $region101: #{transformer_forward.11} parent=87 // loop_footer_branch
                  %336 = sbr.rel target = $region97
                $region102: #{transformer_forward.11} parent=87 // loop_exit
                  _
              $region88: #{transformer_forward.11} parent=72 // pred_fallthru
                _
            $region73: #{transformer_forward.11} parent=68 // pred_fallthru
              _
            // Predicated region
            $region74: #{transformer_forward.11} parent=68 // pred_check
              _
            $region75: #{transformer_forward.11} parent=68 // pred_check_branch
              %299 = sbr.rel (0) target = $region77
            $region76: #{transformer_forward.11} parent=68 // pred_region
              loop: start=0, step=1, limit=1
              $region78: #{transformer_forward.11} parent=76 // loop_pre_header
                _
              $region79: #{transformer_forward.11} parent=76 // loop_header
                %s302 = sphi 0, %s306
                %p303 = scmp.ge.s32.totalorder %s302, 1
                %s307 = sphi %s293, %s293
                %s308 = sphi %s288, %s288
              $region80: #{transformer_forward.11} parent=76 // loop_header_branch
                %305 = sbr.rel (%p303) target = $region84
              $region81: #{transformer_forward.11} parent=76 // loop_body
                %v309 = vld [vmem:[%s307] sm:$0x3]
                %310 = vst [vmem:[%s308] sm:$0x3] %v309
                %v311 = vld [vmem:[%s307 + $0x4] sm:$0x3]
                %312 = vst [vmem:[%s308 + $0x2] sm:$0x3] %v311
                %v313 = vld [vmem:[%s307 + $0x8] sm:$0x3]
                %314 = vst [vmem:[%s308 + $0x4] sm:$0x3] %v313
                %v315 = vld [vmem:[%s307 + $0xc] sm:$0x3]
                %316 = vst [vmem:[%s308 + $0x6] sm:$0x3] %v315
                %v317 = vld [vmem:[%s307 + $0x10] sm:$0x3]
                %318 = vst [vmem:[%s308 + $0x8] sm:$0x3] %v317
                %v319 = vld [vmem:[%s307 + $0x14] sm:$0x3]
                %320 = vst [vmem:[%s308 + $0xa] sm:$0x3] %v319
                %v321 = vld [vmem:[%s307 + $0x18] sm:$0x3]
                %322 = vst [vmem:[%s308 + $0xc] sm:$0x3] %v321
                %v323 = vld [vmem:[%s307 + $0x1c] sm:$0x3]
                %324 = vst [vmem:[%s308 + $0xe] sm:$0x3] %v323
              $region82: #{transformer_forward.11} parent=76 // loop_footer
                %s306 = sadd.s32 1, %s302
              $region83: #{transformer_forward.11} parent=76 // loop_footer_branch
                %301 = sbr.rel target = $region79
              $region84: #{transformer_forward.11} parent=76 // loop_exit
                _
            $region77: #{transformer_forward.11} parent=68 // pred_fallthru
              _
          $region69: #{transformer_forward.11} parent=64 // pred_fallthru
            _
          %360 = vnop
        $region65: #{transformer_forward.11} parent=15 // pred_fallthru
          _
        // Predicated region
        $region103: #{transformer_forward.11} parent=15 // pred_check
          %p361 = pneg %p137
        $region104: #{transformer_forward.11} parent=15 // pred_check_branch
          %363 = sbr.rel (%p361) target = $region106
        $region105: #{transformer_forward.11} parent=15 // pred_region
          %s364 = sand.u32 %s127, 1
          %s365 = sand.u32 %s127, 1
          %s366 = smul.addr %s365, 16
          %s367 = scalar_lea.vmem [#allocation7], %s366
          %s368 = smul.u32 8, %s19
          %s369 = smul.addr %s368, 2
          %s370 = sadd.s32 %s17, %s369
          %s371 = smul.addr %s370, 2
          %s372 = scalar_lea.vmem %s3, %s371
          // Predicated region
          $region107: #{transformer_forward.11} parent=105 // pred_check
            _
          $region108: #{transformer_forward.11} parent=105 // pred_check_branch
            %374 = sbr.rel (0) target = $region110
          $region109: #{transformer_forward.11} parent=105 // pred_region
            // Predicated region
            $region111: #{transformer_forward.11} parent=109 // pred_check
              _
            $region112: #{transformer_forward.11} parent=109 // pred_check_branch
              %376 = sbr.rel target = $region114
            $region113: #{transformer_forward.11} parent=109 // pred_region
              // Predicated region
              $region126: #{transformer_forward.11} parent=113 // pred_check
                _
              $region127: #{transformer_forward.11} parent=113 // pred_check_branch
                %405 = sbr.rel (0) target = $region129
              $region128: #{transformer_forward.11} parent=113 // pred_region
                loop: start=0, step=1, limit=1
                $region130: #{transformer_forward.11} parent=128 // loop_pre_header
                  _
                $region131: #{transformer_forward.11} parent=128 // loop_header
                  %s407 = sphi 0, %s411
                  %p408 = scmp.ge.s32.totalorder %s407, 1
                  %s412 = sphi %s372, %s372
                  %s413 = sphi %s367, %s367
                $region132: #{transformer_forward.11} parent=128 // loop_header_branch
                  %410 = sbr.rel (%p408) target = $region136
                $region133: #{transformer_forward.11} parent=128 // loop_body
                  _
                $region134: #{transformer_forward.11} parent=128 // loop_footer
                  %s411 = sadd.s32 1, %s407
                $region135: #{transformer_forward.11} parent=128 // loop_footer_branch
                  %406 = sbr.rel target = $region131
                $region136: #{transformer_forward.11} parent=128 // loop_exit
                  _
                loop: start=0, step=1, limit=1
                $region137: #{transformer_forward.11} parent=128 // loop_pre_header
                  _
                $region138: #{transformer_forward.11} parent=128 // loop_header
                  %s416 = sphi 0, %s420
                  %p417 = scmp.ge.s32.totalorder %s416, 1
                  %s421 = sphi %s372, %s372
                  %s422 = sphi %s367, %s367
                $region139: #{transformer_forward.11} parent=128 // loop_header_branch
                  %419 = sbr.rel (%p417) target = $region143
                $region140: #{transformer_forward.11} parent=128 // loop_body
                  %v423 = vld [vmem:[%s421] sm:$0x3]
                  %424 = vst [vmem:[%s422] sm:$0x3] %v423
                  %v425 = vld [vmem:[%s421 + $0x4] sm:$0x3]
                  %426 = vst [vmem:[%s422 + $0x2] sm:$0x3] %v425
                  %v427 = vld [vmem:[%s421 + $0x8] sm:$0x3]
                  %428 = vst [vmem:[%s422 + $0x4] sm:$0x3] %v427
                  %v429 = vld [vmem:[%s421 + $0xc] sm:$0x3]
                  %430 = vst [vmem:[%s422 + $0x6] sm:$0x3] %v429
                  %v431 = vld [vmem:[%s421 + $0x10] sm:$0x3]
                  %432 = vst [vmem:[%s422 + $0x8] sm:$0x3] %v431
                  %v433 = vld [vmem:[%s421 + $0x14] sm:$0x3]
                  %434 = vst [vmem:[%s422 + $0xa] sm:$0x3] %v433
                  %v435 = vld [vmem:[%s421 + $0x18] sm:$0x3]
                  %436 = vst [vmem:[%s422 + $0xc] sm:$0x3] %v435
                  %v437 = vld [vmem:[%s421 + $0x1c] sm:$0x3]
                  %438 = vst [vmem:[%s422 + $0xe] sm:$0x3] %v437
                $region141: #{transformer_forward.11} parent=128 // loop_footer
                  %s420 = sadd.s32 1, %s416
                $region142: #{transformer_forward.11} parent=128 // loop_footer_branch
                  %415 = sbr.rel target = $region138
                $region143: #{transformer_forward.11} parent=128 // loop_exit
                  _
              $region129: #{transformer_forward.11} parent=113 // pred_fallthru
                _
            $region114: #{transformer_forward.11} parent=109 // pred_fallthru
              _
            // Predicated region
            $region115: #{transformer_forward.11} parent=109 // pred_check
              _
            $region116: #{transformer_forward.11} parent=109 // pred_check_branch
              %378 = sbr.rel (0) target = $region118
            $region117: #{transformer_forward.11} parent=109 // pred_region
              loop: start=0, step=1, limit=1
              $region119: #{transformer_forward.11} parent=117 // loop_pre_header
                _
              $region120: #{transformer_forward.11} parent=117 // loop_header
                %s381 = sphi 0, %s385
                %p382 = scmp.ge.s32.totalorder %s381, 1
                %s386 = sphi %s372, %s372
                %s387 = sphi %s367, %s367
              $region121: #{transformer_forward.11} parent=117 // loop_header_branch
                %384 = sbr.rel (%p382) target = $region125
              $region122: #{transformer_forward.11} parent=117 // loop_body
                %v388 = vld [vmem:[%s386] sm:$0x3]
                %389 = vst [vmem:[%s387] sm:$0x3] %v388
                %v390 = vld [vmem:[%s386 + $0x4] sm:$0x3]
                %391 = vst [vmem:[%s387 + $0x2] sm:$0x3] %v390
                %v392 = vld [vmem:[%s386 + $0x8] sm:$0x3]
                %393 = vst [vmem:[%s387 + $0x4] sm:$0x3] %v392
                %v394 = vld [vmem:[%s386 + $0xc] sm:$0x3]
                %395 = vst [vmem:[%s387 + $0x6] sm:$0x3] %v394
                %v396 = vld [vmem:[%s386 + $0x10] sm:$0x3]
                %397 = vst [vmem:[%s387 + $0x8] sm:$0x3] %v396
                %v398 = vld [vmem:[%s386 + $0x14] sm:$0x3]
                %399 = vst [vmem:[%s387 + $0xa] sm:$0x3] %v398
                %v400 = vld [vmem:[%s386 + $0x18] sm:$0x3]
                %401 = vst [vmem:[%s387 + $0xc] sm:$0x3] %v400
                %v402 = vld [vmem:[%s386 + $0x1c] sm:$0x3]
                %403 = vst [vmem:[%s387 + $0xe] sm:$0x3] %v402
              $region123: #{transformer_forward.11} parent=117 // loop_footer
                %s385 = sadd.s32 1, %s381
              $region124: #{transformer_forward.11} parent=117 // loop_footer_branch
                %380 = sbr.rel target = $region120
              $region125: #{transformer_forward.11} parent=117 // loop_exit
                _
            $region118: #{transformer_forward.11} parent=109 // pred_fallthru
              _
          $region110: #{transformer_forward.11} parent=105 // pred_fallthru
            _
          %439 = vnop
        $region106: #{transformer_forward.11} parent=15 // pred_fallthru
          _
      $region16: #{transformer_forward.11} parent=5 // pred_fallthru
        _
      %p440 = scmp.le.s32.totalorder 1, %s10
      %p441 = scmp.lt.s32.totalorder %s10, 3
      %p442 = pnand %p440, %p441
      %p443 = pneg %p442
      // Predicated region
      $region144: #{transformer_forward.11} parent=5 // pred_check
        _
      $region145: #{transformer_forward.11} parent=5 // pred_check_branch
        %445 = sbr.rel (%p442) target = $region147
      $region146: #{transformer_forward.11} parent=5 // pred_region
        %s446 = ssub.s32 %s10, 1
        %s447 = sand.u32 %s74, 1
        %s448 = sand.u32 %s74, 1
        %s449 = smul.addr %s448, 16
        %s450 = scalar_lea.vmem [#allocation5], %s449
        // Predicated region
        $region148: #{transformer_forward.11} parent=146 // pred_check
          %p451 = pneg %p87
        $region149: #{transformer_forward.11} parent=146 // pred_check_branch
          %453 = sbr.rel (%p451) target = $region151
        $region150: #{transformer_forward.11} parent=146 // pred_region
          _
        $region151: #{transformer_forward.11} parent=146 // pred_fallthru
          _
        %s454 = sand.u32 %s102, 1
        %s455 = sand.u32 %s102, 1
        %s456 = smul.addr %s455, 16
        %s457 = scalar_lea.vmem [#allocation6], %s456
        // Predicated region
        $region152: #{transformer_forward.11} parent=146 // pred_check
          %p458 = pneg %p115
        $region153: #{transformer_forward.11} parent=146 // pred_check_branch
          %460 = sbr.rel (%p458) target = $region155
        $region154: #{transformer_forward.11} parent=146 // pred_region
          _
        $region155: #{transformer_forward.11} parent=146 // pred_fallthru
          _
        %s461 = sand.u32 %s130, 1
        %s462 = sand.u32 %s130, 1
        %s463 = smul.addr %s462, 16
        %s464 = scalar_lea.vmem [#allocation7], %s463
        // Predicated region
        $region156: #{transformer_forward.11} parent=146 // pred_check
          %p465 = pneg %p143
        $region157: #{transformer_forward.11} parent=146 // pred_check_branch
          %467 = sbr.rel (%p465) target = $region159
        $region158: #{transformer_forward.11} parent=146 // pred_region
          _
        $region159: #{transformer_forward.11} parent=146 // pred_fallthru
          _
        %p468 = scmp.lt.s32.totalorder %s20, 1
        %s469 = scalar_select %p468, %s20, 1
        %p470 = scmp.lt.s32.totalorder %s21, 0
        %s471 = scalar_select %p470, %s21, 0
        %p472 = scmp.lt.s32.totalorder %s22, 0
        %s473 = scalar_select %p472, %s22, 0
        %s474 = sadd.s32 %s473, %s471
        %s475 = sadd.s32 %s474, %s469
        %s476 = smul.addr %s475, 2
        %s477 = scalar_lea.vmem %s0, %s476
        %p478 = pneg %p59
        %p479 = pneg %p56
        %s480 = sand.u32 %s74, 1
        %s481 = sand.u32 %s74, 1
        %s482 = smul.addr %s481, 16
        %s483 = scalar_lea.vmem [#allocation5], %s482
        %p484 = pneg %p87
        %p485 = pneg %p84
        %s486 = sand.u32 %s102, 1
        %s487 = sand.u32 %s102, 1
        %s488 = smul.addr %s487, 16
        %s489 = scalar_lea.vmem [#allocation6], %s488
        %p490 = pneg %p115
        %p491 = pneg %p112
        %s492 = sand.u32 %s130, 1
        %s493 = sand.u32 %s130, 1
        %s494 = smul.addr %s493, 16
        %s495 = scalar_lea.vmem [#allocation7], %s494
        %p496 = pneg %p143
        %p497 = pneg %p140
        %p498 = pneg %p171
        %p499 = pneg %p168
        %p500 = scmp.lt.s32.totalorder %s20, 1
        %s501 = scalar_select %p500, %s20, 1
        %p502 = scmp.lt.s32.totalorder %s21, 0
        %s503 = scalar_select %p502, %s21, 0
        %s504 = sadd.s32 %s503, %s501
        %s505 = smul.addr %s504, 8
        %s506 = scalar_lea.vmem %s4, %s505
        %p507 = scmp.lt.s32.totalorder %s20, 1
        %s508 = scalar_select %p507, %s20, 1
        %p509 = scmp.lt.s32.totalorder %s21, 0
        %s510 = scalar_select %p509, %s21, 0
        %p511 = scmp.lt.s32.totalorder %s22, 0
        %s512 = scalar_select %p511, %s22, 0
        %s513 = sadd.s32 %s512, %s510
        %s514 = sadd.s32 %s513, %s508
        %s515 = smul.addr %s514, 2
        %s516 = scalar_lea.vmem %s0, %s515
        %s517 = smul.u32 8, %s21
        %s518 = smul.u32 8, %s22
        %s519 = smul.u32 8, %s22
        %p520 = scmp.lt.s32.totalorder %s20, 1
        %s521 = scalar_select %p520, %s20, 1
        %p522 = scmp.lt.s32.totalorder %s21, 0
        %s523 = scalar_select %p522, %s21, 0
        %s524 = sadd.s32 %s523, %s521
        %s525 = smul.addr %s524, 8
        %s526 = scalar_lea.vmem %s4, %s525
        %p530 = scmp.eq.s32.totalorder %s22, 0
        // Predicated region
        $region160: #{transformer_forward.11} parent=146 // pred_check
          %p531 = pneg %p530
        $region161: #{transformer_forward.11} parent=146 // pred_check_branch
          %533 = sbr.rel (%p531) target = $region163
        $region162: #{transformer_forward.11} parent=146 // pred_region
          %vm534 = vcmask 7168
          %535 = vst.msk [vmem:[#allocation2] sm:$0xff] %vm534, -1e+30
          %536 = vst.msk [vmem:[#allocation2 + $0x8] sm:$0xff] %vm534, -1e+30
          %537 = vst.msk [vmem:[#allocation2 + $0x10] sm:$0xff] %vm534, -1e+30
          %538 = vst.msk [vmem:[#allocation2 + $0x18] sm:$0xff] %vm534, -1e+30
          %539 = vst.msk [vmem:[#allocation3] sm:$0xff] %vm534, 0.0
          %540 = vst.msk [vmem:[#allocation3 + $0x8] sm:$0xff] %vm534, 0.0
          %541 = vst.msk [vmem:[#allocation3 + $0x10] sm:$0xff] %vm534, 0.0
          %542 = vst.msk [vmem:[#allocation3 + $0x18] sm:$0xff] %vm534, 0.0
          %vm543 = vcmask 64512
          %544 = vst.msk [vmem:[#allocation4] sm:$0xff] %vm543, 0.0
          %545 = vst.msk [vmem:[#allocation4 + $0x8] sm:$0xff] %vm543, 0.0
          %546 = vst.msk [vmem:[#allocation4 + $0x10] sm:$0xff] %vm543, 0.0
          %547 = vst.msk [vmem:[#allocation4 + $0x18] sm:$0xff] %vm543, 0.0
        $region163: #{transformer_forward.11} parent=146 // pred_fallthru
          _
        %v548 = vld [vmem:[%s516] sm:$0x3]
        %vm549 = vnez %v548
        %v550 = vld [vmem:[%s450] sm:$0x1]
        %v551 = vld [vmem:[%s450 + $0x2] sm:$0x1]
        %v552 = vld [vmem:[%s450 + $0x4] sm:$0x1]
        %v553 = vld [vmem:[%s450 + $0x6] sm:$0x1]
        %v554 = vld [vmem:[%s450 + $0x8] sm:$0x1]
        %v555 = vld [vmem:[%s450 + $0xa] sm:$0x1]
        %v556 = vld [vmem:[%s450 + $0xc] sm:$0x1]
        %v557 = vld [vmem:[%s450 + $0xe] sm:$0x1]
        %v558 = vld [vmem:[%s457] sm:$0x1]
        %v559 = vld [vmem:[%s457 + $0x2] sm:$0x1]
        %v560 = vld [vmem:[%s457 + $0x4] sm:$0x1]
        %v561 = vld [vmem:[%s457 + $0x6] sm:$0x1]
        %v562 = vld [vmem:[%s457 + $0x8] sm:$0x1]
        %v563 = vld [vmem:[%s457 + $0xa] sm:$0x1]
        %v564 = vld [vmem:[%s457 + $0xc] sm:$0x1]
        %v565 = vld [vmem:[%s457 + $0xe] sm:$0x1]
        %v566 = vld [vmem:[%s464] sm:$0x1]
        %v567 = vld [vmem:[%s464 + $0x2] sm:$0x1]
        %v568 = vld [vmem:[%s464 + $0x4] sm:$0x1]
        %v569 = vld [vmem:[%s464 + $0x6] sm:$0x1]
        %v570 = vld [vmem:[%s464 + $0x8] sm:$0x1]
        %v571 = vld [vmem:[%s464 + $0xa] sm:$0x1]
        %v572 = vld [vmem:[%s464 + $0xc] sm:$0x1]
        %v573 = vld [vmem:[%s464 + $0xe] sm:$0x1]
        %v583 = vunpack.c.l.s4 1983009808
        %v584 = vunpack.c.0.s8 %v583
        %v585 = vlaneseq
        %v586 = vshrl.u32 %v585, 7
        %v587 = vsub.s32 %v584, %v586
        %v588 = vrot.slane %v550, %v587
        %v590 = vunpack.c.l.s4 1983009808
        %v591 = vunpack.c.0.s8 %v590
        %v592 = vlaneseq
        %v593 = vshrl.u32 %v592, 7
        %v594 = vsub.s32 %v591, %v593
        %v595 = vrot.slane %v551, %v594
        %v597 = vunpack.c.l.s4 1983009808
        %v598 = vunpack.c.0.s8 %v597
        %v599 = vlaneseq
        %v600 = vshrl.u32 %v599, 7
        %v601 = vsub.s32 %v598, %v600
        %v602 = vrot.slane %v552, %v601
        %v604 = vunpack.c.l.s4 1983009808
        %v605 = vunpack.c.0.s8 %v604
        %v606 = vlaneseq
        %v607 = vshrl.u32 %v606, 7
        %v608 = vsub.s32 %v605, %v607
        %v609 = vrot.slane %v553, %v608
        %v611 = vunpack.c.l.s4 1983009808
        %v612 = vunpack.c.0.s8 %v611
        %v613 = vlaneseq
        %v614 = vshrl.u32 %v613, 7
        %v615 = vsub.s32 %v612, %v614
        %v616 = vrot.slane %v554, %v615
        %v618 = vunpack.c.l.s4 1983009808
        %v619 = vunpack.c.0.s8 %v618
        %v620 = vlaneseq
        %v621 = vshrl.u32 %v620, 7
        %v622 = vsub.s32 %v619, %v621
        %v623 = vrot.slane %v555, %v622
        %v625 = vunpack.c.l.s4 1983009808
        %v626 = vunpack.c.0.s8 %v625
        %v627 = vlaneseq
        %v628 = vshrl.u32 %v627, 7
        %v629 = vsub.s32 %v626, %v628
        %v630 = vrot.slane %v556, %v629
        %v632 = vunpack.c.l.s4 1983009808
        %v633 = vunpack.c.0.s8 %v632
        %v634 = vlaneseq
        %v635 = vshrl.u32 %v634, 7
        %v636 = vsub.s32 %v633, %v635
        %v637 = vrot.slane %v557, %v636
        %v638 = vunpack.c.l.b16 %v588
        %v639 = vunpack.c.l.b16 %v595
        %v640 = vunpack.c.l.b16 %v602
        %v641 = vunpack.c.l.b16 %v609
        %v642 = vunpack.c.l.b16 %v616
        %v643 = vunpack.c.l.b16 %v623
        %v644 = vunpack.c.l.b16 %v630
        %v645 = vunpack.c.l.b16 %v637
        %v646 = vrot.slane %v639, 7
        %vm647 = vcmask 1041409
        %v648 = vsel %vm647, %v646, %v638
        %v649 = vrot.slane %v640, 6
        %vm650 = vcmask 1042434
        %v651 = vsel %vm650, %v649, %v648
        %v652 = vrot.slane %v641, 5
        %vm653 = vcmask 1043459
        %v654 = vsel %vm653, %v652, %v651
        %v655 = vrot.slane %v642, 4
        %vm656 = vcmask 1044484
        %v657 = vsel %vm656, %v655, %v654
        %v658 = vrot.slane %v643, 3
        %vm659 = vcmask 1045509
        %v660 = vsel %vm659, %v658, %v657
        %v661 = vrot.slane %v644, 2
        %vm662 = vcmask 1046534
        %v663 = vsel %vm662, %v661, %v660
        %v664 = vrot.slane %v645, 1
        %vm665 = vcmask 1047559
        %v666 = vsel %vm665, %v664, %v663
        %v667 = vpack.c.b16 %v666, %v666
        %v677 = vunpack.c.l.s4 1983009808
        %v678 = vunpack.c.0.s8 %v677
        %v679 = vlaneseq
        %v680 = vshrl.u32 %v679, 7
        %v681 = vsub.s32 %v678, %v680
        %v682 = vrot.slane %v558, %v681
        %v684 = vunpack.c.l.s4 1983009808
        %v685 = vunpack.c.0.s8 %v684
        %v686 = vlaneseq
        %v687 = vshrl.u32 %v686, 7
        %v688 = vsub.s32 %v685, %v687
        %v689 = vrot.slane %v559, %v688
        %v691 = vunpack.c.l.s4 1983009808
        %v692 = vunpack.c.0.s8 %v691
        %v693 = vlaneseq
        %v694 = vshrl.u32 %v693, 7
        %v695 = vsub.s32 %v692, %v694
        %v696 = vrot.slane %v560, %v695
        %v698 = vunpack.c.l.s4 1983009808
        %v699 = vunpack.c.0.s8 %v698
        %v700 = vlaneseq
        %v701 = vshrl.u32 %v700, 7
        %v702 = vsub.s32 %v699, %v701
        %v703 = vrot.slane %v561, %v702
        %v705 = vunpack.c.l.s4 1983009808
        %v706 = vunpack.c.0.s8 %v705
        %v707 = vlaneseq
        %v708 = vshrl.u32 %v707, 7
        %v709 = vsub.s32 %v706, %v708
        %v710 = vrot.slane %v562, %v709
        %v712 = vunpack.c.l.s4 1983009808
        %v713 = vunpack.c.0.s8 %v712
        %v714 = vlaneseq
        %v715 = vshrl.u32 %v714, 7
        %v716 = vsub.s32 %v713, %v715
        %v717 = vrot.slane %v563, %v716
        %v719 = vunpack.c.l.s4 1983009808
        %v720 = vunpack.c.0.s8 %v719
        %v721 = vlaneseq
        %v722 = vshrl.u32 %v721, 7
        %v723 = vsub.s32 %v720, %v722
        %v724 = vrot.slane %v564, %v723
        %v726 = vunpack.c.l.s4 1983009808
        %v727 = vunpack.c.0.s8 %v726
        %v728 = vlaneseq
        %v729 = vshrl.u32 %v728, 7
        %v730 = vsub.s32 %v727, %v729
        %v731 = vrot.slane %v565, %v730
        %v732 = vunpack.c.l.b16 %v682
        %v733 = vunpack.c.l.b16 %v689
        %v734 = vunpack.c.l.b16 %v696
        %v735 = vunpack.c.l.b16 %v703
        %v736 = vunpack.c.l.b16 %v710
        %v737 = vunpack.c.l.b16 %v717
        %v738 = vunpack.c.l.b16 %v724
        %v739 = vunpack.c.l.b16 %v731
        %v740 = vrot.slane %v733, 7
        %v741 = vsel %vm647, %v740, %v732
        %v742 = vrot.slane %v734, 6
        %v743 = vsel %vm650, %v742, %v741
        %v744 = vrot.slane %v735, 5
        %v745 = vsel %vm653, %v744, %v743
        %v746 = vrot.slane %v736, 4
        %v747 = vsel %vm656, %v746, %v745
        %v748 = vrot.slane %v737, 3
        %v749 = vsel %vm659, %v748, %v747
        %v750 = vrot.slane %v738, 2
        %v751 = vsel %vm662, %v750, %v749
        %v752 = vrot.slane %v739, 1
        %v753 = vsel %vm665, %v752, %v751
        %v754 = vpack.c.b16 %v753, %v753
        %vm755 = vcmask 64512
        %v757 = vsel %vm755, %v667, 0
        %v760 = vsel %vm755, %v754, 0
        %762 = vmatprep.subr.bf16.mxu0 0
        %763 = vmatpush1.bf16.xpose.msra.mxu0 %v760
        %764 = vmatprep.subr.bf16.mxu0 0
        %765 = vmatpush1.bf16.xpose.msra.mxu0 0
        %766 = vmatprep.subr.bf16.mxu0 0
        %767 = vmatpush1.bf16.xpose.msra.mxu0 0
        %768 = vmatprep.subr.bf16.mxu0 0
        %769 = vmatpush1.bf16.xpose.msra.mxu0 0
        %770 = vmatprep.subr.bf16.mxu0 0
        %771 = vmatpush1.bf16.xpose.msra.mxu0 0
        %772 = vmatprep.subr.bf16.mxu0 0
        %773 = vmatpush1.bf16.xpose.msra.mxu0 0
        %774 = vmatprep.subr.bf16.mxu0 0
        %775 = vmatpush1.bf16.xpose.msra.mxu0 0
        %776 = vmatprep.subr.bf16.mxu0 0
        %777 = vmatpush1.bf16.xpose.msra.mxu0 0
        %778 = vmatprep.subr.bf16.mxu0 0
        %779 = vmatpush1.bf16.xpose.msra.mxu0 0
        %780 = vmatprep.subr.bf16.mxu0 0
        %781 = vmatpush1.bf16.xpose.msra.mxu0 0
        %782 = vmatprep.subr.bf16.mxu0 0
        %783 = vmatpush1.bf16.xpose.msra.mxu0 0
        %784 = vmatprep.subr.bf16.mxu0 0
        %785 = vmatpush1.bf16.xpose.msra.mxu0 0
        %786 = vmatprep.subr.bf16.mxu0 0
        %787 = vmatpush1.bf16.xpose.msra.mxu0 0
        %788 = vmatprep.subr.bf16.mxu0 0
        %789 = vmatpush1.bf16.xpose.msra.mxu0 0
        %790 = vmatprep.subr.bf16.mxu0 0
        %791 = vmatpush1.bf16.xpose.msra.mxu0 0
        %792 = vmatprep.subr.bf16.mxu0 0
        %793 = vmatpush1.bf16.xpose.msra.mxu0 0
        %794 = vmatprep.mubr.bf16.mxu0 0
        %795 = vmatmul.mubr.bf16.gmra.mrb[0].mxu0 %v757
        %v796 = vpop.f32.mrb[0].mxu0
        %v797 = vadd.f32 0.0, %v796
        %v798 = vpop.f32.mrb[0].mxu0
        %v799 = vpop.f32.mrb[0].mxu0
        %v800 = vpop.f32.mrb[0].mxu0
        %801 = vdwg.mxu0
        %v802 = vmul.f32 %v797, 0.35355338
        %v803 = vsel %vm549, 16843009, 0
        %v804 = vunpack.c.0.s8 %v803
        %vm805 = vcmp.ne.s32.totalorder %v804, 0
        %v806 = vsel %vm805, %v802, -1e+30
        %v807 = vld [vmem:[#allocation2] sm:$0xff]
        %v808 = vsel %vm755, %v806, -inf
        %809 = vmax.xlane.f32.xlu0 %v808
        %v810 = vpop.xlane.xlu0 %809
        %v811 = vmax.f32 %v807, %v810
        %v812 = vsub.f32 %v807, %v811
        %v813 = vmul.f32 %v812, 1.442695
        %v814 = vpow.pop %v813
        %816 = vset.pattern.permute.xlu0 0
        %817 = vperm.xlu0 %816, %v811
        %v818 = vpop.permute.xlu0 %817
        %v820 = vsub.f32 %v806, %v818
        %v821 = vmul.f32 %v820, 1.442695
        %v822 = vpow.pop %v821
        %v823 = vsel %vm805, %v822, 0.0
        %v824 = vld [vmem:[#allocation3] sm:$0xff]
        %v825 = vmul.f32 %v814, %v824
        %v826 = vsel %vm755, %v823, 0.0
        %827 = vadd.xlane.f32.xlu0 %v826
        %v828 = vpop.xlane.xlu0 %827
        %v829 = vadd.f32 %v825, %v828
        %vm830 = vcmask 7168
        %831 = vst.msk [vmem:[#allocation3] sm:$0xff] %vm830, %v829
        %v832 = vld [vmem:[#allocation4] sm:$0xff]
        %834 = vset.pattern.permute.xlu0 0
        %835 = vperm.xlu0 %834, %v814
        %v836 = vpop.permute.xlu0 %835
        %v838 = vmul.f32 %v836, %v832
        %v839 = vpack.c.bf16 %v823, %v823
        %v849 = vunpack.c.l.s4 1983009808
        %v850 = vunpack.c.0.s8 %v849
        %v851 = vlaneseq
        %v852 = vshrl.u32 %v851, 7
        %v853 = vsub.s32 %v850, %v852
        %v854 = vrot.slane %v566, %v853
        %v856 = vunpack.c.l.s4 1983009808
        %v857 = vunpack.c.0.s8 %v856
        %v858 = vlaneseq
        %v859 = vshrl.u32 %v858, 7
        %v860 = vsub.s32 %v857, %v859
        %v861 = vrot.slane %v567, %v860
        %v863 = vunpack.c.l.s4 1983009808
        %v864 = vunpack.c.0.s8 %v863
        %v865 = vlaneseq
        %v866 = vshrl.u32 %v865, 7
        %v867 = vsub.s32 %v864, %v866
        %v868 = vrot.slane %v568, %v867
        %v870 = vunpack.c.l.s4 1983009808
        %v871 = vunpack.c.0.s8 %v870
        %v872 = vlaneseq
        %v873 = vshrl.u32 %v872, 7
        %v874 = vsub.s32 %v871, %v873
        %v875 = vrot.slane %v569, %v874
        %v877 = vunpack.c.l.s4 1983009808
        %v878 = vunpack.c.0.s8 %v877
        %v879 = vlaneseq
        %v880 = vshrl.u32 %v879, 7
        %v881 = vsub.s32 %v878, %v880
        %v882 = vrot.slane %v570, %v881
        %v884 = vunpack.c.l.s4 1983009808
        %v885 = vunpack.c.0.s8 %v884
        %v886 = vlaneseq
        %v887 = vshrl.u32 %v886, 7
        %v888 = vsub.s32 %v885, %v887
        %v889 = vrot.slane %v571, %v888
        %v891 = vunpack.c.l.s4 1983009808
        %v892 = vunpack.c.0.s8 %v891
        %v893 = vlaneseq
        %v894 = vshrl.u32 %v893, 7
        %v895 = vsub.s32 %v892, %v894
        %v896 = vrot.slane %v572, %v895
        %v898 = vunpack.c.l.s4 1983009808
        %v899 = vunpack.c.0.s8 %v898
        %v900 = vlaneseq
        %v901 = vshrl.u32 %v900, 7
        %v902 = vsub.s32 %v899, %v901
        %v903 = vrot.slane %v573, %v902
        %v904 = vunpack.c.l.b16 %v854
        %v905 = vunpack.c.l.b16 %v861
        %v906 = vunpack.c.l.b16 %v868
        %v907 = vunpack.c.l.b16 %v875
        %v908 = vunpack.c.l.b16 %v882
        %v909 = vunpack.c.l.b16 %v889
        %v910 = vunpack.c.l.b16 %v896
        %v911 = vunpack.c.l.b16 %v903
        %v912 = vrot.slane %v905, 7
        %v913 = vsel %vm647, %v912, %v904
        %v914 = vrot.slane %v906, 6
        %v915 = vsel %vm650, %v914, %v913
        %v916 = vrot.slane %v907, 5
        %v917 = vsel %vm653, %v916, %v915
        %v918 = vrot.slane %v908, 4
        %v919 = vsel %vm656, %v918, %v917
        %v920 = vrot.slane %v909, 3
        %v921 = vsel %vm659, %v920, %v919
        %v922 = vrot.slane %v910, 2
        %v923 = vsel %vm662, %v922, %v921
        %v924 = vrot.slane %v911, 1
        %v925 = vsel %vm665, %v924, %v923
        %v926 = vpack.c.b16 %v925, %v925
        %v928 = vsel %vm755, %v839, 0
        %vm930 = vcmask 1043456
        %v932 = vsel %vm930, %v926, 0
        %934 = vmatprep.subr.bf16.mxu0 0
        %935 = vmatpush1.bf16.msra.mxu0 %v932
        %936 = vmatprep.subr.bf16.mxu0 0
        %937 = vmatpush1.bf16.msra.mxu0 0
        %938 = vmatprep.subr.bf16.mxu0 0
        %939 = vmatpush1.bf16.msra.mxu0 0
        %940 = vmatprep.subr.bf16.mxu0 0
        %941 = vmatpush1.bf16.msra.mxu0 0
        %942 = vmatprep.subr.bf16.mxu0 0
        %943 = vmatpush1.bf16.msra.mxu0 0
        %944 = vmatprep.subr.bf16.mxu0 0
        %945 = vmatpush1.bf16.msra.mxu0 0
        %946 = vmatprep.subr.bf16.mxu0 0
        %947 = vmatpush1.bf16.msra.mxu0 0
        %948 = vmatprep.subr.bf16.mxu0 0
        %949 = vmatpush1.bf16.msra.mxu0 0
        %950 = vmatprep.subr.bf16.mxu0 0
        %951 = vmatpush1.bf16.msra.mxu0 0
        %952 = vmatprep.subr.bf16.mxu0 0
        %953 = vmatpush1.bf16.msra.mxu0 0
        %954 = vmatprep.subr.bf16.mxu0 0
        %955 = vmatpush1.bf16.msra.mxu0 0
        %956 = vmatprep.subr.bf16.mxu0 0
        %957 = vmatpush1.bf16.msra.mxu0 0
        %958 = vmatprep.subr.bf16.mxu0 0
        %959 = vmatpush1.bf16.msra.mxu0 0
        %960 = vmatprep.subr.bf16.mxu0 0
        %961 = vmatpush1.bf16.msra.mxu0 0
        %962 = vmatprep.subr.bf16.mxu0 0
        %963 = vmatpush1.bf16.msra.mxu0 0
        %964 = vmatprep.subr.bf16.mxu0 0
        %965 = vmatpush1.bf16.msra.mxu0 0
        %966 = vmatprep.mubr.bf16.mxu0 0
        %967 = vmatmul.mubr.bf16.gmra.mrb[0].mxu0 %v928
        %v968 = vpop.f32.mrb[0].mxu0
        %v969 = vadd.f32 0.0, %v968
        %v970 = vpop.f32.mrb[0].mxu0
        %v971 = vpop.f32.mrb[0].mxu0
        %v972 = vpop.f32.mrb[0].mxu0
        %973 = vdwg.mxu0
        %v974 = vadd.f32 %v838, %v969
        %975 = vst.msk [vmem:[#allocation4] sm:$0xff] %vm755, %v974
        %976 = vst.msk [vmem:[#allocation2] sm:$0xff] %vm830, %v811
        %v977 = vld [vmem:[%s450] sm:$0x1]
        %v978 = vld [vmem:[%s450 + $0x2] sm:$0x1]
        %v979 = vld [vmem:[%s450 + $0x4] sm:$0x1]
        %v980 = vld [vmem:[%s450 + $0x6] sm:$0x1]
        %v981 = vld [vmem:[%s450 + $0x8] sm:$0x1]
        %v982 = vld [vmem:[%s450 + $0xa] sm:$0x1]
        %v983 = vld [vmem:[%s450 + $0xc] sm:$0x1]
        %v984 = vld [vmem:[%s450 + $0xe] sm:$0x1]
        %v985 = vld [vmem:[%s457] sm:$0x1]
        %v986 = vld [vmem:[%s457 + $0x2] sm:$0x1]
        %v987 = vld [vmem:[%s457 + $0x4] sm:$0x1]
        %v988 = vld [vmem:[%s457 + $0x6] sm:$0x1]
        %v989 = vld [vmem:[%s457 + $0x8] sm:$0x1]
        %v990 = vld [vmem:[%s457 + $0xa] sm:$0x1]
        %v991 = vld [vmem:[%s457 + $0xc] sm:$0x1]
        %v992 = vld [vmem:[%s457 + $0xe] sm:$0x1]
        %v993 = vld [vmem:[%s464] sm:$0x1]
        %v994 = vld [vmem:[%s464 + $0x2] sm:$0x1]
        %v995 = vld [vmem:[%s464 + $0x4] sm:$0x1]
        %v996 = vld [vmem:[%s464 + $0x6] sm:$0x1]
        %v997 = vld [vmem:[%s464 + $0x8] sm:$0x1]
        %v998 = vld [vmem:[%s464 + $0xa] sm:$0x1]
        %v999 = vld [vmem:[%s464 + $0xc] sm:$0x1]
        %v1000 = vld [vmem:[%s464 + $0xe] sm:$0x1]
        %v1010 = vunpack.c.l.s4 1983009808
        %v1011 = vunpack.c.0.s8 %v1010
        %v1012 = vlaneseq
        %v1013 = vshrl.u32 %v1012, 7
        %v1014 = vsub.s32 %v1011, %v1013
        %v1015 = vrot.slane %v977, %v1014
        %v1017 = vunpack.c.l.s4 1983009808
        %v1018 = vunpack.c.0.s8 %v1017
        %v1019 = vlaneseq
        %v1020 = vshrl.u32 %v1019, 7
        %v1021 = vsub.s32 %v1018, %v1020
        %v1022 = vrot.slane %v978, %v1021
        %v1024 = vunpack.c.l.s4 1983009808
        %v1025 = vunpack.c.0.s8 %v1024
        %v1026 = vlaneseq
        %v1027 = vshrl.u32 %v1026, 7
        %v1028 = vsub.s32 %v1025, %v1027
        %v1029 = vrot.slane %v979, %v1028
        %v1031 = vunpack.c.l.s4 1983009808
        %v1032 = vunpack.c.0.s8 %v1031
        %v1033 = vlaneseq
        %v1034 = vshrl.u32 %v1033, 7
        %v1035 = vsub.s32 %v1032, %v1034
        %v1036 = vrot.slane %v980, %v1035
        %v1038 = vunpack.c.l.s4 1983009808
        %v1039 = vunpack.c.0.s8 %v1038
        %v1040 = vlaneseq
        %v1041 = vshrl.u32 %v1040, 7
        %v1042 = vsub.s32 %v1039, %v1041
        %v1043 = vrot.slane %v981, %v1042
        %v1045 = vunpack.c.l.s4 1983009808
        %v1046 = vunpack.c.0.s8 %v1045
        %v1047 = vlaneseq
        %v1048 = vshrl.u32 %v1047, 7
        %v1049 = vsub.s32 %v1046, %v1048
        %v1050 = vrot.slane %v982, %v1049
        %v1052 = vunpack.c.l.s4 1983009808
        %v1053 = vunpack.c.0.s8 %v1052
        %v1054 = vlaneseq
        %v1055 = vshrl.u32 %v1054, 7
        %v1056 = vsub.s32 %v1053, %v1055
        %v1057 = vrot.slane %v983, %v1056
        %v1059 = vunpack.c.l.s4 1983009808
        %v1060 = vunpack.c.0.s8 %v1059
        %v1061 = vlaneseq
        %v1062 = vshrl.u32 %v1061, 7
        %v1063 = vsub.s32 %v1060, %v1062
        %v1064 = vrot.slane %v984, %v1063
        %v1065 = vunpack.c.l.b16 %v1015
        %v1066 = vunpack.c.l.b16 %v1022
        %v1067 = vunpack.c.l.b16 %v1029
        %v1068 = vunpack.c.l.b16 %v1036
        %v1069 = vunpack.c.l.b16 %v1043
        %v1070 = vunpack.c.l.b16 %v1050
        %v1071 = vunpack.c.l.b16 %v1057
        %v1072 = vunpack.c.l.b16 %v1064
        %v1073 = vrot.slane %v1065, 1
        %v1074 = vsel %vm647, %v1066, %v1073
        %v1075 = vrot.slane %v1067, 7
        %v1076 = vsel %vm650, %v1075, %v1074
        %v1077 = vrot.slane %v1068, 6
        %v1078 = vsel %vm653, %v1077, %v1076
        %v1079 = vrot.slane %v1069, 5
        %v1080 = vsel %vm656, %v1079, %v1078
        %v1081 = vrot.slane %v1070, 4
        %v1082 = vsel %vm659, %v1081, %v1080
        %v1083 = vrot.slane %v1071, 3
        %v1084 = vsel %vm662, %v1083, %v1082
        %v1085 = vrot.slane %v1072, 2
        %v1086 = vsel %vm665, %v1085, %v1084
        %v1087 = vpack.c.b16 %v1086, %v1086
        %v1097 = vunpack.c.l.s4 1983009808
        %v1098 = vunpack.c.0.s8 %v1097
        %v1099 = vlaneseq
        %v1100 = vshrl.u32 %v1099, 7
        %v1101 = vsub.s32 %v1098, %v1100
        %v1102 = vrot.slane %v985, %v1101
        %v1104 = vunpack.c.l.s4 1983009808
        %v1105 = vunpack.c.0.s8 %v1104
        %v1106 = vlaneseq
        %v1107 = vshrl.u32 %v1106, 7
        %v1108 = vsub.s32 %v1105, %v1107
        %v1109 = vrot.slane %v986, %v1108
        %v1111 = vunpack.c.l.s4 1983009808
        %v1112 = vunpack.c.0.s8 %v1111
        %v1113 = vlaneseq
        %v1114 = vshrl.u32 %v1113, 7
        %v1115 = vsub.s32 %v1112, %v1114
        %v1116 = vrot.slane %v987, %v1115
        %v1118 = vunpack.c.l.s4 1983009808
        %v1119 = vunpack.c.0.s8 %v1118
        %v1120 = vlaneseq
        %v1121 = vshrl.u32 %v1120, 7
        %v1122 = vsub.s32 %v1119, %v1121
        %v1123 = vrot.slane %v988, %v1122
        %v1125 = vunpack.c.l.s4 1983009808
        %v1126 = vunpack.c.0.s8 %v1125
        %v1127 = vlaneseq
        %v1128 = vshrl.u32 %v1127, 7
        %v1129 = vsub.s32 %v1126, %v1128
        %v1130 = vrot.slane %v989, %v1129
        %v1132 = vunpack.c.l.s4 1983009808
        %v1133 = vunpack.c.0.s8 %v1132
        %v1134 = vlaneseq
        %v1135 = vshrl.u32 %v1134, 7
        %v1136 = vsub.s32 %v1133, %v1135
        %v1137 = vrot.slane %v990, %v1136
        %v1139 = vunpack.c.l.s4 1983009808
        %v1140 = vunpack.c.0.s8 %v1139
        %v1141 = vlaneseq
        %v1142 = vshrl.u32 %v1141, 7
        %v1143 = vsub.s32 %v1140, %v1142
        %v1144 = vrot.slane %v991, %v1143
        %v1146 = vunpack.c.l.s4 1983009808
        %v1147 = vunpack.c.0.s8 %v1146
        %v1148 = vlaneseq
        %v1149 = vshrl.u32 %v1148, 7
        %v1150 = vsub.s32 %v1147, %v1149
        %v1151 = vrot.slane %v992, %v1150
        %v1152 = vunpack.c.l.b16 %v1102
        %v1153 = vunpack.c.l.b16 %v1109
        %v1154 = vunpack.c.l.b16 %v1116
        %v1155 = vunpack.c.l.b16 %v1123
        %v1156 = vunpack.c.l.b16 %v1130
        %v1157 = vunpack.c.l.b16 %v1137
        %v1158 = vunpack.c.l.b16 %v1144
        %v1159 = vunpack.c.l.b16 %v1151
        %v1160 = vrot.slane %v1152, 1
        %v1161 = vsel %vm647, %v1153, %v1160
        %v1162 = vrot.slane %v1154, 7
        %v1163 = vsel %vm650, %v1162, %v1161
        %v1164 = vrot.slane %v1155, 6
        %v1165 = vsel %vm653, %v1164, %v1163
        %v1166 = vrot.slane %v1156, 5
        %v1167 = vsel %vm656, %v1166, %v1165
        %v1168 = vrot.slane %v1157, 4
        %v1169 = vsel %vm659, %v1168, %v1167
        %v1170 = vrot.slane %v1158, 3
        %v1171 = vsel %vm662, %v1170, %v1169
        %v1172 = vrot.slane %v1159, 2
        %v1173 = vsel %vm665, %v1172, %v1171
        %v1174 = vpack.c.b16 %v1173, %v1173
        %v1176 = vsel %vm755, %v1087, 0
        %v1179 = vsel %vm755, %v1174, 0
        %1181 = vmatprep.subr.bf16.mxu0 0
        %1182 = vmatpush1.bf16.xpose.msra.mxu0 %v1179
        %1183 = vmatprep.subr.bf16.mxu0 0
        %1184 = vmatpush1.bf16.xpose.msra.mxu0 0
        %1185 = vmatprep.subr.bf16.mxu0 0
        %1186 = vmatpush1.bf16.xpose.msra.mxu0 0
        %1187 = vmatprep.subr.bf16.mxu0 0
        %1188 = vmatpush1.bf16.xpose.msra.mxu0 0
        %1189 = vmatprep.subr.bf16.mxu0 0
        %1190 = vmatpush1.bf16.xpose.msra.mxu0 0
        %1191 = vmatprep.subr.bf16.mxu0 0
        %1192 = vmatpush1.bf16.xpose.msra.mxu0 0
        %1193 = vmatprep.subr.bf16.mxu0 0
        %1194 = vmatpush1.bf16.xpose.msra.mxu0 0
        %1195 = vmatprep.subr.bf16.mxu0 0
        %1196 = vmatpush1.bf16.xpose.msra.mxu0 0
        %1197 = vmatprep.subr.bf16.mxu0 0
        %1198 = vmatpush1.bf16.xpose.msra.mxu0 0
        %1199 = vmatprep.subr.bf16.mxu0 0
        %1200 = vmatpush1.bf16.xpose.msra.mxu0 0
        %1201 = vmatprep.subr.bf16.mxu0 0
        %1202 = vmatpush1.bf16.xpose.msra.mxu0 0
        %1203 = vmatprep.subr.bf16.mxu0 0
        %1204 = vmatpush1.bf16.xpose.msra.mxu0 0
        %1205 = vmatprep.subr.bf16.mxu0 0
        %1206 = vmatpush1.bf16.xpose.msra.mxu0 0
        %1207 = vmatprep.subr.bf16.mxu0 0
        %1208 = vmatpush1.bf16.xpose.msra.mxu0 0
        %1209 = vmatprep.subr.bf16.mxu0 0
        %1210 = vmatpush1.bf16.xpose.msra.mxu0 0
        %1211 = vmatprep.subr.bf16.mxu0 0
        %1212 = vmatpush1.bf16.xpose.msra.mxu0 0
        %1213 = vmatprep.mubr.bf16.mxu0 0
        %1214 = vmatmul.mubr.bf16.gmra.mrb[0].mxu0 %v1176
        %v1215 = vpop.f32.mrb[0].mxu0
        %v1216 = vadd.f32 0.0, %v1215
        %v1217 = vpop.f32.mrb[0].mxu0
        %v1218 = vpop.f32.mrb[0].mxu0
        %v1219 = vpop.f32.mrb[0].mxu0
        %1220 = vdwg.mxu0
        %v1221 = vmul.f32 %v1216, 0.35355338
        %v1222 = vsel %vm805, %v1221, -1e+30
        %s1223 = scalar_lea.vmem [#allocation2], 8
        %v1224 = vld [vmem:[%s1223] sm:$0xff]
        %v1225 = vsel %vm755, %v1222, -inf
        %1226 = vmax.xlane.f32.xlu0 %v1225
        %v1227 = vpop.xlane.xlu0 %1226
        %v1228 = vmax.f32 %v1224, %v1227
        %v1229 = vsub.f32 %v1224, %v1228
        %v1230 = vmul.f32 %v1229, 1.442695
        %v1231 = vpow.pop %v1230
        %1233 = vset.pattern.permute.xlu0 0
        %1234 = vperm.xlu0 %1233, %v1228
        %v1235 = vpop.permute.xlu0 %1234
        %v1237 = vsub.f32 %v1222, %v1235
        %v1238 = vmul.f32 %v1237, 1.442695
        %v1239 = vpow.pop %v1238
        %v1240 = vsel %vm805, %v1239, 0.0
        %s1241 = scalar_lea.vmem [#allocation3], 8
        %v1242 = vld [vmem:[%s1241] sm:$0xff]
        %v1243 = vmul.f32 %v1231, %v1242
        %v1244 = vsel %vm755, %v1240, 0.0
        %1245 = vadd.xlane.f32.xlu0 %v1244
        %v1246 = vpop.xlane.xlu0 %1245
        %v1247 = vadd.f32 %v1243, %v1246
        %1248 = vst.msk [vmem:[%s1241] sm:$0xff] %vm830, %v1247
        %s1249 = scalar_lea.vmem [#allocation4], 8
        %v1250 = vld [vmem:[%s1249] sm:$0xff]
        %1252 = vset.pattern.permute.xlu0 0
        %1253 = vperm.xlu0 %1252, %v1231
        %v1254 = vpop.permute.xlu0 %1253
        %v1256 = vmul.f32 %v1254, %v1250
        %v1257 = vpack.c.bf16 %v1240, %v1240
        %v1267 = vunpack.c.l.s4 1983009808
        %v1268 = vunpack.c.0.s8 %v1267
        %v1269 = vlaneseq
        %v1270 = vshrl.u32 %v1269, 7
        %v1271 = vsub.s32 %v1268, %v1270
        %v1272 = vrot.slane %v993, %v1271
        %v1274 = vunpack.c.l.s4 1983009808
        %v1275 = vunpack.c.0.s8 %v1274
        %v1276 = vlaneseq
        %v1277 = vshrl.u32 %v1276, 7
        %v1278 = vsub.s32 %v1275, %v1277
        %v1279 = vrot.slane %v994, %v1278
        %v1281 = vunpack.c.l.s4 1983009808
        %v1282 = vunpack.c.0.s8 %v1281
        %v1283 = vlaneseq
        %v1284 = vshrl.u32 %v1283, 7
        %v1285 = vsub.s32 %v1282, %v1284
        %v1286 = vrot.slane %v995, %v1285
        %v1288 = vunpack.c.l.s4 1983009808
        %v1289 = vunpack.c.0.s8 %v1288
        %v1290 = vlaneseq
        %v1291 = vshrl.u32 %v1290, 7
        %v1292 = vsub.s32 %v1289, %v1291
        %v1293 = vrot.slane %v996, %v1292
        %v1295 = vunpack.c.l.s4 1983009808
        %v1296 = vunpack.c.0.s8 %v1295
        %v1297 = vlaneseq
        %v1298 = vshrl.u32 %v1297, 7
        %v1299 = vsub.s32 %v1296, %v1298
        %v1300 = vrot.slane %v997, %v1299
        %v1302 = vunpack.c.l.s4 1983009808
        %v1303 = vunpack.c.0.s8 %v1302
        %v1304 = vlaneseq
        %v1305 = vshrl.u32 %v1304, 7
        %v1306 = vsub.s32 %v1303, %v1305
        %v1307 = vrot.slane %v998, %v1306
        %v1309 = vunpack.c.l.s4 1983009808
        %v1310 = vunpack.c.0.s8 %v1309
        %v1311 = vlaneseq
        %v1312 = vshrl.u32 %v1311, 7
        %v1313 = vsub.s32 %v1310, %v1312
        %v1314 = vrot.slane %v999, %v1313
        %v1316 = vunpack.c.l.s4 1983009808
        %v1317 = vunpack.c.0.s8 %v1316
        %v1318 = vlaneseq
        %v1319 = vshrl.u32 %v1318, 7
        %v1320 = vsub.s32 %v1317, %v1319
        %v1321 = vrot.slane %v1000, %v1320
        %v1322 = vunpack.c.l.b16 %v1272
        %v1323 = vunpack.c.l.b16 %v1279
        %v1324 = vunpack.c.l.b16 %v1286
        %v1325 = vunpack.c.l.b16 %v1293
        %v1326 = vunpack.c.l.b16 %v1300
        %v1327 = vunpack.c.l.b16 %v1307
        %v1328 = vunpack.c.l.b16 %v1314
        %v1329 = vunpack.c.l.b16 %v1321
        %v1330 = vrot.slane %v1322, 1
        %v1331 = vsel %vm647, %v1323, %v1330
        %v1332 = vrot.slane %v1324, 7
        %v1333 = vsel %vm650, %v1332, %v1331
        %v1334 = vrot.slane %v1325, 6
        %v1335 = vsel %vm653, %v1334, %v1333
        %v1336 = vrot.slane %v1326, 5
        %v1337 = vsel %vm656, %v1336, %v1335
        %v1338 = vrot.slane %v1327, 4
        %v1339 = vsel %vm659, %v1338, %v1337
        %v1340 = vrot.slane %v1328, 3
        %v1341 = vsel %vm662, %v1340, %v1339
        %v1342 = vrot.slane %v1329, 2
        %v1343 = vsel %vm665, %v1342, %v1341
        %v1344 = vpack.c.b16 %v1343, %v1343
        %v1346 = vsel %vm755, %v1257, 0
        %v1349 = vsel %vm930, %v1344, 0
        %1351 = vmatprep.subr.bf16.mxu0 0
        %1352 = vmatpush1.bf16.msra.mxu0 %v1349
        %1353 = vmatprep.subr.bf16.mxu0 0
        %1354 = vmatpush1.bf16.msra.mxu0 0
        %1355 = vmatprep.subr.bf16.mxu0 0
        %1356 = vmatpush1.bf16.msra.mxu0 0
        %1357 = vmatprep.subr.bf16.mxu0 0
        %1358 = vmatpush1.bf16.msra.mxu0 0
        %1359 = vmatprep.subr.bf16.mxu0 0
        %1360 = vmatpush1.bf16.msra.mxu0 0
        %1361 = vmatprep.subr.bf16.mxu0 0
        %1362 = vmatpush1.bf16.msra.mxu0 0
        %1363 = vmatprep.subr.bf16.mxu0 0
        %1364 = vmatpush1.bf16.msra.mxu0 0
        %1365 = vmatprep.subr.bf16.mxu0 0
        %1366 = vmatpush1.bf16.msra.mxu0 0
        %1367 = vmatprep.subr.bf16.mxu0 0
        %1368 = vmatpush1.bf16.msra.mxu0 0
        %1369 = vmatprep.subr.bf16.mxu0 0
        %1370 = vmatpush1.bf16.msra.mxu0 0
        %1371 = vmatprep.subr.bf16.mxu0 0
        %1372 = vmatpush1.bf16.msra.mxu0 0
        %1373 = vmatprep.subr.bf16.mxu0 0
        %1374 = vmatpush1.bf16.msra.mxu0 0
        %1375 = vmatprep.subr.bf16.mxu0 0
        %1376 = vmatpush1.bf16.msra.mxu0 0
        %1377 = vmatprep.subr.bf16.mxu0 0
        %1378 = vmatpush1.bf16.msra.mxu0 0
        %1379 = vmatprep.subr.bf16.mxu0 0
        %1380 = vmatpush1.bf16.msra.mxu0 0
        %1381 = vmatprep.subr.bf16.mxu0 0
        %1382 = vmatpush1.bf16.msra.mxu0 0
        %1383 = vmatprep.mubr.bf16.mxu0 0
        %1384 = vmatmul.mubr.bf16.gmra.mrb[0].mxu0 %v1346
        %v1385 = vpop.f32.mrb[0].mxu0
        %v1386 = vadd.f32 0.0, %v1385
        %v1387 = vpop.f32.mrb[0].mxu0
        %v1388 = vpop.f32.mrb[0].mxu0
        %v1389 = vpop.f32.mrb[0].mxu0
        %1390 = vdwg.mxu0
        %v1391 = vadd.f32 %v1256, %v1386
        %1392 = vst.msk [vmem:[%s1249] sm:$0xff] %vm755, %v1391
        %1393 = vst.msk [vmem:[%s1223] sm:$0xff] %vm830, %v1228
        %v1394 = vld [vmem:[%s450] sm:$0x2]
        %v1395 = vld [vmem:[%s450 + $0x2] sm:$0x2]
        %v1396 = vld [vmem:[%s450 + $0x4] sm:$0x2]
        %v1397 = vld [vmem:[%s450 + $0x6] sm:$0x2]
        %v1398 = vld [vmem:[%s450 + $0x8] sm:$0x2]
        %v1399 = vld [vmem:[%s450 + $0xa] sm:$0x2]
        %v1400 = vld [vmem:[%s450 + $0xc] sm:$0x2]
        %v1401 = vld [vmem:[%s450 + $0xe] sm:$0x2]
        %v1402 = vld [vmem:[%s457] sm:$0x2]
        %v1403 = vld [vmem:[%s457 + $0x2] sm:$0x2]
        %v1404 = vld [vmem:[%s457 + $0x4] sm:$0x2]
        %v1405 = vld [vmem:[%s457 + $0x6] sm:$0x2]
        %v1406 = vld [vmem:[%s457 + $0x8] sm:$0x2]
        %v1407 = vld [vmem:[%s457 + $0xa] sm:$0x2]
        %v1408 = vld [vmem:[%s457 + $0xc] sm:$0x2]
        %v1409 = vld [vmem:[%s457 + $0xe] sm:$0x2]
        %v1410 = vld [vmem:[%s464] sm:$0x2]
        %v1411 = vld [vmem:[%s464 + $0x2] sm:$0x2]
        %v1412 = vld [vmem:[%s464 + $0x4] sm:$0x2]
        %v1413 = vld [vmem:[%s464 + $0x6] sm:$0x2]
        %v1414 = vld [vmem:[%s464 + $0x8] sm:$0x2]
        %v1415 = vld [vmem:[%s464 + $0xa] sm:$0x2]
        %v1416 = vld [vmem:[%s464 + $0xc] sm:$0x2]
        %v1417 = vld [vmem:[%s464 + $0xe] sm:$0x2]
        %v1427 = vunpack.c.l.s4 1983009808
        %v1428 = vunpack.c.0.s8 %v1427
        %v1429 = vlaneseq
        %v1430 = vshrl.u32 %v1429, 7
        %v1431 = vsub.s32 %v1428, %v1430
        %v1432 = vrot.slane %v1394, %v1431
        %v1434 = vunpack.c.l.s4 1983009808
        %v1435 = vunpack.c.0.s8 %v1434
        %v1436 = vlaneseq
        %v1437 = vshrl.u32 %v1436, 7
        %v1438 = vsub.s32 %v1435, %v1437
        %v1439 = vrot.slane %v1395, %v1438
        %v1441 = vunpack.c.l.s4 1983009808
        %v1442 = vunpack.c.0.s8 %v1441
        %v1443 = vlaneseq
        %v1444 = vshrl.u32 %v1443, 7
        %v1445 = vsub.s32 %v1442, %v1444
        %v1446 = vrot.slane %v1396, %v1445
        %v1448 = vunpack.c.l.s4 1983009808
        %v1449 = vunpack.c.0.s8 %v1448
        %v1450 = vlaneseq
        %v1451 = vshrl.u32 %v1450, 7
        %v1452 = vsub.s32 %v1449, %v1451
        %v1453 = vrot.slane %v1397, %v1452
        %v1455 = vunpack.c.l.s4 1983009808
        %v1456 = vunpack.c.0.s8 %v1455
        %v1457 = vlaneseq
        %v1458 = vshrl.u32 %v1457, 7
        %v1459 = vsub.s32 %v1456, %v1458
        %v1460 = vrot.slane %v1398, %v1459
        %v1462 = vunpack.c.l.s4 1983009808
        %v1463 = vunpack.c.0.s8 %v1462
        %v1464 = vlaneseq
        %v1465 = vshrl.u32 %v1464, 7
        %v1466 = vsub.s32 %v1463, %v1465
        %v1467 = vrot.slane %v1399, %v1466
        %v1469 = vunpack.c.l.s4 1983009808
        %v1470 = vunpack.c.0.s8 %v1469
        %v1471 = vlaneseq
        %v1472 = vshrl.u32 %v1471, 7
        %v1473 = vsub.s32 %v1470, %v1472
        %v1474 = vrot.slane %v1400, %v1473
        %v1476 = vunpack.c.l.s4 1983009808
        %v1477 = vunpack.c.0.s8 %v1476
        %v1478 = vlaneseq
        %v1479 = vshrl.u32 %v1478, 7
        %v1480 = vsub.s32 %v1477, %v1479
        %v1481 = vrot.slane %v1401, %v1480
        %v1482 = vunpack.c.l.b16 %v1432
        %v1483 = vunpack.c.l.b16 %v1439
        %v1484 = vunpack.c.l.b16 %v1446
        %v1485 = vunpack.c.l.b16 %v1453
        %v1486 = vunpack.c.l.b16 %v1460
        %v1487 = vunpack.c.l.b16 %v1467
        %v1488 = vunpack.c.l.b16 %v1474
        %v1489 = vunpack.c.l.b16 %v1481
        %v1490 = vrot.slane %v1482, 2
        %v1491 = vrot.slane %v1483, 1
        %v1492 = vsel %vm647, %v1491, %v1490
        %v1493 = vsel %vm650, %v1484, %v1492
        %v1494 = vrot.slane %v1485, 7
        %v1495 = vsel %vm653, %v1494, %v1493
        %v1496 = vrot.slane %v1486, 6
        %v1497 = vsel %vm656, %v1496, %v1495
        %v1498 = vrot.slane %v1487, 5
        %v1499 = vsel %vm659, %v1498, %v1497
        %v1500 = vrot.slane %v1488, 4
        %v1501 = vsel %vm662, %v1500, %v1499
        %v1502 = vrot.slane %v1489, 3
        %v1503 = vsel %vm665, %v1502, %v1501
        %v1504 = vpack.c.b16 %v1503, %v1503
        %v1514 = vunpack.c.l.s4 1983009808
        %v1515 = vunpack.c.0.s8 %v1514
        %v1516 = vlaneseq
        %v1517 = vshrl.u32 %v1516, 7
        %v1518 = vsub.s32 %v1515, %v1517
        %v1519 = vrot.slane %v1402, %v1518
        %v1521 = vunpack.c.l.s4 1983009808
        %v1522 = vunpack.c.0.s8 %v1521
        %v1523 = vlaneseq
        %v1524 = vshrl.u32 %v1523, 7
        %v1525 = vsub.s32 %v1522, %v1524
        %v1526 = vrot.slane %v1403, %v1525
        %v1528 = vunpack.c.l.s4 1983009808
        %v1529 = vunpack.c.0.s8 %v1528
        %v1530 = vlaneseq
        %v1531 = vshrl.u32 %v1530, 7
        %v1532 = vsub.s32 %v1529, %v1531
        %v1533 = vrot.slane %v1404, %v1532
        %v1535 = vunpack.c.l.s4 1983009808
        %v1536 = vunpack.c.0.s8 %v1535
        %v1537 = vlaneseq
        %v1538 = vshrl.u32 %v1537, 7
        %v1539 = vsub.s32 %v1536, %v1538
        %v1540 = vrot.slane %v1405, %v1539
        %v1542 = vunpack.c.l.s4 1983009808
        %v1543 = vunpack.c.0.s8 %v1542
        %v1544 = vlaneseq
        %v1545 = vshrl.u32 %v1544, 7
        %v1546 = vsub.s32 %v1543, %v1545
        %v1547 = vrot.slane %v1406, %v1546
        %v1549 = vunpack.c.l.s4 1983009808
        %v1550 = vunpack.c.0.s8 %v1549
        %v1551 = vlaneseq
        %v1552 = vshrl.u32 %v1551, 7
        %v1553 = vsub.s32 %v1550, %v1552
        %v1554 = vrot.slane %v1407, %v1553
        %v1556 = vunpack.c.l.s4 1983009808
        %v1557 = vunpack.c.0.s8 %v1556
        %v1558 = vlaneseq
        %v1559 = vshrl.u32 %v1558, 7
        %v1560 = vsub.s32 %v1557, %v1559
        %v1561 = vrot.slane %v1408, %v1560
        %v1563 = vunpack.c.l.s4 1983009808
        %v1564 = vunpack.c.0.s8 %v1563
        %v1565 = vlaneseq
        %v1566 = vshrl.u32 %v1565, 7
        %v1567 = vsub.s32 %v1564, %v1566
        %v1568 = vrot.slane %v1409, %v1567
        %v1569 = vunpack.c.l.b16 %v1519
        %v1570 = vunpack.c.l.b16 %v1526
        %v1571 = vunpack.c.l.b16 %v1533
        %v1572 = vunpack.c.l.b16 %v1540
        %v1573 = vunpack.c.l.b16 %v1547
        %v1574 = vunpack.c.l.b16 %v1554
        %v1575 = vunpack.c.l.b16 %v1561
        %v1576 = vunpack.c.l.b16 %v1568
        %v1577 = vrot.slane %v1569, 2
        %v1578 = vrot.slane %v1570, 1
        %v1579 = vsel %vm647, %v1578, %v1577
        %v1580 = vsel %vm650, %v1571, %v1579
        %v1581 = vrot.slane %v1572, 7
        %v1582 = vsel %vm653, %v1581, %v1580
        %v1583 = vrot.slane %v1573, 6
        %v1584 = vsel %vm656, %v1583, %v1582
        %v1585 = vrot.slane %v1574, 5
        %v1586 = vsel %vm659, %v1585, %v1584
        %v1587 = vrot.slane %v1575, 4
        %v1588 = vsel %vm662, %v1587, %v1586
        %v1589 = vrot.slane %v1576, 3
        %v1590 = vsel %vm665, %v1589, %v1588
        %v1591 = vpack.c.b16 %v1590, %v1590
        %v1593 = vsel %vm755, %v1504, 0
        %v1596 = vsel %vm755, %v1591, 0
        %1598 = vmatprep.subr.bf16.mxu0 0
        %1599 = vmatpush1.bf16.xpose.msra.mxu0 %v1596
        %1600 = vmatprep.subr.bf16.mxu0 0
        %1601 = vmatpush1.bf16.xpose.msra.mxu0 0
        %1602 = vmatprep.subr.bf16.mxu0 0
        %1603 = vmatpush1.bf16.xpose.msra.mxu0 0
        %1604 = vmatprep.subr.bf16.mxu0 0
        %1605 = vmatpush1.bf16.xpose.msra.mxu0 0
        %1606 = vmatprep.subr.bf16.mxu0 0
        %1607 = vmatpush1.bf16.xpose.msra.mxu0 0
        %1608 = vmatprep.subr.bf16.mxu0 0
        %1609 = vmatpush1.bf16.xpose.msra.mxu0 0
        %1610 = vmatprep.subr.bf16.mxu0 0
        %1611 = vmatpush1.bf16.xpose.msra.mxu0 0
        %1612 = vmatprep.subr.bf16.mxu0 0
        %1613 = vmatpush1.bf16.xpose.msra.mxu0 0
        %1614 = vmatprep.subr.bf16.mxu0 0
        %1615 = vmatpush1.bf16.xpose.msra.mxu0 0
        %1616 = vmatprep.subr.bf16.mxu0 0
        %1617 = vmatpush1.bf16.xpose.msra.mxu0 0
        %1618 = vmatprep.subr.bf16.mxu0 0
        %1619 = vmatpush1.bf16.xpose.msra.mxu0 0
        %1620 = vmatprep.subr.bf16.mxu0 0
        %1621 = vmatpush1.bf16.xpose.msra.mxu0 0
        %1622 = vmatprep.subr.bf16.mxu0 0
        %1623 = vmatpush1.bf16.xpose.msra.mxu0 0
        %1624 = vmatprep.subr.bf16.mxu0 0
        %1625 = vmatpush1.bf16.xpose.msra.mxu0 0
        %1626 = vmatprep.subr.bf16.mxu0 0
        %1627 = vmatpush1.bf16.xpose.msra.mxu0 0
        %1628 = vmatprep.subr.bf16.mxu0 0
        %1629 = vmatpush1.bf16.xpose.msra.mxu0 0
        %1630 = vmatprep.mubr.bf16.mxu0 0
        %1631 = vmatmul.mubr.bf16.gmra.mrb[0].mxu0 %v1593
        %v1632 = vpop.f32.mrb[0].mxu0
        %v1633 = vadd.f32 0.0, %v1632
        %v1634 = vpop.f32.mrb[0].mxu0
        %v1635 = vpop.f32.mrb[0].mxu0
        %v1636 = vpop.f32.mrb[0].mxu0
        %1637 = vdwg.mxu0
        %v1638 = vmul.f32 %v1633, 0.35355338
        %v1639 = vsel %vm805, %v1638, -1e+30
        %s1640 = scalar_lea.vmem [#allocation2], 16
        %v1641 = vld [vmem:[%s1640] sm:$0xff]
        %v1642 = vsel %vm755, %v1639, -inf
        %1643 = vmax.xlane.f32.xlu0 %v1642
        %v1644 = vpop.xlane.xlu0 %1643
        %v1645 = vmax.f32 %v1641, %v1644
        %v1646 = vsub.f32 %v1641, %v1645
        %v1647 = vmul.f32 %v1646, 1.442695
        %v1648 = vpow.pop %v1647
        %1650 = vset.pattern.permute.xlu0 0
        %1651 = vperm.xlu0 %1650, %v1645
        %v1652 = vpop.permute.xlu0 %1651
        %v1654 = vsub.f32 %v1639, %v1652
        %v1655 = vmul.f32 %v1654, 1.442695
        %v1656 = vpow.pop %v1655
        %v1657 = vsel %vm805, %v1656, 0.0
        %s1658 = scalar_lea.vmem [#allocation3], 16
        %v1659 = vld [vmem:[%s1658] sm:$0xff]
        %v1660 = vmul.f32 %v1648, %v1659
        %v1661 = vsel %vm755, %v1657, 0.0
        %1662 = vadd.xlane.f32.xlu0 %v1661
        %v1663 = vpop.xlane.xlu0 %1662
        %v1664 = vadd.f32 %v1660, %v1663
        %1665 = vst.msk [vmem:[%s1658] sm:$0xff] %vm830, %v1664
        %s1666 = scalar_lea.vmem [#allocation4], 16
        %v1667 = vld [vmem:[%s1666] sm:$0xff]
        %1669 = vset.pattern.permute.xlu0 0
        %1670 = vperm.xlu0 %1669, %v1648
        %v1671 = vpop.permute.xlu0 %1670
        %v1673 = vmul.f32 %v1671, %v1667
        %v1674 = vpack.c.bf16 %v1657, %v1657
        %v1684 = vunpack.c.l.s4 1983009808
        %v1685 = vunpack.c.0.s8 %v1684
        %v1686 = vlaneseq
        %v1687 = vshrl.u32 %v1686, 7
        %v1688 = vsub.s32 %v1685, %v1687
        %v1689 = vrot.slane %v1410, %v1688
        %v1691 = vunpack.c.l.s4 1983009808
        %v1692 = vunpack.c.0.s8 %v1691
        %v1693 = vlaneseq
        %v1694 = vshrl.u32 %v1693, 7
        %v1695 = vsub.s32 %v1692, %v1694
        %v1696 = vrot.slane %v1411, %v1695
        %v1698 = vunpack.c.l.s4 1983009808
        %v1699 = vunpack.c.0.s8 %v1698
        %v1700 = vlaneseq
        %v1701 = vshrl.u32 %v1700, 7
        %v1702 = vsub.s32 %v1699, %v1701
        %v1703 = vrot.slane %v1412, %v1702
        %v1705 = vunpack.c.l.s4 1983009808
        %v1706 = vunpack.c.0.s8 %v1705
        %v1707 = vlaneseq
        %v1708 = vshrl.u32 %v1707, 7
        %v1709 = vsub.s32 %v1706, %v1708
        %v1710 = vrot.slane %v1413, %v1709
        %v1712 = vunpack.c.l.s4 1983009808
        %v1713 = vunpack.c.0.s8 %v1712
        %v1714 = vlaneseq
        %v1715 = vshrl.u32 %v1714, 7
        %v1716 = vsub.s32 %v1713, %v1715
        %v1717 = vrot.slane %v1414, %v1716
        %v1719 = vunpack.c.l.s4 1983009808
        %v1720 = vunpack.c.0.s8 %v1719
        %v1721 = vlaneseq
        %v1722 = vshrl.u32 %v1721, 7
        %v1723 = vsub.s32 %v1720, %v1722
        %v1724 = vrot.slane %v1415, %v1723
        %v1726 = vunpack.c.l.s4 1983009808
        %v1727 = vunpack.c.0.s8 %v1726
        %v1728 = vlaneseq
        %v1729 = vshrl.u32 %v1728, 7
        %v1730 = vsub.s32 %v1727, %v1729
        %v1731 = vrot.slane %v1416, %v1730
        %v1733 = vunpack.c.l.s4 1983009808
        %v1734 = vunpack.c.0.s8 %v1733
        %v1735 = vlaneseq
        %v1736 = vshrl.u32 %v1735, 7
        %v1737 = vsub.s32 %v1734, %v1736
        %v1738 = vrot.slane %v1417, %v1737
        %v1739 = vunpack.c.l.b16 %v1689
        %v1740 = vunpack.c.l.b16 %v1696
        %v1741 = vunpack.c.l.b16 %v1703
        %v1742 = vunpack.c.l.b16 %v1710
        %v1743 = vunpack.c.l.b16 %v1717
        %v1744 = vunpack.c.l.b16 %v1724
        %v1745 = vunpack.c.l.b16 %v1731
        %v1746 = vunpack.c.l.b16 %v1738
        %v1747 = vrot.slane %v1739, 2
        %v1748 = vrot.slane %v1740, 1
        %v1749 = vsel %vm647, %v1748, %v1747
        %v1750 = vsel %vm650, %v1741, %v1749
        %v1751 = vrot.slane %v1742, 7
        %v1752 = vsel %vm653, %v1751, %v1750
        %v1753 = vrot.slane %v1743, 6
        %v1754 = vsel %vm656, %v1753, %v1752
        %v1755 = vrot.slane %v1744, 5
        %v1756 = vsel %vm659, %v1755, %v1754
        %v1757 = vrot.slane %v1745, 4
        %v1758 = vsel %vm662, %v1757, %v1756
        %v1759 = vrot.slane %v1746, 3
        %v1760 = vsel %vm665, %v1759, %v1758
        %v1761 = vpack.c.b16 %v1760, %v1760
        %v1763 = vsel %vm755, %v1674, 0
        %v1766 = vsel %vm930, %v1761, 0
        %1768 = vmatprep.subr.bf16.mxu0 0
        %1769 = vmatpush1.bf16.msra.mxu0 %v1766
        %1770 = vmatprep.subr.bf16.mxu0 0
        %1771 = vmatpush1.bf16.msra.mxu0 0
        %1772 = vmatprep.subr.bf16.mxu0 0
        %1773 = vmatpush1.bf16.msra.mxu0 0
        %1774 = vmatprep.subr.bf16.mxu0 0
        %1775 = vmatpush1.bf16.msra.mxu0 0
        %1776 = vmatprep.subr.bf16.mxu0 0
        %1777 = vmatpush1.bf16.msra.mxu0 0
        %1778 = vmatprep.subr.bf16.mxu0 0
        %1779 = vmatpush1.bf16.msra.mxu0 0
        %1780 = vmatprep.subr.bf16.mxu0 0
        %1781 = vmatpush1.bf16.msra.mxu0 0
        %1782 = vmatprep.subr.bf16.mxu0 0
        %1783 = vmatpush1.bf16.msra.mxu0 0
        %1784 = vmatprep.subr.bf16.mxu0 0
        %1785 = vmatpush1.bf16.msra.mxu0 0
        %1786 = vmatprep.subr.bf16.mxu0 0
        %1787 = vmatpush1.bf16.msra.mxu0 0
        %1788 = vmatprep.subr.bf16.mxu0 0
        %1789 = vmatpush1.bf16.msra.mxu0 0
        %1790 = vmatprep.subr.bf16.mxu0 0
        %1791 = vmatpush1.bf16.msra.mxu0 0
        %1792 = vmatprep.subr.bf16.mxu0 0
        %1793 = vmatpush1.bf16.msra.mxu0 0
        %1794 = vmatprep.subr.bf16.mxu0 0
        %1795 = vmatpush1.bf16.msra.mxu0 0
        %1796 = vmatprep.subr.bf16.mxu0 0
        %1797 = vmatpush1.bf16.msra.mxu0 0
        %1798 = vmatprep.subr.bf16.mxu0 0
        %1799 = vmatpush1.bf16.msra.mxu0 0
        %1800 = vmatprep.mubr.bf16.mxu0 0
        %1801 = vmatmul.mubr.bf16.gmra.mrb[0].mxu0 %v1763
        %v1802 = vpop.f32.mrb[0].mxu0
        %v1803 = vadd.f32 0.0, %v1802
        %v1804 = vpop.f32.mrb[0].mxu0
        %v1805 = vpop.f32.mrb[0].mxu0
        %v1806 = vpop.f32.mrb[0].mxu0
        %1807 = vdwg.mxu0
        %v1808 = vadd.f32 %v1673, %v1803
        %1809 = vst.msk [vmem:[%s1666] sm:$0xff] %vm755, %v1808
        %1810 = vst.msk [vmem:[%s1640] sm:$0xff] %vm830, %v1645
        %v1811 = vld [vmem:[%s450] sm:$0x2]
        %v1812 = vld [vmem:[%s450 + $0x2] sm:$0x2]
        %v1813 = vld [vmem:[%s450 + $0x4] sm:$0x2]
        %v1814 = vld [vmem:[%s450 + $0x6] sm:$0x2]
        %v1815 = vld [vmem:[%s450 + $0x8] sm:$0x2]
        %v1816 = vld [vmem:[%s450 + $0xa] sm:$0x2]
        %v1817 = vld [vmem:[%s450 + $0xc] sm:$0x2]
        %v1818 = vld [vmem:[%s450 + $0xe] sm:$0x2]
        %v1819 = vld [vmem:[%s457] sm:$0x2]
        %v1820 = vld [vmem:[%s457 + $0x2] sm:$0x2]
        %v1821 = vld [vmem:[%s457 + $0x4] sm:$0x2]
        %v1822 = vld [vmem:[%s457 + $0x6] sm:$0x2]
        %v1823 = vld [vmem:[%s457 + $0x8] sm:$0x2]
        %v1824 = vld [vmem:[%s457 + $0xa] sm:$0x2]
        %v1825 = vld [vmem:[%s457 + $0xc] sm:$0x2]
        %v1826 = vld [vmem:[%s457 + $0xe] sm:$0x2]
        %v1827 = vld [vmem:[%s464] sm:$0x2]
        %v1828 = vld [vmem:[%s464 + $0x2] sm:$0x2]
        %v1829 = vld [vmem:[%s464 + $0x4] sm:$0x2]
        %v1830 = vld [vmem:[%s464 + $0x6] sm:$0x2]
        %v1831 = vld [vmem:[%s464 + $0x8] sm:$0x2]
        %v1832 = vld [vmem:[%s464 + $0xa] sm:$0x2]
        %v1833 = vld [vmem:[%s464 + $0xc] sm:$0x2]
        %v1834 = vld [vmem:[%s464 + $0xe] sm:$0x2]
        %v1844 = vunpack.c.l.s4 1983009808
        %v1845 = vunpack.c.0.s8 %v1844
        %v1846 = vlaneseq
        %v1847 = vshrl.u32 %v1846, 7
        %v1848 = vsub.s32 %v1845, %v1847
        %v1849 = vrot.slane %v1811, %v1848
        %v1851 = vunpack.c.l.s4 1983009808
        %v1852 = vunpack.c.0.s8 %v1851
        %v1853 = vlaneseq
        %v1854 = vshrl.u32 %v1853, 7
        %v1855 = vsub.s32 %v1852, %v1854
        %v1856 = vrot.slane %v1812, %v1855
        %v1858 = vunpack.c.l.s4 1983009808
        %v1859 = vunpack.c.0.s8 %v1858
        %v1860 = vlaneseq
        %v1861 = vshrl.u32 %v1860, 7
        %v1862 = vsub.s32 %v1859, %v1861
        %v1863 = vrot.slane %v1813, %v1862
        %v1865 = vunpack.c.l.s4 1983009808
        %v1866 = vunpack.c.0.s8 %v1865
        %v1867 = vlaneseq
        %v1868 = vshrl.u32 %v1867, 7
        %v1869 = vsub.s32 %v1866, %v1868
        %v1870 = vrot.slane %v1814, %v1869
        %v1872 = vunpack.c.l.s4 1983009808
        %v1873 = vunpack.c.0.s8 %v1872
        %v1874 = vlaneseq
        %v1875 = vshrl.u32 %v1874, 7
        %v1876 = vsub.s32 %v1873, %v1875
        %v1877 = vrot.slane %v1815, %v1876
        %v1879 = vunpack.c.l.s4 1983009808
        %v1880 = vunpack.c.0.s8 %v1879
        %v1881 = vlaneseq
        %v1882 = vshrl.u32 %v1881, 7
        %v1883 = vsub.s32 %v1880, %v1882
        %v1884 = vrot.slane %v1816, %v1883
        %v1886 = vunpack.c.l.s4 1983009808
        %v1887 = vunpack.c.0.s8 %v1886
        %v1888 = vlaneseq
        %v1889 = vshrl.u32 %v1888, 7
        %v1890 = vsub.s32 %v1887, %v1889
        %v1891 = vrot.slane %v1817, %v1890
        %v1893 = vunpack.c.l.s4 1983009808
        %v1894 = vunpack.c.0.s8 %v1893
        %v1895 = vlaneseq
        %v1896 = vshrl.u32 %v1895, 7
        %v1897 = vsub.s32 %v1894, %v1896
        %v1898 = vrot.slane %v1818, %v1897
        %v1899 = vunpack.c.l.b16 %v1849
        %v1900 = vunpack.c.l.b16 %v1856
        %v1901 = vunpack.c.l.b16 %v1863
        %v1902 = vunpack.c.l.b16 %v1870
        %v1903 = vunpack.c.l.b16 %v1877
        %v1904 = vunpack.c.l.b16 %v1884
        %v1905 = vunpack.c.l.b16 %v1891
        %v1906 = vunpack.c.l.b16 %v1898
        %v1907 = vrot.slane %v1899, 3
        %v1908 = vrot.slane %v1900, 2
        %v1909 = vsel %vm647, %v1908, %v1907
        %v1910 = vrot.slane %v1901, 1
        %v1911 = vsel %vm650, %v1910, %v1909
        %v1912 = vsel %vm653, %v1902, %v1911
        %v1913 = vrot.slane %v1903, 7
        %v1914 = vsel %vm656, %v1913, %v1912
        %v1915 = vrot.slane %v1904, 6
        %v1916 = vsel %vm659, %v1915, %v1914
        %v1917 = vrot.slane %v1905, 5
        %v1918 = vsel %vm662, %v1917, %v1916
        %v1919 = vrot.slane %v1906, 4
        %v1920 = vsel %vm665, %v1919, %v1918
        %v1921 = vpack.c.b16 %v1920, %v1920
        %v1931 = vunpack.c.l.s4 1983009808
        %v1932 = vunpack.c.0.s8 %v1931
        %v1933 = vlaneseq
        %v1934 = vshrl.u32 %v1933, 7
        %v1935 = vsub.s32 %v1932, %v1934
        %v1936 = vrot.slane %v1819, %v1935
        %v1938 = vunpack.c.l.s4 1983009808
        %v1939 = vunpack.c.0.s8 %v1938
        %v1940 = vlaneseq
        %v1941 = vshrl.u32 %v1940, 7
        %v1942 = vsub.s32 %v1939, %v1941
        %v1943 = vrot.slane %v1820, %v1942
        %v1945 = vunpack.c.l.s4 1983009808
        %v1946 = vunpack.c.0.s8 %v1945
        %v1947 = vlaneseq
        %v1948 = vshrl.u32 %v1947, 7
        %v1949 = vsub.s32 %v1946, %v1948
        %v1950 = vrot.slane %v1821, %v1949
        %v1952 = vunpack.c.l.s4 1983009808
        %v1953 = vunpack.c.0.s8 %v1952
        %v1954 = vlaneseq
        %v1955 = vshrl.u32 %v1954, 7
        %v1956 = vsub.s32 %v1953, %v1955
        %v1957 = vrot.slane %v1822, %v1956
        %v1959 = vunpack.c.l.s4 1983009808
        %v1960 = vunpack.c.0.s8 %v1959
        %v1961 = vlaneseq
        %v1962 = vshrl.u32 %v1961, 7
        %v1963 = vsub.s32 %v1960, %v1962
        %v1964 = vrot.slane %v1823, %v1963
        %v1966 = vunpack.c.l.s4 1983009808
        %v1967 = vunpack.c.0.s8 %v1966
        %v1968 = vlaneseq
        %v1969 = vshrl.u32 %v1968, 7
        %v1970 = vsub.s32 %v1967, %v1969
        %v1971 = vrot.slane %v1824, %v1970
        %v1973 = vunpack.c.l.s4 1983009808
        %v1974 = vunpack.c.0.s8 %v1973
        %v1975 = vlaneseq
        %v1976 = vshrl.u32 %v1975, 7
        %v1977 = vsub.s32 %v1974, %v1976
        %v1978 = vrot.slane %v1825, %v1977
        %v1980 = vunpack.c.l.s4 1983009808
        %v1981 = vunpack.c.0.s8 %v1980
        %v1982 = vlaneseq
        %v1983 = vshrl.u32 %v1982, 7
        %v1984 = vsub.s32 %v1981, %v1983
        %v1985 = vrot.slane %v1826, %v1984
        %v1986 = vunpack.c.l.b16 %v1936
        %v1987 = vunpack.c.l.b16 %v1943
        %v1988 = vunpack.c.l.b16 %v1950
        %v1989 = vunpack.c.l.b16 %v1957
        %v1990 = vunpack.c.l.b16 %v1964
        %v1991 = vunpack.c.l.b16 %v1971
        %v1992 = vunpack.c.l.b16 %v1978
        %v1993 = vunpack.c.l.b16 %v1985
        %v1994 = vrot.slane %v1986, 3
        %v1995 = vrot.slane %v1987, 2
        %v1996 = vsel %vm647, %v1995, %v1994
        %v1997 = vrot.slane %v1988, 1
        %v1998 = vsel %vm650, %v1997, %v1996
        %v1999 = vsel %vm653, %v1989, %v1998
        %v2000 = vrot.slane %v1990, 7
        %v2001 = vsel %vm656, %v2000, %v1999
        %v2002 = vrot.slane %v1991, 6
        %v2003 = vsel %vm659, %v2002, %v2001
        %v2004 = vrot.slane %v1992, 5
        %v2005 = vsel %vm662, %v2004, %v2003
        %v2006 = vrot.slane %v1993, 4
        %v2007 = vsel %vm665, %v2006, %v2005
        %v2008 = vpack.c.b16 %v2007, %v2007
        %v2010 = vsel %vm755, %v1921, 0
        %v2013 = vsel %vm755, %v2008, 0
        %2015 = vmatprep.subr.bf16.mxu0 0
        %2016 = vmatpush1.bf16.xpose.msra.mxu0 %v2013
        %2017 = vmatprep.subr.bf16.mxu0 0
        %2018 = vmatpush1.bf16.xpose.msra.mxu0 0
        %2019 = vmatprep.subr.bf16.mxu0 0
        %2020 = vmatpush1.bf16.xpose.msra.mxu0 0
        %2021 = vmatprep.subr.bf16.mxu0 0
        %2022 = vmatpush1.bf16.xpose.msra.mxu0 0
        %2023 = vmatprep.subr.bf16.mxu0 0
        %2024 = vmatpush1.bf16.xpose.msra.mxu0 0
        %2025 = vmatprep.subr.bf16.mxu0 0
        %2026 = vmatpush1.bf16.xpose.msra.mxu0 0
        %2027 = vmatprep.subr.bf16.mxu0 0
        %2028 = vmatpush1.bf16.xpose.msra.mxu0 0
        %2029 = vmatprep.subr.bf16.mxu0 0
        %2030 = vmatpush1.bf16.xpose.msra.mxu0 0
        %2031 = vmatprep.subr.bf16.mxu0 0
        %2032 = vmatpush1.bf16.xpose.msra.mxu0 0
        %2033 = vmatprep.subr.bf16.mxu0 0
        %2034 = vmatpush1.bf16.xpose.msra.mxu0 0
        %2035 = vmatprep.subr.bf16.mxu0 0
        %2036 = vmatpush1.bf16.xpose.msra.mxu0 0
        %2037 = vmatprep.subr.bf16.mxu0 0
        %2038 = vmatpush1.bf16.xpose.msra.mxu0 0
        %2039 = vmatprep.subr.bf16.mxu0 0
        %2040 = vmatpush1.bf16.xpose.msra.mxu0 0
        %2041 = vmatprep.subr.bf16.mxu0 0
        %2042 = vmatpush1.bf16.xpose.msra.mxu0 0
        %2043 = vmatprep.subr.bf16.mxu0 0
        %2044 = vmatpush1.bf16.xpose.msra.mxu0 0
        %2045 = vmatprep.subr.bf16.mxu0 0
        %2046 = vmatpush1.bf16.xpose.msra.mxu0 0
        %2047 = vmatprep.mubr.bf16.mxu0 0
        %2048 = vmatmul.mubr.bf16.gmra.mrb[0].mxu0 %v2010
        %v2049 = vpop.f32.mrb[0].mxu0
        %v2050 = vadd.f32 0.0, %v2049
        %v2051 = vpop.f32.mrb[0].mxu0
        %v2052 = vpop.f32.mrb[0].mxu0
        %v2053 = vpop.f32.mrb[0].mxu0
        %2054 = vdwg.mxu0
        %v2055 = vmul.f32 %v2050, 0.35355338
        %v2056 = vsel %vm805, %v2055, -1e+30
        %s2057 = scalar_lea.vmem [#allocation2], 24
        %v2058 = vld [vmem:[%s2057] sm:$0xff]
        %v2059 = vsel %vm755, %v2056, -inf
        %2060 = vmax.xlane.f32.xlu0 %v2059
        %v2061 = vpop.xlane.xlu0 %2060
        %v2062 = vmax.f32 %v2058, %v2061
        %v2063 = vsub.f32 %v2058, %v2062
        %v2064 = vmul.f32 %v2063, 1.442695
        %v2065 = vpow.pop %v2064
        %2067 = vset.pattern.permute.xlu0 0
        %2068 = vperm.xlu0 %2067, %v2062
        %v2069 = vpop.permute.xlu0 %2068
        %v2071 = vsub.f32 %v2056, %v2069
        %v2072 = vmul.f32 %v2071, 1.442695
        %v2073 = vpow.pop %v2072
        %v2074 = vsel %vm805, %v2073, 0.0
        %s2075 = scalar_lea.vmem [#allocation3], 24
        %v2076 = vld [vmem:[%s2075] sm:$0xff]
        %v2077 = vmul.f32 %v2065, %v2076
        %v2078 = vsel %vm755, %v2074, 0.0
        %2079 = vadd.xlane.f32.xlu0 %v2078
        %v2080 = vpop.xlane.xlu0 %2079
        %v2081 = vadd.f32 %v2077, %v2080
        %2082 = vst.msk [vmem:[%s2075] sm:$0xff] %vm830, %v2081
        %s2083 = scalar_lea.vmem [#allocation4], 24
        %v2084 = vld [vmem:[%s2083] sm:$0xff]
        %2086 = vset.pattern.permute.xlu0 0
        %2087 = vperm.xlu0 %2086, %v2065
        %v2088 = vpop.permute.xlu0 %2087
        %v2090 = vmul.f32 %v2088, %v2084
        %v2091 = vpack.c.bf16 %v2074, %v2074
        %v2101 = vunpack.c.l.s4 1983009808
        %v2102 = vunpack.c.0.s8 %v2101
        %v2103 = vlaneseq
        %v2104 = vshrl.u32 %v2103, 7
        %v2105 = vsub.s32 %v2102, %v2104
        %v2106 = vrot.slane %v1827, %v2105
        %v2108 = vunpack.c.l.s4 1983009808
        %v2109 = vunpack.c.0.s8 %v2108
        %v2110 = vlaneseq
        %v2111 = vshrl.u32 %v2110, 7
        %v2112 = vsub.s32 %v2109, %v2111
        %v2113 = vrot.slane %v1828, %v2112
        %v2115 = vunpack.c.l.s4 1983009808
        %v2116 = vunpack.c.0.s8 %v2115
        %v2117 = vlaneseq
        %v2118 = vshrl.u32 %v2117, 7
        %v2119 = vsub.s32 %v2116, %v2118
        %v2120 = vrot.slane %v1829, %v2119
        %v2122 = vunpack.c.l.s4 1983009808
        %v2123 = vunpack.c.0.s8 %v2122
        %v2124 = vlaneseq
        %v2125 = vshrl.u32 %v2124, 7
        %v2126 = vsub.s32 %v2123, %v2125
        %v2127 = vrot.slane %v1830, %v2126
        %v2129 = vunpack.c.l.s4 1983009808
        %v2130 = vunpack.c.0.s8 %v2129
        %v2131 = vlaneseq
        %v2132 = vshrl.u32 %v2131, 7
        %v2133 = vsub.s32 %v2130, %v2132
        %v2134 = vrot.slane %v1831, %v2133
        %v2136 = vunpack.c.l.s4 1983009808
        %v2137 = vunpack.c.0.s8 %v2136
        %v2138 = vlaneseq
        %v2139 = vshrl.u32 %v2138, 7
        %v2140 = vsub.s32 %v2137, %v2139
        %v2141 = vrot.slane %v1832, %v2140
        %v2143 = vunpack.c.l.s4 1983009808
        %v2144 = vunpack.c.0.s8 %v2143
        %v2145 = vlaneseq
        %v2146 = vshrl.u32 %v2145, 7
        %v2147 = vsub.s32 %v2144, %v2146
        %v2148 = vrot.slane %v1833, %v2147
        %v2150 = vunpack.c.l.s4 1983009808
        %v2151 = vunpack.c.0.s8 %v2150
        %v2152 = vlaneseq
        %v2153 = vshrl.u32 %v2152, 7
        %v2154 = vsub.s32 %v2151, %v2153
        %v2155 = vrot.slane %v1834, %v2154
        %v2156 = vunpack.c.l.b16 %v2106
        %v2157 = vunpack.c.l.b16 %v2113
        %v2158 = vunpack.c.l.b16 %v2120
        %v2159 = vunpack.c.l.b16 %v2127
        %v2160 = vunpack.c.l.b16 %v2134
        %v2161 = vunpack.c.l.b16 %v2141
        %v2162 = vunpack.c.l.b16 %v2148
        %v2163 = vunpack.c.l.b16 %v2155
        %v2164 = vrot.slane %v2156, 3
        %v2165 = vrot.slane %v2157, 2
        %v2166 = vsel %vm647, %v2165, %v2164
        %v2167 = vrot.slane %v2158, 1
        %v2168 = vsel %vm650, %v2167, %v2166
        %v2169 = vsel %vm653, %v2159, %v2168
        %v2170 = vrot.slane %v2160, 7
        %v2171 = vsel %vm656, %v2170, %v2169
        %v2172 = vrot.slane %v2161, 6
        %v2173 = vsel %vm659, %v2172, %v2171
        %v2174 = vrot.slane %v2162, 5
        %v2175 = vsel %vm662, %v2174, %v2173
        %v2176 = vrot.slane %v2163, 4
        %v2177 = vsel %vm665, %v2176, %v2175
        %v2178 = vpack.c.b16 %v2177, %v2177
        %v2180 = vsel %vm755, %v2091, 0
        %v2183 = vsel %vm930, %v2178, 0
        %2185 = vmatprep.subr.bf16.mxu0 0
        %2186 = vmatpush1.bf16.msra.mxu0 %v2183
        %2187 = vmatprep.subr.bf16.mxu0 0
        %2188 = vmatpush1.bf16.msra.mxu0 0
        %2189 = vmatprep.subr.bf16.mxu0 0
        %2190 = vmatpush1.bf16.msra.mxu0 0
        %2191 = vmatprep.subr.bf16.mxu0 0
        %2192 = vmatpush1.bf16.msra.mxu0 0
        %2193 = vmatprep.subr.bf16.mxu0 0
        %2194 = vmatpush1.bf16.msra.mxu0 0
        %2195 = vmatprep.subr.bf16.mxu0 0
        %2196 = vmatpush1.bf16.msra.mxu0 0
        %2197 = vmatprep.subr.bf16.mxu0 0
        %2198 = vmatpush1.bf16.msra.mxu0 0
        %2199 = vmatprep.subr.bf16.mxu0 0
        %2200 = vmatpush1.bf16.msra.mxu0 0
        %2201 = vmatprep.subr.bf16.mxu0 0
        %2202 = vmatpush1.bf16.msra.mxu0 0
        %2203 = vmatprep.subr.bf16.mxu0 0
        %2204 = vmatpush1.bf16.msra.mxu0 0
        %2205 = vmatprep.subr.bf16.mxu0 0
        %2206 = vmatpush1.bf16.msra.mxu0 0
        %2207 = vmatprep.subr.bf16.mxu0 0
        %2208 = vmatpush1.bf16.msra.mxu0 0
        %2209 = vmatprep.subr.bf16.mxu0 0
        %2210 = vmatpush1.bf16.msra.mxu0 0
        %2211 = vmatprep.subr.bf16.mxu0 0
        %2212 = vmatpush1.bf16.msra.mxu0 0
        %2213 = vmatprep.subr.bf16.mxu0 0
        %2214 = vmatpush1.bf16.msra.mxu0 0
        %2215 = vmatprep.subr.bf16.mxu0 0
        %2216 = vmatpush1.bf16.msra.mxu0 0
        %2217 = vmatprep.mubr.bf16.mxu0 0
        %2218 = vmatmul.mubr.bf16.gmra.mrb[0].mxu0 %v2180
        %v2219 = vpop.f32.mrb[0].mxu0
        %v2220 = vadd.f32 0.0, %v2219
        %v2221 = vpop.f32.mrb[0].mxu0
        %v2222 = vpop.f32.mrb[0].mxu0
        %v2223 = vpop.f32.mrb[0].mxu0
        %2224 = vdwg.mxu0
        %v2225 = vadd.f32 %v2090, %v2220
        %2226 = vst.msk [vmem:[%s2083] sm:$0xff] %vm755, %v2225
        %2227 = vst.msk [vmem:[%s2057] sm:$0xff] %vm830, %v2062
        // Predicated region
        $region164: #{transformer_forward.11} parent=146 // pred_check
          %p2228 = pneg %p530
        $region165: #{transformer_forward.11} parent=146 // pred_check_branch
          %2230 = sbr.rel (%p2228) target = $region167
        $region166: #{transformer_forward.11} parent=146 // pred_region
          %v2231 = vld [vmem:[#allocation3] sm:$0xff]
          %vm2232 = vcmp.eq.f32.partialorder %v2231, 0.0
          %v2233 = vsel %vm2232, 1.0, %v2231
          %v2234 = vrcp.pop %v2233
          %v2235 = vld [vmem:[#allocation4] sm:$0xff]
          %2237 = vset.pattern.permute.xlu0 0
          %2238 = vperm.xlu0 %2237, %v2234
          %v2239 = vpop.permute.xlu0 %2238
          %v2241 = vmul.f32 %v2235, %v2239
          %2242 = vst.msk [vmem:[%s526] sm:$0xff] %vm755, %v2241
          %v2243 = vld [vmem:[%s1241] sm:$0xff]
          %vm2244 = vcmp.eq.f32.partialorder %v2243, 0.0
          %v2245 = vsel %vm2244, 1.0, %v2243
          %v2246 = vrcp.pop %v2245
          %v2247 = vld [vmem:[%s1249] sm:$0xff]
          %2249 = vset.pattern.permute.xlu0 0
          %2250 = vperm.xlu0 %2249, %v2246
          %v2251 = vpop.permute.xlu0 %2250
          %v2253 = vmul.f32 %v2247, %v2251
          %2255 = vrot.lane.b32.xlu0 %v2253, 8
          %v2256 = vpop.permute.xlu0 %2255
          %vm2258 = vcmask 130112
          %2259 = vst.msk [vmem:[%s526] sm:$0xff] %vm2258, %v2256
          %v2260 = vld [vmem:[%s1658] sm:$0xff]
          %vm2261 = vcmp.eq.f32.partialorder %v2260, 0.0
          %v2262 = vsel %vm2261, 1.0, %v2260
          %v2263 = vrcp.pop %v2262
          %v2264 = vld [vmem:[%s1666] sm:$0xff]
          %2266 = vset.pattern.permute.xlu0 0
          %2267 = vperm.xlu0 %2266, %v2263
          %v2268 = vpop.permute.xlu0 %2267
          %v2270 = vmul.f32 %v2264, %v2268
          %2272 = vrot.lane.b32.xlu0 %v2270, 16
          %v2273 = vpop.permute.xlu0 %2272
          %vm2275 = vcmask 195712
          %2276 = vst.msk [vmem:[%s526] sm:$0xff] %vm2275, %v2273
          %v2277 = vld [vmem:[%s2075] sm:$0xff]
          %vm2278 = vcmp.eq.f32.partialorder %v2277, 0.0
          %v2279 = vsel %vm2278, 1.0, %v2277
          %v2280 = vrcp.pop %v2279
          %v2281 = vld [vmem:[%s2083] sm:$0xff]
          %2283 = vset.pattern.permute.xlu0 0
          %2284 = vperm.xlu0 %2283, %v2280
          %v2285 = vpop.permute.xlu0 %2284
          %v2287 = vmul.f32 %v2281, %v2285
          %2289 = vrot.lane.b32.xlu0 %v2287, 24
          %v2290 = vpop.permute.xlu0 %2289
          %vm2292 = vcmask 261312
          %2293 = vst.msk [vmem:[%s526] sm:$0xff] %vm2292, %v2290
        $region167: #{transformer_forward.11} parent=146 // pred_fallthru
          _
        %p2294 = scmp.lt.s32.totalorder %s20, 1
        %s2295 = scalar_select %p2294, %s20, 1
        %p2296 = scmp.lt.s32.totalorder %s21, 0
        %s2297 = scalar_select %p2296, %s21, 0
        %s2298 = sadd.s32 %s2297, %s2295
        %s2299 = smul.addr %s2298, 8
        %s2300 = scalar_lea.vmem %s4, %s2299
        // Predicated region
        $region168: #{transformer_forward.11} parent=146 // pred_check
          %p2301 = pneg %p168
        $region169: #{transformer_forward.11} parent=146 // pred_check_branch
          %2303 = sbr.rel (%p2301) target = $region171
        $region170: #{transformer_forward.11} parent=146 // pred_region
          _
        $region171: #{transformer_forward.11} parent=146 // pred_fallthru
          _
      $region147: #{transformer_forward.11} parent=5 // pred_fallthru
        _
      %p2304 = scmp.le.s32.totalorder 2, %s10
      // Predicated region
      $region172: #{transformer_forward.11} parent=5 // pred_check
        %p2305 = pneg %p2304
      $region173: #{transformer_forward.11} parent=5 // pred_check_branch
        %2307 = sbr.rel (%p2305) target = $region175
      $region174: #{transformer_forward.11} parent=5 // pred_region
        %s2308 = ssub.s32 %s10, 2
        // Predicated region
        $region176: #{transformer_forward.11} parent=174 // pred_check
          %p2309 = pneg %p174
        $region177: #{transformer_forward.11} parent=174 // pred_check_branch
          %2311 = sbr.rel (%p2309) target = $region179
        $region178: #{transformer_forward.11} parent=174 // pred_region
          %p2312 = scmp.lt.s32.totalorder %s23, 1
          %s2313 = scalar_select %p2312, %s23, 1
          %p2314 = scmp.lt.s32.totalorder %s24, 0
          %s2315 = scalar_select %p2314, %s24, 0
          %s2316 = sadd.s32 %s2315, %s2313
          %s2317 = smul.addr %s2316, 8
          %s2318 = scalar_lea.vmem %s4, %s2317
        $region179: #{transformer_forward.11} parent=174 // pred_fallthru
          _
      $region175: #{transformer_forward.11} parent=5 // pred_fallthru
        _
    $region6: #{transformer_forward.11} parent=1 // loop_footer
      %s14 = sadd.s32 1, %s10
    $region7: #{transformer_forward.11} parent=1 // loop_footer_branch
      %9 = sbr.rel target = $region3
    $region8: #{transformer_forward.11} parent=1 // loop_exit
      _

</llo_original>
